<compile_context>
chip_gen: v6e
topology: v6e:2x2x1
jax: 0.10.0
libtpu: 0.0.40
codegen_flags: <defaults>
</compile_context>

<pallas_src>
import functools

import jax
import jax.numpy as jnp
import numpy as np
from jax.experimental import pallas as pl
from jax.experimental.pallas import tpu as pltpu

IMG = 32 * 32   # lanes per image in the flattened layout
PAD = 128       # zero lanes appended to the input slab (>= 41 needed, see assert)


def _widths(n_batch):
    """Slab widths for the lane-dense layout (lane = 1024*n + 32*y + x)."""
    w = n_batch * IMG + PAD   # padded input width
    l1 = w - 66               # conv1 output slab
    l1m = l1 - 33             # pooled1 slab   (lane = 1024n + 64u + 2v)
    l2 = l1m - 132            # conv2 output slab (same lane coords as pooled1)
    l2m = l2 - 66             # pooled2 slab   (lane = 1024n + 128p + 4q)
    return w, l1, l1m, l2, l2m


def _lenet_kernel(x_ref, w1b_ref, w2b_ref, sel_ref, fw1b_ref, fw2b_ref, fw3b_ref,
                  out_ref, ps_ref, v_ref, *, n_batch):
    f32 = jnp.float32
    N = n_batch
    _, L1, L1m, L2, L2m = _widths(N)

    # ---------------- conv1 (1 -> 6, 3x3 VALID) + bias + ReLU ----------------
    # 9 broadcast-multiply taps on the VPU (MXU gain here is marginal; review
    # marked it optional).  w1b packs [w1 | b1] as [6, 9+1].
    x = x_ref[...]                                   # [1, W]
    w1 = w1b_ref[:, 0:9]                             # [6, 9]   tap t = 3i + j
    b1 = w1b_ref[:, 9:10]                            # [6, 1]
    acc1 = None
    for i in range(3):
        for j in range(3):
            t = 3 * i + j
            term = w1[:, t:t + 1] * x[:, 32 * i + j: 32 * i + j + L1]
            acc1 = term if acc1 is None else acc1 + term
    c1 = jnp.maximum(acc1 + b1, 0.0)                 # [6, L1]

    # -------- 2x2 / stride-2 max pool = max of 4 lane-shifted slices ---------
    p1 = jnp.maximum(jnp.maximum(c1[:, 0:L1m], c1[:, 1:1 + L1m]),
                     jnp.maximum(c1[:, 32:32 + L1m], c1[:, 33:33 + L1m]))   # [6, L1m]

    # ---------------- conv2 (6 -> 16, 3x3 VALID) + bias + ReLU ---------------
    # Stack the 9 lane-shifted tap slices into a [54, L2] operand (VMEM scratch)
    # and do a single K=54 MXU matmul instead of 9 K=6 dots + 8 accumulate passes.
    for i in range(3):
        for j in range(3):
            t = 3 * i + j
            d = 64 * i + 2 * j                       # tap shift in pooled1 lanes
            ps_ref[6 * t: 6 * t + 6, :] = p1[:, d: d + L2]
    w2 = w2b_ref[:, 0:54]                            # [16, 54]  col = 6*tap + ci
    b2 = w2b_ref[:, 54:55]                           # [16, 1]
    c2 = jnp.maximum(
        jnp.dot(w2, ps_ref[...], preferred_element_type=f32) + b2, 0.0)      # [16, L2]

    # -------- 2x2 / stride-2 max pool on the conv2 grid ----------------------
    m2 = jnp.maximum(jnp.maximum(c2[:, 0:L2m], c2[:, 2:2 + L2m]),
                     jnp.maximum(c2[:, 64:64 + L2m], c2[:, 66:66 + L2m]))    # [16, L2m]

    # ---- compact + flatten: per-image, lane-tile aligned, host-built sel ----
    # sel_ref packs [sel (768 x 576) ; cmask (16 x 576)].
    # sel[l, 36c+6p+q] = 1 iff l == 128p + 4q; cmask[c, j] = 1 iff j//36 == c.
    sel = sel_ref[0:768, :]                          # [768, 576]
    cmask = sel_ref[768:784, :]                      # [16, 576]
    for n in range(N):
        t_n = jnp.dot(m2[:, IMG * n: IMG * n + 768], sel,
                      preferred_element_type=f32)    # [16, 576] (36 vals replicated per ch.)
        v_ref[n:n + 1, :] = jnp.sum(t_n * cmask, axis=0, keepdims=True)      # [1, 576]

    # --------------- fc1 (576->120) -> fc2 (120->84) -> fc3 (84->10) ---------
    # Batched over N; biases ride in the last row of each packed weight slab.
    V = v_ref[...]                                   # [N, 576]  (torch .view order)
    h = jnp.maximum(jnp.dot(V, fw1b_ref[0:576, :], preferred_element_type=f32)
                    + fw1b_ref[576:577, :], 0.0)     # [N, 120]
    h = jnp.maximum(jnp.dot(h, fw2b_ref[0:120, :], preferred_element_type=f32)
                    + fw2b_ref[120:121, :], 0.0)     # [N, 84]
    out_ref[...] = (jnp.dot(h, fw3b_ref[0:84, :], preferred_element_type=f32)
                    + fw3b_ref[84:85, :])            # [N, 10]


def net_forward(x, p):
    """x: [N, 1, 32, 32] float32; p: output of prepare_params()."""
    n = x.shape[0]
    _, _, _, l2, l2m = _widths(n)
    # Lane-layout invariant: every per-image compaction window must fit in the
    # pooled2 slab (guaranteed by the PAD zero lanes appended to the input).
    assert IMG * (n - 1) + 768 <= l2m, "input padding too small for the lane layout"

    x_flat = jnp.pad(x.astype(jnp.float32).reshape(1, n * IMG), ((0, 0), (0, PAD)))
    args = (x_flat, p["w1b"], p["w2b"], p["selpack"], p["fw1b"], p["fw2b"], p["fw3b"])
    vspec = pl.BlockSpec(memory_space=pltpu.MemorySpace.VMEM)
    return pl.pallas_call(
        functools.partial(_lenet_kernel, n_batch=n),
        out_shape=jax.ShapeDtypeStruct((n, 10), jnp.float32),
        in_specs=[vspec] * len(args),
        out_specs=vspec,
        scratch_shapes=[pltpu.VMEM((54, l2), jnp.float32),   # stacked conv2 taps
                        pltpu.VMEM((n, 576), jnp.float32)],  # flattened features
    )(*args)


def init_params(key):
    """Deterministic synthetic weights with PyTorch-module shapes."""
    ks = jax.random.split(key, 10)
    s = 0.1
    return {
        "conv1_w": s * jax.random.normal(ks[0], (6, 1, 3, 3), jnp.float32),
        "conv1_b": s * jax.random.normal(ks[1], (6,), jnp.float32),
        "conv2_w": s * jax.random.normal(ks[2], (16, 6, 3, 3), jnp.float32),
        "conv2_b": s * jax.random.normal(ks[3], (16,), jnp.float32),
        "fc1_w": s * jax.random.normal(ks[4], (120, 16 * 6 * 6), jnp.float32),
        "fc1_b": s * jax.random.normal(ks[5], (120,), jnp.float32),
        "fc2_w": s * jax.random.normal(ks[6], (84, 120), jnp.float32),
        "fc2_b": s * jax.random.normal(ks[7], (84,), jnp.float32),
        "fc3_w": s * jax.random.normal(ks[8], (10, 84), jnp.float32),
        "fc3_b": s * jax.random.normal(ks[9], (10,), jnp.float32),
    }


def prepare_params(params):
    """One-time host-side weight re-layout / packing into kernel-friendly slabs."""
    f32 = jnp.float32
    w1 = params["conv1_w"].astype(f32).reshape(6, 9)                       # [c, 3i+j]
    b1 = params["conv1_b"].astype(f32).reshape(6, 1)
    # conv2: column order 6*(3i+j) + ci  (matches the stacked [54, L2] operand)
    w2 = params["conv2_w"].astype(f32).transpose(0, 2, 3, 1).reshape(16, 54)
    b2 = params["conv2_b"].astype(f32).reshape(16, 1)
    fw1 = params["fc1_w"].astype(f32).T                                    # [576, 120]
    fb1 = params["fc1_b"].astype(f32).reshape(1, 120)
    fw2 = params["fc2_w"].astype(f32).T                                    # [120, 84]
    fb2 = params["fc2_b"].astype(f32).reshape(1, 84)
    fw3 = params["fc3_w"].astype(f32).T                                    # [84, 10]
    fb3 = params["fc3_b"].astype(f32).reshape(1, 10)

    # Batch-independent selection matrix + channel block-mask (built once here
    # instead of with broadcasted_iota inside the kernel).
    sel = np.zeros((768, 576), np.float32)
    cmask = np.zeros((16, 576), np.float32)
    for c in range(16):
        for pp in range(6):
            for qq in range(6):
                col = 36 * c + 6 * pp + qq          # torch .view order (c, h, w)
                sel[128 * pp + 4 * qq, col] = 1.0   # source lane within the 768 window
                cmask[c, col] = 1.0
    selpack = jnp.asarray(np.concatenate([sel, cmask], axis=0))            # [784, 576]

    return {
        "w1b": jnp.concatenate([w1, b1], axis=1),      # [6, 10]
        "w2b": jnp.concatenate([w2, b2], axis=1),      # [16, 55]
        "selpack": selpack,                            # [784, 576]
        "fw1b": jnp.concatenate([fw1, fb1], axis=0),   # [577, 120]
        "fw2b": jnp.concatenate([fw2, fb2], axis=0),   # [121, 84]
        "fw3b": jnp.concatenate([fw3, fb3], axis=0),   # [85, 10]
    }


def reference_forward(x, params):
    """Plain-JAX/XLA reference matching the PyTorch module semantics."""
    def conv(a, w, b):
        out = jax.lax.conv_general_dilated(
            a, w, window_strides=(1, 1), padding="VALID",
            dimension_numbers=("NCHW", "OIHW", "NCHW"))
        return out + b[None, :, None, None]

    def pool(a):
        return jax.lax.reduce_window(a, -jnp.inf, jax.lax.max,
                                     (1, 1, 2, 2), (1, 1, 2, 2), "VALID")

    h = pool(jax.nn.relu(conv(x, params["conv1_w"], params["conv1_b"])))
    h = pool(jax.nn.relu(conv(h, params["conv2_w"], params["conv2_b"])))
    h = h.reshape(h.shape[0], -1)
    h = jax.nn.relu(h @ params["fc1_w"].T + params["fc1_b"])
    h = jax.nn.relu(h @ params["fc2_w"].T + params["fc2_b"])
    return h @ params["fc3_w"].T + params["fc3_b"]


if __name__ == "__main__":
    key = jax.random.PRNGKey(0)
    k_x, k_p = jax.random.split(key)
    # LeNet geometry requires 1x32x32 inputs so 16*6*6 flat features line up.
    x = jax.random.normal(k_x, (2, 1, 32, 32), jnp.float32)
    params = init_params(k_p)
    prepped = prepare_params(params)          # one-time weight prep, outside the hot path

    fwd = jax.jit(net_forward)
    out = jax.block_until_ready(fwd(x, prepped))
    assert out.shape == (2, 10) and out.dtype == jnp.float32, (out.shape, out.dtype)

    ref = jax.block_until_ready(reference_forward(x, params))
    np.testing.assert_allclose(np.asarray(out), np.asarray(ref), rtol=2e-3, atol=2e-3)
    print("KERNEL_OK")
</pallas_src>

<mosaic_0001>
module attributes {stable_mosaic.version = 11 : i64} {
  func.func @_lenet_kernel(%arg0: memref<1x2176xf32, #tpu.memory_space<vmem>>, %arg1: memref<6x10xf32, #tpu.memory_space<vmem>>, %arg2: memref<16x55xf32, #tpu.memory_space<vmem>>, %arg3: memref<784x576xf32, #tpu.memory_space<vmem>>, %arg4: memref<577x120xf32, #tpu.memory_space<vmem>>, %arg5: memref<121x84xf32, #tpu.memory_space<vmem>>, %arg6: memref<85x10xf32, #tpu.memory_space<vmem>>, %arg7: memref<2x10xf32, #tpu.memory_space<vmem>>, %arg8: memref<54x1945xf32, #tpu.memory_space<vmem>>, %arg9: memref<2x576xf32, #tpu.memory_space<vmem>>) attributes {dimension_semantics = [], scalar_prefetch = 0 : i64, scratch_operands = 2 : i64, tpu.core_type = #tpu.core_type<tc>} {
    %c0 = arith.constant 0 : index
    %c0_0 = arith.constant 0 : index
    %0 = vector.load %arg0[%c0, %c0_0] : memref<1x2176xf32, #tpu.memory_space<vmem>>, vector<1x2176xf32>
    %c0_1 = arith.constant 0 : index
    %c0_2 = arith.constant 0 : index
    %1 = vector.load %arg1[%c0_1, %c0_2] : memref<6x10xf32, #tpu.memory_space<vmem>>, vector<6x9xf32>
    %c0_3 = arith.constant 0 : index
    %c9 = arith.constant 9 : index
    %2 = vector.load %arg1[%c0_3, %c9] : memref<6x10xf32, #tpu.memory_space<vmem>>, vector<6x1xf32>
    %3 = vector.extract_strided_slice %1 {offsets = [0, 0], sizes = [6, 1], strides = [1, 1]} : vector<6x9xf32> to vector<6x1xf32>
    %4 = vector.extract_strided_slice %0 {offsets = [0, 0], sizes = [1, 2110], strides = [1, 1]} : vector<1x2176xf32> to vector<1x2110xf32>
    %5 = vector.broadcast %3 : vector<6x1xf32> to vector<6x2110xf32>
    %6 = vector.broadcast %4 : vector<1x2110xf32> to vector<6x2110xf32>
    %7 = arith.mulf %5, %6 : vector<6x2110xf32>
    %8 = vector.extract_strided_slice %1 {offsets = [0, 1], sizes = [6, 1], strides = [1, 1]} : vector<6x9xf32> to vector<6x1xf32>
    %9 = vector.extract_strided_slice %0 {offsets = [0, 1], sizes = [1, 2110], strides = [1, 1]} : vector<1x2176xf32> to vector<1x2110xf32>
    %10 = vector.broadcast %8 : vector<6x1xf32> to vector<6x2110xf32>
    %11 = vector.broadcast %9 : vector<1x2110xf32> to vector<6x2110xf32>
    %12 = arith.mulf %10, %11 : vector<6x2110xf32>
    %13 = arith.addf %7, %12 : vector<6x2110xf32>
    %14 = vector.extract_strided_slice %1 {offsets = [0, 2], sizes = [6, 1], strides = [1, 1]} : vector<6x9xf32> to vector<6x1xf32>
    %15 = vector.extract_strided_slice %0 {offsets = [0, 2], sizes = [1, 2110], strides = [1, 1]} : vector<1x2176xf32> to vector<1x2110xf32>
    %16 = vector.broadcast %14 : vector<6x1xf32> to vector<6x2110xf32>
    %17 = vector.broadcast %15 : vector<1x2110xf32> to vector<6x2110xf32>
    %18 = arith.mulf %16, %17 : vector<6x2110xf32>
    %19 = arith.addf %13, %18 : vector<6x2110xf32>
    %20 = vector.extract_strided_slice %1 {offsets = [0, 3], sizes = [6, 1], strides = [1, 1]} : vector<6x9xf32> to vector<6x1xf32>
    %21 = vector.extract_strided_slice %0 {offsets = [0, 32], sizes = [1, 2110], strides = [1, 1]} : vector<1x2176xf32> to vector<1x2110xf32>
    %22 = vector.broadcast %20 : vector<6x1xf32> to vector<6x2110xf32>
    %23 = vector.broadcast %21 : vector<1x2110xf32> to vector<6x2110xf32>
    %24 = arith.mulf %22, %23 : vector<6x2110xf32>
    %25 = arith.addf %19, %24 : vector<6x2110xf32>
    %26 = vector.extract_strided_slice %1 {offsets = [0, 4], sizes = [6, 1], strides = [1, 1]} : vector<6x9xf32> to vector<6x1xf32>
    %27 = vector.extract_strided_slice %0 {offsets = [0, 33], sizes = [1, 2110], strides = [1, 1]} : vector<1x2176xf32> to vector<1x2110xf32>
    %28 = vector.broadcast %26 : vector<6x1xf32> to vector<6x2110xf32>
    %29 = vector.broadcast %27 : vector<1x2110xf32> to vector<6x2110xf32>
    %30 = arith.mulf %28, %29 : vector<6x2110xf32>
    %31 = arith.addf %25, %30 : vector<6x2110xf32>
    %32 = vector.extract_strided_slice %1 {offsets = [0, 5], sizes = [6, 1], strides = [1, 1]} : vector<6x9xf32> to vector<6x1xf32>
    %33 = vector.extract_strided_slice %0 {offsets = [0, 34], sizes = [1, 2110], strides = [1, 1]} : vector<1x2176xf32> to vector<1x2110xf32>
    %34 = vector.broadcast %32 : vector<6x1xf32> to vector<6x2110xf32>
    %35 = vector.broadcast %33 : vector<1x2110xf32> to vector<6x2110xf32>
    %36 = arith.mulf %34, %35 : vector<6x2110xf32>
    %37 = arith.addf %31, %36 : vector<6x2110xf32>
    %38 = vector.extract_strided_slice %1 {offsets = [0, 6], sizes = [6, 1], strides = [1, 1]} : vector<6x9xf32> to vector<6x1xf32>
    %39 = vector.extract_strided_slice %0 {offsets = [0, 64], sizes = [1, 2110], strides = [1, 1]} : vector<1x2176xf32> to vector<1x2110xf32>
    %40 = vector.broadcast %38 : vector<6x1xf32> to vector<6x2110xf32>
    %41 = vector.broadcast %39 : vector<1x2110xf32> to vector<6x2110xf32>
    %42 = arith.mulf %40, %41 : vector<6x2110xf32>
    %43 = arith.addf %37, %42 : vector<6x2110xf32>
    %44 = vector.extract_strided_slice %1 {offsets = [0, 7], sizes = [6, 1], strides = [1, 1]} : vector<6x9xf32> to vector<6x1xf32>
    %45 = vector.extract_strided_slice %0 {offsets = [0, 65], sizes = [1, 2110], strides = [1, 1]} : vector<1x2176xf32> to vector<1x2110xf32>
    %46 = vector.broadcast %44 : vector<6x1xf32> to vector<6x2110xf32>
    %47 = vector.broadcast %45 : vector<1x2110xf32> to vector<6x2110xf32>
    %48 = arith.mulf %46, %47 : vector<6x2110xf32>
    %49 = arith.addf %43, %48 : vector<6x2110xf32>
    %50 = vector.extract_strided_slice %1 {offsets = [0, 8], sizes = [6, 1], strides = [1, 1]} : vector<6x9xf32> to vector<6x1xf32>
    %51 = vector.extract_strided_slice %0 {offsets = [0, 66], sizes = [1, 2110], strides = [1, 1]} : vector<1x2176xf32> to vector<1x2110xf32>
    %52 = vector.broadcast %50 : vector<6x1xf32> to vector<6x2110xf32>
    %53 = vector.broadcast %51 : vector<1x2110xf32> to vector<6x2110xf32>
    %54 = arith.mulf %52, %53 : vector<6x2110xf32>
    %55 = arith.addf %49, %54 : vector<6x2110xf32>
    %56 = vector.broadcast %2 : vector<6x1xf32> to vector<6x2110xf32>
    %57 = arith.addf %55, %56 : vector<6x2110xf32>
    %cst = arith.constant 0.000000e+00 : f32
    %58 = vector.broadcast %cst : f32 to vector<6x2110xf32>
    %59 = arith.maximumf %57, %58 : vector<6x2110xf32>
    %60 = vector.extract_strided_slice %59 {offsets = [0, 0], sizes = [6, 2077], strides = [1, 1]} : vector<6x2110xf32> to vector<6x2077xf32>
    %61 = vector.extract_strided_slice %59 {offsets = [0, 1], sizes = [6, 2077], strides = [1, 1]} : vector<6x2110xf32> to vector<6x2077xf32>
    %62 = arith.maximumf %60, %61 : vector<6x2077xf32>
    %63 = vector.extract_strided_slice %59 {offsets = [0, 32], sizes = [6, 2077], strides = [1, 1]} : vector<6x2110xf32> to vector<6x2077xf32>
    %64 = vector.extract_strided_slice %59 {offsets = [0, 33], sizes = [6, 2077], strides = [1, 1]} : vector<6x2110xf32> to vector<6x2077xf32>
    %65 = arith.maximumf %63, %64 : vector<6x2077xf32>
    %66 = arith.maximumf %62, %65 : vector<6x2077xf32>
    %67 = vector.extract_strided_slice %66 {offsets = [0, 0], sizes = [6, 1945], strides = [1, 1]} : vector<6x2077xf32> to vector<6x1945xf32>
    %c0_4 = arith.constant 0 : index
    %c0_5 = arith.constant 0 : index
    %68 = vector.load %arg8[%c0_4, %c0_5] : memref<54x1945xf32, #tpu.memory_space<vmem>>, vector<6x1945xf32>
    tpu.vector_store %arg8[%c0_4, %c0_5], %67 {strides = array<i32>} : memref<54x1945xf32, #tpu.memory_space<vmem>>, vector<6x1945xf32>,
    %69 = vector.extract_strided_slice %66 {offsets = [0, 2], sizes = [6, 1945], strides = [1, 1]} : vector<6x2077xf32> to vector<6x1945xf32>
    %c6 = arith.constant 6 : index
    %c0_6 = arith.constant 0 : index
    %70 = vector.load %arg8[%c6, %c0_6] : memref<54x1945xf32, #tpu.memory_space<vmem>>, vector<6x1945xf32>
    tpu.vector_store %arg8[%c6, %c0_6], %69 {strides = array<i32>} : memref<54x1945xf32, #tpu.memory_space<vmem>>, vector<6x1945xf32>,
    %71 = vector.extract_strided_slice %66 {offsets = [0, 4], sizes = [6, 1945], strides = [1, 1]} : vector<6x2077xf32> to vector<6x1945xf32>
    %c12 = arith.constant 12 : index
    %c0_7 = arith.constant 0 : index
    %72 = vector.load %arg8[%c12, %c0_7] : memref<54x1945xf32, #tpu.memory_space<vmem>>, vector<6x1945xf32>
    tpu.vector_store %arg8[%c12, %c0_7], %71 {strides = array<i32>} : memref<54x1945xf32, #tpu.memory_space<vmem>>, vector<6x1945xf32>,
    %73 = vector.extract_strided_slice %66 {offsets = [0, 64], sizes = [6, 1945], strides = [1, 1]} : vector<6x2077xf32> to vector<6x1945xf32>
    %c18 = arith.constant 18 : index
    %c0_8 = arith.constant 0 : index
    %74 = vector.load %arg8[%c18, %c0_8] : memref<54x1945xf32, #tpu.memory_space<vmem>>, vector<6x1945xf32>
    tpu.vector_store %arg8[%c18, %c0_8], %73 {strides = array<i32>} : memref<54x1945xf32, #tpu.memory_space<vmem>>, vector<6x1945xf32>,
    %75 = vector.extract_strided_slice %66 {offsets = [0, 66], sizes = [6, 1945], strides = [1, 1]} : vector<6x2077xf32> to vector<6x1945xf32>
    %c24 = arith.constant 24 : index
    %c0_9 = arith.constant 0 : index
    %76 = vector.load %arg8[%c24, %c0_9] : memref<54x1945xf32, #tpu.memory_space<vmem>>, vector<6x1945xf32>
    tpu.vector_store %arg8[%c24, %c0_9], %75 {strides = array<i32>} : memref<54x1945xf32, #tpu.memory_space<vmem>>, vector<6x1945xf32>,
    %77 = vector.extract_strided_slice %66 {offsets = [0, 68], sizes = [6, 1945], strides = [1, 1]} : vector<6x2077xf32> to vector<6x1945xf32>
    %c30 = arith.constant 30 : index
    %c0_10 = arith.constant 0 : index
    %78 = vector.load %arg8[%c30, %c0_10] : memref<54x1945xf32, #tpu.memory_space<vmem>>, vector<6x1945xf32>
    tpu.vector_store %arg8[%c30, %c0_10], %77 {strides = array<i32>} : memref<54x1945xf32, #tpu.memory_space<vmem>>, vector<6x1945xf32>,
    %79 = vector.extract_strided_slice %66 {offsets = [0, 128], sizes = [6, 1945], strides = [1, 1]} : vector<6x2077xf32> to vector<6x1945xf32>
    %c36 = arith.constant 36 : index
    %c0_11 = arith.constant 0 : index
    %80 = vector.load %arg8[%c36, %c0_11] : memref<54x1945xf32, #tpu.memory_space<vmem>>, vector<6x1945xf32>
    tpu.vector_store %arg8[%c36, %c0_11], %79 {strides = array<i32>} : memref<54x1945xf32, #tpu.memory_space<vmem>>, vector<6x1945xf32>,
    %81 = vector.extract_strided_slice %66 {offsets = [0, 130], sizes = [6, 1945], strides = [1, 1]} : vector<6x2077xf32> to vector<6x1945xf32>
    %c42 = arith.constant 42 : index
    %c0_12 = arith.constant 0 : index
    %82 = vector.load %arg8[%c42, %c0_12] : memref<54x1945xf32, #tpu.memory_space<vmem>>, vector<6x1945xf32>
    tpu.vector_store %arg8[%c42, %c0_12], %81 {strides = array<i32>} : memref<54x1945xf32, #tpu.memory_space<vmem>>, vector<6x1945xf32>,
    %83 = vector.extract_strided_slice %66 {offsets = [0, 132], sizes = [6, 1945], strides = [1, 1]} : vector<6x2077xf32> to vector<6x1945xf32>
    %c48 = arith.constant 48 : index
    %c0_13 = arith.constant 0 : index
    %84 = vector.load %arg8[%c48, %c0_13] : memref<54x1945xf32, #tpu.memory_space<vmem>>, vector<6x1945xf32>
    tpu.vector_store %arg8[%c48, %c0_13], %83 {strides = array<i32>} : memref<54x1945xf32, #tpu.memory_space<vmem>>, vector<6x1945xf32>,
    %c0_14 = arith.constant 0 : index
    %c0_15 = arith.constant 0 : index
    %85 = vector.load %arg2[%c0_14, %c0_15] : memref<16x55xf32, #tpu.memory_space<vmem>>, vector<16x54xf32>
    %c0_16 = arith.constant 0 : index
    %c54 = arith.constant 54 : index
    %86 = vector.load %arg2[%c0_16, %c54] : memref<16x55xf32, #tpu.memory_space<vmem>>, vector<16x1xf32>
    %c0_17 = arith.constant 0 : index
    %c0_18 = arith.constant 0 : index
    %87 = vector.load %arg8[%c0_17, %c0_18] : memref<54x1945xf32, #tpu.memory_space<vmem>>, vector<54x1945xf32>
    %cst_19 = arith.constant dense<0.000000e+00> : vector<16x1945xf32>
    %88 = tpu.matmul %85, %87, %cst_19 {dimension_numbers = #tpu.dot_dimension_numbers<[1], [0], [0], [1], [0, 0, 1, 1], [], []>} : vector<16x54xf32>, vector<54x1945xf32>, vector<16x1945xf32> -> vector<16x1945xf32>
    %89 = vector.broadcast %86 : vector<16x1xf32> to vector<16x1945xf32>
    %90 = arith.addf %88, %89 : vector<16x1945xf32>
    %cst_20 = arith.constant 0.000000e+00 : f32
    %91 = vector.broadcast %cst_20 : f32 to vector<16x1945xf32>
    %92 = arith.maximumf %90, %91 : vector<16x1945xf32>
    %93 = vector.extract_strided_slice %92 {offsets = [0, 0], sizes = [16, 1879], strides = [1, 1]} : vector<16x1945xf32> to vector<16x1879xf32>
    %94 = vector.extract_strided_slice %92 {offsets = [0, 2], sizes = [16, 1879], strides = [1, 1]} : vector<16x1945xf32> to vector<16x1879xf32>
    %95 = arith.maximumf %93, %94 : vector<16x1879xf32>
    %96 = vector.extract_strided_slice %92 {offsets = [0, 64], sizes = [16, 1879], strides = [1, 1]} : vector<16x1945xf32> to vector<16x1879xf32>
    %97 = vector.extract_strided_slice %92 {offsets = [0, 66], sizes = [16, 1879], strides = [1, 1]} : vector<16x1945xf32> to vector<16x1879xf32>
    %98 = arith.maximumf %96, %97 : vector<16x1879xf32>
    %99 = arith.maximumf %95, %98 : vector<16x1879xf32>
    %c0_21 = arith.constant 0 : index
    %c0_22 = arith.constant 0 : index
    %100 = vector.load %arg3[%c0_21, %c0_22] : memref<784x576xf32, #tpu.memory_space<vmem>>, vector<768x576xf32>
    %c768 = arith.constant 768 : index
    %c0_23 = arith.constant 0 : index
    %101 = vector.load %arg3[%c768, %c0_23] : memref<784x576xf32, #tpu.memory_space<vmem>>, vector<16x576xf32>
    %102 = vector.extract_strided_slice %99 {offsets = [0, 0], sizes = [16, 768], strides = [1, 1]} : vector<16x1879xf32> to vector<16x768xf32>
    %cst_24 = arith.constant dense<0.000000e+00> : vector<16x576xf32>
    %103 = tpu.matmul %102, %100, %cst_24 {dimension_numbers = #tpu.dot_dimension_numbers<[1], [0], [0], [1], [0, 0, 1, 1], [], []>} : vector<16x768xf32>, vector<768x576xf32>, vector<16x576xf32> -> vector<16x576xf32>
    %104 = arith.mulf %103, %101 : vector<16x576xf32>
    %cst_25 = arith.constant dense<0.000000e+00> : vector<576xf32>
    %105 = vector.multi_reduction <add>, %104, %cst_25 [0] : vector<16x576xf32> to vector<576xf32>
    %106 = vector.shape_cast %105 : vector<576xf32> to vector<1x576xf32>
    %c0_26 = arith.constant 0 : index
    %c0_27 = arith.constant 0 : index
    %107 = vector.load %arg9[%c0_26, %c0_27] : memref<2x576xf32, #tpu.memory_space<vmem>>, vector<1x576xf32>
    tpu.vector_store %arg9[%c0_26, %c0_27], %106 {strides = array<i32>} : memref<2x576xf32, #tpu.memory_space<vmem>>, vector<1x576xf32>,
    %108 = vector.extract_strided_slice %99 {offsets = [0, 1024], sizes = [16, 768], strides = [1, 1]} : vector<16x1879xf32> to vector<16x768xf32>
    %cst_28 = arith.constant dense<0.000000e+00> : vector<16x576xf32>
    %109 = tpu.matmul %108, %100, %cst_28 {dimension_numbers = #tpu.dot_dimension_numbers<[1], [0], [0], [1], [0, 0, 1, 1], [], []>} : vector<16x768xf32>, vector<768x576xf32>, vector<16x576xf32> -> vector<16x576xf32>
    %110 = arith.mulf %109, %101 : vector<16x576xf32>
    %cst_29 = arith.constant dense<0.000000e+00> : vector<576xf32>
    %111 = vector.multi_reduction <add>, %110, %cst_29 [0] : vector<16x576xf32> to vector<576xf32>
    %112 = vector.shape_cast %111 : vector<576xf32> to vector<1x576xf32>
    %c1 = arith.constant 1 : index
    %c0_30 = arith.constant 0 : index
    %113 = vector.load %arg9[%c1, %c0_30] : memref<2x576xf32, #tpu.memory_space<vmem>>, vector<1x576xf32>
    tpu.vector_store %arg9[%c1, %c0_30], %112 {strides = array<i32>} : memref<2x576xf32, #tpu.memory_space<vmem>>, vector<1x576xf32>,
    %c0_31 = arith.constant 0 : index
    %c0_32 = arith.constant 0 : index
    %114 = vector.load %arg9[%c0_31, %c0_32] : memref<2x576xf32, #tpu.memory_space<vmem>>, vector<2x576xf32>
    %c0_33 = arith.constant 0 : index
    %c0_34 = arith.constant 0 : index
    %115 = vector.load %arg4[%c0_33, %c0_34] : memref<577x120xf32, #tpu.memory_space<vmem>>, vector<576x120xf32>
    %cst_35 = arith.constant dense<0.000000e+00> : vector<2x120xf32>
    %116 = tpu.matmul %114, %115, %cst_35 {dimension_numbers = #tpu.dot_dimension_numbers<[1], [0], [0], [1], [0, 0, 1, 1], [], []>} : vector<2x576xf32>, vector<576x120xf32>, vector<2x120xf32> -> vector<2x120xf32>
    %c576 = arith.constant 576 : index
    %c0_36 = arith.constant 0 : index
    %117 = vector.load %arg4[%c576, %c0_36] : memref<577x120xf32, #tpu.memory_space<vmem>>, vector<1x120xf32>
    %118 = vector.broadcast %117 : vector<1x120xf32> to vector<2x120xf32>
    %119 = arith.addf %116, %118 : vector<2x120xf32>
    %cst_37 = arith.constant 0.000000e+00 : f32
    %120 = vector.broadcast %cst_37 : f32 to vector<2x120xf32>
    %121 = arith.maximumf %119, %120 : vector<2x120xf32>
    %c0_38 = arith.constant 0 : index
    %c0_39 = arith.constant 0 : index
    %122 = vector.load %arg5[%c0_38, %c0_39] : memref<121x84xf32, #tpu.memory_space<vmem>>, vector<120x84xf32>
    %cst_40 = arith.constant dense<0.000000e+00> : vector<2x84xf32>
    %123 = tpu.matmul %121, %122, %cst_40 {dimension_numbers = #tpu.dot_dimension_numbers<[1], [0], [0], [1], [0, 0, 1, 1], [], []>} : vector<2x120xf32>, vector<120x84xf32>, vector<2x84xf32> -> vector<2x84xf32>
    %c120 = arith.constant 120 : index
    %c0_41 = arith.constant 0 : index
    %124 = vector.load %arg5[%c120, %c0_41] : memref<121x84xf32, #tpu.memory_space<vmem>>, vector<1x84xf32>
    %125 = vector.broadcast %124 : vector<1x84xf32> to vector<2x84xf32>
    %126 = arith.addf %123, %125 : vector<2x84xf32>
    %cst_42 = arith.constant 0.000000e+00 : f32
    %127 = vector.broadcast %cst_42 : f32 to vector<2x84xf32>
    %128 = arith.maximumf %126, %127 : vector<2x84xf32>
    %c0_43 = arith.constant 0 : index
    %c0_44 = arith.constant 0 : index
    %129 = vector.load %arg6[%c0_43, %c0_44] : memref<85x10xf32, #tpu.memory_space<vmem>>, vector<84x10xf32>
    %cst_45 = arith.constant dense<0.000000e+00> : vector<2x10xf32>
    %130 = tpu.matmul %128, %129, %cst_45 {dimension_numbers = #tpu.dot_dimension_numbers<[1], [0], [0], [1], [0, 0, 1, 1], [], []>} : vector<2x84xf32>, vector<84x10xf32>, vector<2x10xf32> -> vector<2x10xf32>
    %c84 = arith.constant 84 : index
    %c0_46 = arith.constant 0 : index
    %131 = vector.load %arg6[%c84, %c0_46] : memref<85x10xf32, #tpu.memory_space<vmem>>, vector<1x10xf32>
    %132 = vector.broadcast %131 : vector<1x10xf32> to vector<2x10xf32>
    %133 = arith.addf %130, %132 : vector<2x10xf32>
    %c0_47 = arith.constant 0 : index
    %c0_48 = arith.constant 0 : index
    %134 = vector.load %arg7[%c0_47, %c0_48] : memref<2x10xf32, #tpu.memory_space<vmem>>, vector<2x10xf32>
    tpu.vector_store %arg7[%c0_47, %c0_48], %133 {strides = array<i32>} : memref<2x10xf32, #tpu.memory_space<vmem>>, vector<2x10xf32>,
    return
  }
}

</mosaic_0001>

<llo_original>
// kernel: net_forward.1
$region0: #{net_forward.1}
  #allocation0 [shape = 'u32[]', space=smem, size = 0x4, offset = 0x4, fixed_abs, tag = 'smem constant byte address 0x4 - core index']
  #allocation1 [shape = 'u32[144,128]{1,0:T(1,128)}', space=vmem, size = 0x12000, scoped, tag = 'internal scratch']
  #allocation2 [shape = 'f32[54,1945]{1,0:T(8,128)}', space=vmem, size = 0x70000, scoped, tag = 'scratch operand']
  #allocation3 [shape = 'f32[2,576]{1,0:T(2,128)}', space=vmem, size = 0x1400, scoped, tag = 'scratch operand']
  %s0 = inlined_call_operand.vmem [shape: f32[1,2176], index: 0, kind: input, shape index: {}]
  %s1 = inlined_call_operand.hbm [shape: f32[6,10], index: 1, kind: input, shape index: {}]
  %s2 = inlined_call_operand.hbm [shape: f32[16,55], index: 2, kind: input, shape index: {}]
  %s3 = inlined_call_operand.hbm [shape: f32[784,576], index: 3, kind: input, shape index: {}]
  %s4 = inlined_call_operand.hbm [shape: f32[577,120], index: 4, kind: input, shape index: {}]
  %s5 = inlined_call_operand.vmem [shape: f32[121,84], index: 5, kind: input, shape index: {}]
  %s6 = inlined_call_operand.vmem [shape: f32[85,10], index: 6, kind: input, shape index: {}]
  %s7 = inlined_call_operand.hbm [shape: f32[2,10], index: 7, kind: output, shape index: {}]
  %s8 = sld [smem:[#allocation0]]
  $region54: #{net_forward.1} parent=0
    _
  %s10 = ssub.s32 1, %s8
  %s11 = scalar_select 0, %s10, %s8
  $region1: #{net_forward.1} parent=0
    #allocation4 [shape = 'u8[4096]{0}', space=vmem, size = 0x1000, scoped, tag = 'input window, operand 1, single buffered']
    #allocation5 [shape = 's32[1]{0}', space=sflag, size = 0x4, scoped, tag = 'scoped memory for net_forward.1']
    #allocation6 [shape = 's32[1]{0}', space=sflag, size = 0x4, scoped, tag = 'scoped memory for net_forward.1']
    #allocation7 [shape = 'u8[8192]{0}', space=vmem, size = 0x2000, scoped, tag = 'input window, operand 2, single buffered']
    #allocation8 [shape = 's32[1]{0}', space=sflag, size = 0x4, scoped, tag = 'scoped memory for net_forward.1']
    #allocation9 [shape = 'u8[2007040]{0}', space=vmem, size = 0x1ea000, scoped, tag = 'input window, operand 3, single buffered']
    #allocation10 [shape = 'u8[299008]{0}', space=vmem, size = 0x49000, scoped, tag = 'input window, operand 4, single buffered']
    #allocation11 [shape = 's32[1]{0}', space=sflag, size = 0x4, scoped, tag = 'scoped memory for net_forward.1']
    #allocation12 [shape = 'u8[1024]{0}', space=vmem, size = 0x400, scoped, tag = 'output window, operand 0, single buffered']
    %12 = vsyncpa [#allocation5], 0
    %13 = vsyncpa [#allocation8], 0
    %14 = vsyncpa [#allocation11], 0
    %15 = vsyncpa [#allocation6], 0
    // Predicated region
    $region2: #{net_forward.1} parent=1 // pred_check
      _
    $region3: #{net_forward.1} parent=1 // pred_check_branch
      %17 = sbr.rel (0) target = $region5
    $region4: #{net_forward.1} parent=1 // pred_region
      _
    $region5: #{net_forward.1} parent=1 // pred_fallthru
      _
    // Predicated region
    $region6: #{net_forward.1} parent=1 // pred_check
      _
    $region7: #{net_forward.1} parent=1 // pred_check_branch
      %19 = sbr.rel (0) target = $region9
    $region8: #{net_forward.1} parent=1 // pred_region
      %s21 = ssub.s32 128, 128
      %22 = vsyncadd [#allocation5], %s21
      %s24 = sshll.u32 [#allocation4], 4
      %s25 = int_to_ptr.vmem [resolvable:$true] %s24
      %27 = dma.hbm_to_vmem [thread:$0]  %s1, 128, %s25, [#allocation5]
    $region9: #{net_forward.1} parent=1 // pred_fallthru
      _
    // Predicated region
    $region10: #{net_forward.1} parent=1 // pred_check
      _
    $region11: #{net_forward.1} parent=1 // pred_check_branch
      %29 = sbr.rel (0) target = $region13
    $region12: #{net_forward.1} parent=1 // pred_region
      %s31 = ssub.s32 256, 256
      %32 = vsyncadd [#allocation8], %s31
      %s33 = sshll.u32 [#allocation7], 4
      %s34 = int_to_ptr.vmem [resolvable:$true] %s33
      %39 = dma.hbm_to_vmem [thread:$0]  %s2, 256, %s34, [#allocation8], 128, 128, 8
    $region13: #{net_forward.1} parent=1 // pred_fallthru
      _
    // Predicated region
    $region14: #{net_forward.1} parent=1 // pred_check
      _
    $region15: #{net_forward.1} parent=1 // pred_check_branch
      %41 = sbr.rel (0) target = $region17
    $region16: #{net_forward.1} parent=1 // pred_region
      %s43 = ssub.s32 62720, 62720
      %44 = vsyncadd [#allocation8], %s43
      %s45 = sshll.u32 [#allocation9], 4
      %s46 = int_to_ptr.vmem [resolvable:$true] %s45
      %51 = dma.hbm_to_vmem [thread:$0]  %s3, 62720, %s46, [#allocation8], 640, 640, 40
    $region17: #{net_forward.1} parent=1 // pred_fallthru
      _
    // Predicated region
    $region18: #{net_forward.1} parent=1 // pred_check
      _
    $region19: #{net_forward.1} parent=1 // pred_check_branch
      %53 = sbr.rel (0) target = $region21
    $region20: #{net_forward.1} parent=1 // pred_region
      %s55 = ssub.s32 9344, 9344
      %56 = vsyncadd [#allocation11], %s55
      %s57 = sshll.u32 [#allocation10], 4
      %s58 = int_to_ptr.vmem [resolvable:$true] %s57
      %63 = dma.hbm_to_vmem [thread:$0]  %s4, 9344, %s58, [#allocation11], 128, 128, 8
    $region21: #{net_forward.1} parent=1 // pred_fallthru
      _
    // Predicated region
    $region22: #{net_forward.1} parent=1 // pred_check
      _
    $region23: #{net_forward.1} parent=1 // pred_check_branch
      %65 = sbr.rel (0) target = $region25
    $region24: #{net_forward.1} parent=1 // pred_region
      _
    $region25: #{net_forward.1} parent=1 // pred_fallthru
      _
    // Predicated region
    $region26: #{net_forward.1} parent=1 // pred_check
      _
    $region27: #{net_forward.1} parent=1 // pred_check_branch
      %67 = sbr.rel (0) target = $region29
    $region28: #{net_forward.1} parent=1 // pred_region
      _
    $region29: #{net_forward.1} parent=1 // pred_fallthru
      _
    // Predicated region
    $region30: #{net_forward.1} parent=1 // pred_check
      _
    $region31: #{net_forward.1} parent=1 // pred_check_branch
      %69 = sbr.rel (0) target = $region33
    $region32: #{net_forward.1} parent=1 // pred_region
      %70 = dma.done [#allocation5], 128
    $region33: #{net_forward.1} parent=1 // pred_fallthru
      _
    // Predicated region
    $region34: #{net_forward.1} parent=1 // pred_check
      _
    $region35: #{net_forward.1} parent=1 // pred_check_branch
      %72 = sbr.rel (0) target = $region37
    $region36: #{net_forward.1} parent=1 // pred_region
      %73 = dma.done [#allocation8], 256
    $region37: #{net_forward.1} parent=1 // pred_fallthru
      _
    // Predicated region
    $region38: #{net_forward.1} parent=1 // pred_check
      _
    $region39: #{net_forward.1} parent=1 // pred_check_branch
      %75 = sbr.rel (0) target = $region41
    $region40: #{net_forward.1} parent=1 // pred_region
      %76 = dma.done [#allocation8], 62720
    $region41: #{net_forward.1} parent=1 // pred_fallthru
      _
    // Predicated region
    $region42: #{net_forward.1} parent=1 // pred_check
      _
    $region43: #{net_forward.1} parent=1 // pred_check_branch
      %78 = sbr.rel (0) target = $region45
    $region44: #{net_forward.1} parent=1 // pred_region
      %79 = dma.done [#allocation11], 9344
    $region45: #{net_forward.1} parent=1 // pred_fallthru
      _
    %v80 = vld [vmem:[%s0] sm:$0xff]
    %v81 = vld [vmem:[%s0 + $0x8] sm:$0xff]
    %v82 = vld [vmem:[%s0 + $0x10] sm:$0x1]
    %v83 = vld [vmem:[#allocation4] sm:$0x3f]
    %85 = vset.pattern.permute.xlu0 0
    %86 = vperm.xlu0 %85, %v83
    %v87 = vpop.permute.xlu0 %86
    %v92 = vlaneseq
    %v93 = vshrl.u32 %v92, 7
    %v94 = vsub.s32 0, %v93
    %v95 = vrot.slane %v80, %v94
    %v96 = vlaneseq
    %v97 = vshrl.u32 %v96, 7
    %v98 = vsub.s32 1, %v97
    %v99 = vrot.slane %v80, %v98
    %v100 = vlaneseq
    %v101 = vshrl.u32 %v100, 7
    %v102 = vsub.s32 2, %v101
    %v103 = vrot.slane %v80, %v102
    %v104 = vlaneseq
    %v105 = vshrl.u32 %v104, 7
    %v106 = vsub.s32 3, %v105
    %v107 = vrot.slane %v80, %v106
    %v108 = vlaneseq
    %v109 = vshrl.u32 %v108, 7
    %v110 = vsub.s32 4, %v109
    %v111 = vrot.slane %v80, %v110
    %v112 = vlaneseq
    %v113 = vshrl.u32 %v112, 7
    %v114 = vsub.s32 5, %v113
    %v115 = vrot.slane %v80, %v114
    %v116 = vlaneseq
    %v117 = vshrl.u32 %v116, 7
    %v118 = vsub.s32 6, %v117
    %v119 = vrot.slane %v80, %v118
    %v120 = vlaneseq
    %v121 = vshrl.u32 %v120, 7
    %v122 = vsub.s32 7, %v121
    %v123 = vrot.slane %v80, %v122
    %v124 = vlaneseq
    %v125 = vshrl.u32 %v124, 7
    %v126 = vsub.s32 0, %v125
    %v127 = vrot.slane %v81, %v126
    %v128 = vlaneseq
    %v129 = vshrl.u32 %v128, 7
    %v130 = vsub.s32 1, %v129
    %v131 = vrot.slane %v81, %v130
    %v132 = vlaneseq
    %v133 = vshrl.u32 %v132, 7
    %v134 = vsub.s32 2, %v133
    %v135 = vrot.slane %v81, %v134
    %v136 = vlaneseq
    %v137 = vshrl.u32 %v136, 7
    %v138 = vsub.s32 3, %v137
    %v139 = vrot.slane %v81, %v138
    %v140 = vlaneseq
    %v141 = vshrl.u32 %v140, 7
    %v142 = vsub.s32 4, %v141
    %v143 = vrot.slane %v81, %v142
    %v144 = vlaneseq
    %v145 = vshrl.u32 %v144, 7
    %v146 = vsub.s32 5, %v145
    %v147 = vrot.slane %v81, %v146
    %v148 = vlaneseq
    %v149 = vshrl.u32 %v148, 7
    %v150 = vsub.s32 6, %v149
    %v151 = vrot.slane %v81, %v150
    %v152 = vlaneseq
    %v153 = vshrl.u32 %v152, 7
    %v154 = vsub.s32 7, %v153
    %v155 = vrot.slane %v81, %v154
    %v156 = vlaneseq
    %v157 = vshrl.u32 %v156, 7
    %v158 = vsub.s32 0, %v157
    %v159 = vrot.slane %v82, %v158
    %v177 = vmul.f32 %v87, %v95
    %v178 = vmul.f32 %v87, %v99
    %v179 = vmul.f32 %v87, %v103
    %v180 = vmul.f32 %v87, %v107
    %v181 = vmul.f32 %v87, %v111
    %v182 = vmul.f32 %v87, %v115
    %v183 = vmul.f32 %v87, %v119
    %v184 = vmul.f32 %v87, %v123
    %v185 = vmul.f32 %v87, %v127
    %v186 = vmul.f32 %v87, %v131
    %v187 = vmul.f32 %v87, %v135
    %v188 = vmul.f32 %v87, %v139
    %v189 = vmul.f32 %v87, %v143
    %v190 = vmul.f32 %v87, %v147
    %v191 = vmul.f32 %v87, %v151
    %v192 = vmul.f32 %v87, %v155
    %v193 = vmul.f32 %v87, %v159
    %194 = vset.pattern.permute.xlu0 1
    %195 = vperm.xlu0 %194, %v83
    %v196 = vpop.permute.xlu0 %195
    %v198 = vmul.f32 %v196, %v95
    %v199 = vmul.f32 %v196, %v99
    %v200 = vmul.f32 %v196, %v103
    %v201 = vmul.f32 %v196, %v107
    %v202 = vmul.f32 %v196, %v111
    %v203 = vmul.f32 %v196, %v115
    %v204 = vmul.f32 %v196, %v119
    %v205 = vmul.f32 %v196, %v123
    %v206 = vmul.f32 %v196, %v127
    %v207 = vmul.f32 %v196, %v131
    %v208 = vmul.f32 %v196, %v135
    %v209 = vmul.f32 %v196, %v139
    %v210 = vmul.f32 %v196, %v143
    %v211 = vmul.f32 %v196, %v147
    %v212 = vmul.f32 %v196, %v151
    %v213 = vmul.f32 %v196, %v155
    %v214 = vmul.f32 %v196, %v159
    %232 = vrot.lane.b32.xlu0 %v198, 127
    %v233 = vpop.permute.xlu0 %232
    %234 = vrot.lane.b32.xlu0 %v199, 127
    %v235 = vpop.permute.xlu0 %234
    %236 = vrot.lane.b32.xlu0 %v200, 127
    %v237 = vpop.permute.xlu0 %236
    %238 = vrot.lane.b32.xlu0 %v201, 127
    %v239 = vpop.permute.xlu0 %238
    %240 = vrot.lane.b32.xlu0 %v202, 127
    %v241 = vpop.permute.xlu0 %240
    %242 = vrot.lane.b32.xlu0 %v203, 127
    %v243 = vpop.permute.xlu0 %242
    %244 = vrot.lane.b32.xlu0 %v204, 127
    %v245 = vpop.permute.xlu0 %244
    %246 = vrot.lane.b32.xlu0 %v205, 127
    %v247 = vpop.permute.xlu0 %246
    %248 = vrot.lane.b32.xlu0 %v206, 127
    %v249 = vpop.permute.xlu0 %248
    %250 = vrot.lane.b32.xlu0 %v207, 127
    %v251 = vpop.permute.xlu0 %250
    %252 = vrot.lane.b32.xlu0 %v208, 127
    %v253 = vpop.permute.xlu0 %252
    %254 = vrot.lane.b32.xlu0 %v209, 127
    %v255 = vpop.permute.xlu0 %254
    %256 = vrot.lane.b32.xlu0 %v210, 127
    %v257 = vpop.permute.xlu0 %256
    %258 = vrot.lane.b32.xlu0 %v211, 127
    %v259 = vpop.permute.xlu0 %258
    %260 = vrot.lane.b32.xlu0 %v212, 127
    %v261 = vpop.permute.xlu0 %260
    %262 = vrot.lane.b32.xlu0 %v213, 127
    %v263 = vpop.permute.xlu0 %262
    %264 = vrot.lane.b32.xlu0 %v214, 127
    %v265 = vpop.permute.xlu0 %264
    %vm266 = vcmask 1039360
    %v267 = vsel %vm266, %v233, %v235
    %v268 = vsel %vm266, %v235, %v237
    %v269 = vsel %vm266, %v237, %v239
    %v270 = vsel %vm266, %v239, %v241
    %v271 = vsel %vm266, %v241, %v243
    %v272 = vsel %vm266, %v243, %v245
    %v273 = vsel %vm266, %v245, %v247
    %v274 = vsel %vm266, %v247, %v249
    %v275 = vsel %vm266, %v249, %v251
    %v276 = vsel %vm266, %v251, %v253
    %v277 = vsel %vm266, %v253, %v255
    %v278 = vsel %vm266, %v255, %v257
    %v279 = vsel %vm266, %v257, %v259
    %v280 = vsel %vm266, %v259, %v261
    %v281 = vsel %vm266, %v261, %v263
    %v282 = vsel %vm266, %v263, %v265
    %v300 = vadd.f32 %v177, %v267
    %v301 = vadd.f32 %v178, %v268
    %v302 = vadd.f32 %v179, %v269
    %v303 = vadd.f32 %v180, %v270
    %v304 = vadd.f32 %v181, %v271
    %v305 = vadd.f32 %v182, %v272
    %v306 = vadd.f32 %v183, %v273
    %v307 = vadd.f32 %v184, %v274
    %v308 = vadd.f32 %v185, %v275
    %v309 = vadd.f32 %v186, %v276
    %v310 = vadd.f32 %v187, %v277
    %v311 = vadd.f32 %v188, %v278
    %v312 = vadd.f32 %v189, %v279
    %v313 = vadd.f32 %v190, %v280
    %v314 = vadd.f32 %v191, %v281
    %v315 = vadd.f32 %v192, %v282
    %v316 = vadd.f32 %v193, %v265
    %317 = vset.pattern.permute.xlu0 2
    %318 = vperm.xlu0 %317, %v83
    %v319 = vpop.permute.xlu0 %318
    %v321 = vmul.f32 %v319, %v95
    %v322 = vmul.f32 %v319, %v99
    %v323 = vmul.f32 %v319, %v103
    %v324 = vmul.f32 %v319, %v107
    %v325 = vmul.f32 %v319, %v111
    %v326 = vmul.f32 %v319, %v115
    %v327 = vmul.f32 %v319, %v119
    %v328 = vmul.f32 %v319, %v123
    %v329 = vmul.f32 %v319, %v127
    %v330 = vmul.f32 %v319, %v131
    %v331 = vmul.f32 %v319, %v135
    %v332 = vmul.f32 %v319, %v139
    %v333 = vmul.f32 %v319, %v143
    %v334 = vmul.f32 %v319, %v147
    %v335 = vmul.f32 %v319, %v151
    %v336 = vmul.f32 %v319, %v155
    %v337 = vmul.f32 %v319, %v159
    %355 = vrot.lane.b32.xlu0 %v321, 126
    %v356 = vpop.permute.xlu0 %355
    %357 = vrot.lane.b32.xlu0 %v322, 126
    %v358 = vpop.permute.xlu0 %357
    %359 = vrot.lane.b32.xlu0 %v323, 126
    %v360 = vpop.permute.xlu0 %359
    %361 = vrot.lane.b32.xlu0 %v324, 126
    %v362 = vpop.permute.xlu0 %361
    %363 = vrot.lane.b32.xlu0 %v325, 126
    %v364 = vpop.permute.xlu0 %363
    %365 = vrot.lane.b32.xlu0 %v326, 126
    %v366 = vpop.permute.xlu0 %365
    %367 = vrot.lane.b32.xlu0 %v327, 126
    %v368 = vpop.permute.xlu0 %367
    %369 = vrot.lane.b32.xlu0 %v328, 126
    %v370 = vpop.permute.xlu0 %369
    %371 = vrot.lane.b32.xlu0 %v329, 126
    %v372 = vpop.permute.xlu0 %371
    %373 = vrot.lane.b32.xlu0 %v330, 126
    %v374 = vpop.permute.xlu0 %373
    %375 = vrot.lane.b32.xlu0 %v331, 126
    %v376 = vpop.permute.xlu0 %375
    %377 = vrot.lane.b32.xlu0 %v332, 126
    %v378 = vpop.permute.xlu0 %377
    %379 = vrot.lane.b32.xlu0 %v333, 126
    %v380 = vpop.permute.xlu0 %379
    %381 = vrot.lane.b32.xlu0 %v334, 126
    %v382 = vpop.permute.xlu0 %381
    %383 = vrot.lane.b32.xlu0 %v335, 126
    %v384 = vpop.permute.xlu0 %383
    %385 = vrot.lane.b32.xlu0 %v336, 126
    %v386 = vpop.permute.xlu0 %385
    %387 = vrot.lane.b32.xlu0 %v337, 126
    %v388 = vpop.permute.xlu0 %387
    %vm389 = vcmask 1031168
    %v390 = vsel %vm389, %v356, %v358
    %v391 = vsel %vm389, %v358, %v360
    %v392 = vsel %vm389, %v360, %v362
    %v393 = vsel %vm389, %v362, %v364
    %v394 = vsel %vm389, %v364, %v366
    %v395 = vsel %vm389, %v366, %v368
    %v396 = vsel %vm389, %v368, %v370
    %v397 = vsel %vm389, %v370, %v372
    %v398 = vsel %vm389, %v372, %v374
    %v399 = vsel %vm389, %v374, %v376
    %v400 = vsel %vm389, %v376, %v378
    %v401 = vsel %vm389, %v378, %v380
    %v402 = vsel %vm389, %v380, %v382
    %v403 = vsel %vm389, %v382, %v384
    %v404 = vsel %vm389, %v384, %v386
    %v405 = vsel %vm389, %v386, %v388
    %v423 = vadd.f32 %v300, %v390
    %v424 = vadd.f32 %v301, %v391
    %v425 = vadd.f32 %v302, %v392
    %v426 = vadd.f32 %v303, %v393
    %v427 = vadd.f32 %v304, %v394
    %v428 = vadd.f32 %v305, %v395
    %v429 = vadd.f32 %v306, %v396
    %v430 = vadd.f32 %v307, %v397
    %v431 = vadd.f32 %v308, %v398
    %v432 = vadd.f32 %v309, %v399
    %v433 = vadd.f32 %v310, %v400
    %v434 = vadd.f32 %v311, %v401
    %v435 = vadd.f32 %v312, %v402
    %v436 = vadd.f32 %v313, %v403
    %v437 = vadd.f32 %v314, %v404
    %v438 = vadd.f32 %v315, %v405
    %v439 = vadd.f32 %v316, %v388
    %440 = vset.pattern.permute.xlu0 3
    %441 = vperm.xlu0 %440, %v83
    %v442 = vpop.permute.xlu0 %441
    %v444 = vmul.f32 %v442, %v95
    %v445 = vmul.f32 %v442, %v99
    %v446 = vmul.f32 %v442, %v103
    %v447 = vmul.f32 %v442, %v107
    %v448 = vmul.f32 %v442, %v111
    %v449 = vmul.f32 %v442, %v115
    %v450 = vmul.f32 %v442, %v119
    %v451 = vmul.f32 %v442, %v123
    %v452 = vmul.f32 %v442, %v127
    %v453 = vmul.f32 %v442, %v131
    %v454 = vmul.f32 %v442, %v135
    %v455 = vmul.f32 %v442, %v139
    %v456 = vmul.f32 %v442, %v143
    %v457 = vmul.f32 %v442, %v147
    %v458 = vmul.f32 %v442, %v151
    %v459 = vmul.f32 %v442, %v155
    %v460 = vmul.f32 %v442, %v159
    %478 = vrot.lane.b32.xlu0 %v444, 96
    %v479 = vpop.permute.xlu0 %478
    %480 = vrot.lane.b32.xlu0 %v445, 96
    %v481 = vpop.permute.xlu0 %480
    %482 = vrot.lane.b32.xlu0 %v446, 96
    %v483 = vpop.permute.xlu0 %482
    %484 = vrot.lane.b32.xlu0 %v447, 96
    %v485 = vpop.permute.xlu0 %484
    %486 = vrot.lane.b32.xlu0 %v448, 96
    %v487 = vpop.permute.xlu0 %486
    %488 = vrot.lane.b32.xlu0 %v449, 96
    %v489 = vpop.permute.xlu0 %488
    %490 = vrot.lane.b32.xlu0 %v450, 96
    %v491 = vpop.permute.xlu0 %490
    %492 = vrot.lane.b32.xlu0 %v451, 96
    %v493 = vpop.permute.xlu0 %492
    %494 = vrot.lane.b32.xlu0 %v452, 96
    %v495 = vpop.permute.xlu0 %494
    %496 = vrot.lane.b32.xlu0 %v453, 96
    %v497 = vpop.permute.xlu0 %496
    %498 = vrot.lane.b32.xlu0 %v454, 96
    %v499 = vpop.permute.xlu0 %498
    %500 = vrot.lane.b32.xlu0 %v455, 96
    %v501 = vpop.permute.xlu0 %500
    %502 = vrot.lane.b32.xlu0 %v456, 96
    %v503 = vpop.permute.xlu0 %502
    %504 = vrot.lane.b32.xlu0 %v457, 96
    %v505 = vpop.permute.xlu0 %504
    %506 = vrot.lane.b32.xlu0 %v458, 96
    %v507 = vpop.permute.xlu0 %506
    %508 = vrot.lane.b32.xlu0 %v459, 96
    %v509 = vpop.permute.xlu0 %508
    %510 = vrot.lane.b32.xlu0 %v460, 96
    %v511 = vpop.permute.xlu0 %510
    %vm512 = vcmask 785408
    %v513 = vsel %vm512, %v479, %v481
    %v514 = vsel %vm512, %v481, %v483
    %v515 = vsel %vm512, %v483, %v485
    %v516 = vsel %vm512, %v485, %v487
    %v517 = vsel %vm512, %v487, %v489
    %v518 = vsel %vm512, %v489, %v491
    %v519 = vsel %vm512, %v491, %v493
    %v520 = vsel %vm512, %v493, %v495
    %v521 = vsel %vm512, %v495, %v497
    %v522 = vsel %vm512, %v497, %v499
    %v523 = vsel %vm512, %v499, %v501
    %v524 = vsel %vm512, %v501, %v503
    %v525 = vsel %vm512, %v503, %v505
    %v526 = vsel %vm512, %v505, %v507
    %v527 = vsel %vm512, %v507, %v509
    %v528 = vsel %vm512, %v509, %v511
    %v546 = vadd.f32 %v423, %v513
    %v547 = vadd.f32 %v424, %v514
    %v548 = vadd.f32 %v425, %v515
    %v549 = vadd.f32 %v426, %v516
    %v550 = vadd.f32 %v427, %v517
    %v551 = vadd.f32 %v428, %v518
    %v552 = vadd.f32 %v429, %v519
    %v553 = vadd.f32 %v430, %v520
    %v554 = vadd.f32 %v431, %v521
    %v555 = vadd.f32 %v432, %v522
    %v556 = vadd.f32 %v433, %v523
    %v557 = vadd.f32 %v434, %v524
    %v558 = vadd.f32 %v435, %v525
    %v559 = vadd.f32 %v436, %v526
    %v560 = vadd.f32 %v437, %v527
    %v561 = vadd.f32 %v438, %v528
    %v562 = vadd.f32 %v439, %v511
    %563 = vset.pattern.permute.xlu0 4
    %564 = vperm.xlu0 %563, %v83
    %v565 = vpop.permute.xlu0 %564
    %v567 = vmul.f32 %v565, %v95
    %v568 = vmul.f32 %v565, %v99
    %v569 = vmul.f32 %v565, %v103
    %v570 = vmul.f32 %v565, %v107
    %v571 = vmul.f32 %v565, %v111
    %v572 = vmul.f32 %v565, %v115
    %v573 = vmul.f32 %v565, %v119
    %v574 = vmul.f32 %v565, %v123
    %v575 = vmul.f32 %v565, %v127
    %v576 = vmul.f32 %v565, %v131
    %v577 = vmul.f32 %v565, %v135
    %v578 = vmul.f32 %v565, %v139
    %v579 = vmul.f32 %v565, %v143
    %v580 = vmul.f32 %v565, %v147
    %v581 = vmul.f32 %v565, %v151
    %v582 = vmul.f32 %v565, %v155
    %v583 = vmul.f32 %v565, %v159
    %601 = vrot.lane.b32.xlu0 %v567, 95
    %v602 = vpop.permute.xlu0 %601
    %603 = vrot.lane.b32.xlu0 %v568, 95
    %v604 = vpop.permute.xlu0 %603
    %605 = vrot.lane.b32.xlu0 %v569, 95
    %v606 = vpop.permute.xlu0 %605
    %607 = vrot.lane.b32.xlu0 %v570, 95
    %v608 = vpop.permute.xlu0 %607
    %609 = vrot.lane.b32.xlu0 %v571, 95
    %v610 = vpop.permute.xlu0 %609
    %611 = vrot.lane.b32.xlu0 %v572, 95
    %v612 = vpop.permute.xlu0 %611
    %613 = vrot.lane.b32.xlu0 %v573, 95
    %v614 = vpop.permute.xlu0 %613
    %615 = vrot.lane.b32.xlu0 %v574, 95
    %v616 = vpop.permute.xlu0 %615
    %617 = vrot.lane.b32.xlu0 %v575, 95
    %v618 = vpop.permute.xlu0 %617
    %619 = vrot.lane.b32.xlu0 %v576, 95
    %v620 = vpop.permute.xlu0 %619
    %621 = vrot.lane.b32.xlu0 %v577, 95
    %v622 = vpop.permute.xlu0 %621
    %623 = vrot.lane.b32.xlu0 %v578, 95
    %v624 = vpop.permute.xlu0 %623
    %625 = vrot.lane.b32.xlu0 %v579, 95
    %v626 = vpop.permute.xlu0 %625
    %627 = vrot.lane.b32.xlu0 %v580, 95
    %v628 = vpop.permute.xlu0 %627
    %629 = vrot.lane.b32.xlu0 %v581, 95
    %v630 = vpop.permute.xlu0 %629
    %631 = vrot.lane.b32.xlu0 %v582, 95
    %v632 = vpop.permute.xlu0 %631
    %633 = vrot.lane.b32.xlu0 %v583, 95
    %v634 = vpop.permute.xlu0 %633
    %vm635 = vcmask 777216
    %v636 = vsel %vm635, %v602, %v604
    %v637 = vsel %vm635, %v604, %v606
    %v638 = vsel %vm635, %v606, %v608
    %v639 = vsel %vm635, %v608, %v610
    %v640 = vsel %vm635, %v610, %v612
    %v641 = vsel %vm635, %v612, %v614
    %v642 = vsel %vm635, %v614, %v616
    %v643 = vsel %vm635, %v616, %v618
    %v644 = vsel %vm635, %v618, %v620
    %v645 = vsel %vm635, %v620, %v622
    %v646 = vsel %vm635, %v622, %v624
    %v647 = vsel %vm635, %v624, %v626
    %v648 = vsel %vm635, %v626, %v628
    %v649 = vsel %vm635, %v628, %v630
    %v650 = vsel %vm635, %v630, %v632
    %v651 = vsel %vm635, %v632, %v634
    %v669 = vadd.f32 %v546, %v636
    %v670 = vadd.f32 %v547, %v637
    %v671 = vadd.f32 %v548, %v638
    %v672 = vadd.f32 %v549, %v639
    %v673 = vadd.f32 %v550, %v640
    %v674 = vadd.f32 %v551, %v641
    %v675 = vadd.f32 %v552, %v642
    %v676 = vadd.f32 %v553, %v643
    %v677 = vadd.f32 %v554, %v644
    %v678 = vadd.f32 %v555, %v645
    %v679 = vadd.f32 %v556, %v646
    %v680 = vadd.f32 %v557, %v647
    %v681 = vadd.f32 %v558, %v648
    %v682 = vadd.f32 %v559, %v649
    %v683 = vadd.f32 %v560, %v650
    %v684 = vadd.f32 %v561, %v651
    %v685 = vadd.f32 %v562, %v634
    %686 = vset.pattern.permute.xlu0 5
    %687 = vperm.xlu0 %686, %v83
    %v688 = vpop.permute.xlu0 %687
    %v690 = vmul.f32 %v688, %v95
    %v691 = vmul.f32 %v688, %v99
    %v692 = vmul.f32 %v688, %v103
    %v693 = vmul.f32 %v688, %v107
    %v694 = vmul.f32 %v688, %v111
    %v695 = vmul.f32 %v688, %v115
    %v696 = vmul.f32 %v688, %v119
    %v697 = vmul.f32 %v688, %v123
    %v698 = vmul.f32 %v688, %v127
    %v699 = vmul.f32 %v688, %v131
    %v700 = vmul.f32 %v688, %v135
    %v701 = vmul.f32 %v688, %v139
    %v702 = vmul.f32 %v688, %v143
    %v703 = vmul.f32 %v688, %v147
    %v704 = vmul.f32 %v688, %v151
    %v705 = vmul.f32 %v688, %v155
    %v706 = vmul.f32 %v688, %v159
    %724 = vrot.lane.b32.xlu0 %v690, 94
    %v725 = vpop.permute.xlu0 %724
    %726 = vrot.lane.b32.xlu0 %v691, 94
    %v727 = vpop.permute.xlu0 %726
    %728 = vrot.lane.b32.xlu0 %v692, 94
    %v729 = vpop.permute.xlu0 %728
    %730 = vrot.lane.b32.xlu0 %v693, 94
    %v731 = vpop.permute.xlu0 %730
    %732 = vrot.lane.b32.xlu0 %v694, 94
    %v733 = vpop.permute.xlu0 %732
    %734 = vrot.lane.b32.xlu0 %v695, 94
    %v735 = vpop.permute.xlu0 %734
    %736 = vrot.lane.b32.xlu0 %v696, 94
    %v737 = vpop.permute.xlu0 %736
    %738 = vrot.lane.b32.xlu0 %v697, 94
    %v739 = vpop.permute.xlu0 %738
    %740 = vrot.lane.b32.xlu0 %v698, 94
    %v741 = vpop.permute.xlu0 %740
    %742 = vrot.lane.b32.xlu0 %v699, 94
    %v743 = vpop.permute.xlu0 %742
    %744 = vrot.lane.b32.xlu0 %v700, 94
    %v745 = vpop.permute.xlu0 %744
    %746 = vrot.lane.b32.xlu0 %v701, 94
    %v747 = vpop.permute.xlu0 %746
    %748 = vrot.lane.b32.xlu0 %v702, 94
    %v749 = vpop.permute.xlu0 %748
    %750 = vrot.lane.b32.xlu0 %v703, 94
    %v751 = vpop.permute.xlu0 %750
    %752 = vrot.lane.b32.xlu0 %v704, 94
    %v753 = vpop.permute.xlu0 %752
    %754 = vrot.lane.b32.xlu0 %v705, 94
    %v755 = vpop.permute.xlu0 %754
    %756 = vrot.lane.b32.xlu0 %v706, 94
    %v757 = vpop.permute.xlu0 %756
    %vm758 = vcmask 769024
    %v759 = vsel %vm758, %v725, %v727
    %v760 = vsel %vm758, %v727, %v729
    %v761 = vsel %vm758, %v729, %v731
    %v762 = vsel %vm758, %v731, %v733
    %v763 = vsel %vm758, %v733, %v735
    %v764 = vsel %vm758, %v735, %v737
    %v765 = vsel %vm758, %v737, %v739
    %v766 = vsel %vm758, %v739, %v741
    %v767 = vsel %vm758, %v741, %v743
    %v768 = vsel %vm758, %v743, %v745
    %v769 = vsel %vm758, %v745, %v747
    %v770 = vsel %vm758, %v747, %v749
    %v771 = vsel %vm758, %v749, %v751
    %v772 = vsel %vm758, %v751, %v753
    %v773 = vsel %vm758, %v753, %v755
    %v774 = vsel %vm758, %v755, %v757
    %v792 = vadd.f32 %v669, %v759
    %v793 = vadd.f32 %v670, %v760
    %v794 = vadd.f32 %v671, %v761
    %v795 = vadd.f32 %v672, %v762
    %v796 = vadd.f32 %v673, %v763
    %v797 = vadd.f32 %v674, %v764
    %v798 = vadd.f32 %v675, %v765
    %v799 = vadd.f32 %v676, %v766
    %v800 = vadd.f32 %v677, %v767
    %v801 = vadd.f32 %v678, %v768
    %v802 = vadd.f32 %v679, %v769
    %v803 = vadd.f32 %v680, %v770
    %v804 = vadd.f32 %v681, %v771
    %v805 = vadd.f32 %v682, %v772
    %v806 = vadd.f32 %v683, %v773
    %v807 = vadd.f32 %v684, %v774
    %v808 = vadd.f32 %v685, %v757
    %809 = vset.pattern.permute.xlu0 6
    %810 = vperm.xlu0 %809, %v83
    %v811 = vpop.permute.xlu0 %810
    %v813 = vmul.f32 %v811, %v95
    %v814 = vmul.f32 %v811, %v99
    %v815 = vmul.f32 %v811, %v103
    %v816 = vmul.f32 %v811, %v107
    %v817 = vmul.f32 %v811, %v111
    %v818 = vmul.f32 %v811, %v115
    %v819 = vmul.f32 %v811, %v119
    %v820 = vmul.f32 %v811, %v123
    %v821 = vmul.f32 %v811, %v127
    %v822 = vmul.f32 %v811, %v131
    %v823 = vmul.f32 %v811, %v135
    %v824 = vmul.f32 %v811, %v139
    %v825 = vmul.f32 %v811, %v143
    %v826 = vmul.f32 %v811, %v147
    %v827 = vmul.f32 %v811, %v151
    %v828 = vmul.f32 %v811, %v155
    %v829 = vmul.f32 %v811, %v159
    %847 = vrot.lane.b32.xlu0 %v813, 64
    %v848 = vpop.permute.xlu0 %847
    %849 = vrot.lane.b32.xlu0 %v814, 64
    %v850 = vpop.permute.xlu0 %849
    %851 = vrot.lane.b32.xlu0 %v815, 64
    %v852 = vpop.permute.xlu0 %851
    %853 = vrot.lane.b32.xlu0 %v816, 64
    %v854 = vpop.permute.xlu0 %853
    %855 = vrot.lane.b32.xlu0 %v817, 64
    %v856 = vpop.permute.xlu0 %855
    %857 = vrot.lane.b32.xlu0 %v818, 64
    %v858 = vpop.permute.xlu0 %857
    %859 = vrot.lane.b32.xlu0 %v819, 64
    %v860 = vpop.permute.xlu0 %859
    %861 = vrot.lane.b32.xlu0 %v820, 64
    %v862 = vpop.permute.xlu0 %861
    %863 = vrot.lane.b32.xlu0 %v821, 64
    %v864 = vpop.permute.xlu0 %863
    %865 = vrot.lane.b32.xlu0 %v822, 64
    %v866 = vpop.permute.xlu0 %865
    %867 = vrot.lane.b32.xlu0 %v823, 64
    %v868 = vpop.permute.xlu0 %867
    %869 = vrot.lane.b32.xlu0 %v824, 64
    %v870 = vpop.permute.xlu0 %869
    %871 = vrot.lane.b32.xlu0 %v825, 64
    %v872 = vpop.permute.xlu0 %871
    %873 = vrot.lane.b32.xlu0 %v826, 64
    %v874 = vpop.permute.xlu0 %873
    %875 = vrot.lane.b32.xlu0 %v827, 64
    %v876 = vpop.permute.xlu0 %875
    %877 = vrot.lane.b32.xlu0 %v828, 64
    %v878 = vpop.permute.xlu0 %877
    %879 = vrot.lane.b32.xlu0 %v829, 64
    %v880 = vpop.permute.xlu0 %879
    %vm881 = vcmask 523264
    %v882 = vsel %vm881, %v848, %v850
    %v883 = vsel %vm881, %v850, %v852
    %v884 = vsel %vm881, %v852, %v854
    %v885 = vsel %vm881, %v854, %v856
    %v886 = vsel %vm881, %v856, %v858
    %v887 = vsel %vm881, %v858, %v860
    %v888 = vsel %vm881, %v860, %v862
    %v889 = vsel %vm881, %v862, %v864
    %v890 = vsel %vm881, %v864, %v866
    %v891 = vsel %vm881, %v866, %v868
    %v892 = vsel %vm881, %v868, %v870
    %v893 = vsel %vm881, %v870, %v872
    %v894 = vsel %vm881, %v872, %v874
    %v895 = vsel %vm881, %v874, %v876
    %v896 = vsel %vm881, %v876, %v878
    %v897 = vsel %vm881, %v878, %v880
    %v915 = vadd.f32 %v792, %v882
    %v916 = vadd.f32 %v793, %v883
    %v917 = vadd.f32 %v794, %v884
    %v918 = vadd.f32 %v795, %v885
    %v919 = vadd.f32 %v796, %v886
    %v920 = vadd.f32 %v797, %v887
    %v921 = vadd.f32 %v798, %v888
    %v922 = vadd.f32 %v799, %v889
    %v923 = vadd.f32 %v800, %v890
    %v924 = vadd.f32 %v801, %v891
    %v925 = vadd.f32 %v802, %v892
    %v926 = vadd.f32 %v803, %v893
    %v927 = vadd.f32 %v804, %v894
    %v928 = vadd.f32 %v805, %v895
    %v929 = vadd.f32 %v806, %v896
    %v930 = vadd.f32 %v807, %v897
    %v931 = vadd.f32 %v808, %v880
    %932 = vset.pattern.permute.xlu0 7
    %933 = vperm.xlu0 %932, %v83
    %v934 = vpop.permute.xlu0 %933
    %v936 = vmul.f32 %v934, %v95
    %v937 = vmul.f32 %v934, %v99
    %v938 = vmul.f32 %v934, %v103
    %v939 = vmul.f32 %v934, %v107
    %v940 = vmul.f32 %v934, %v111
    %v941 = vmul.f32 %v934, %v115
    %v942 = vmul.f32 %v934, %v119
    %v943 = vmul.f32 %v934, %v123
    %v944 = vmul.f32 %v934, %v127
    %v945 = vmul.f32 %v934, %v131
    %v946 = vmul.f32 %v934, %v135
    %v947 = vmul.f32 %v934, %v139
    %v948 = vmul.f32 %v934, %v143
    %v949 = vmul.f32 %v934, %v147
    %v950 = vmul.f32 %v934, %v151
    %v951 = vmul.f32 %v934, %v155
    %v952 = vmul.f32 %v934, %v159
    %970 = vrot.lane.b32.xlu0 %v936, 63
    %v971 = vpop.permute.xlu0 %970
    %972 = vrot.lane.b32.xlu0 %v937, 63
    %v973 = vpop.permute.xlu0 %972
    %974 = vrot.lane.b32.xlu0 %v938, 63
    %v975 = vpop.permute.xlu0 %974
    %976 = vrot.lane.b32.xlu0 %v939, 63
    %v977 = vpop.permute.xlu0 %976
    %978 = vrot.lane.b32.xlu0 %v940, 63
    %v979 = vpop.permute.xlu0 %978
    %980 = vrot.lane.b32.xlu0 %v941, 63
    %v981 = vpop.permute.xlu0 %980
    %982 = vrot.lane.b32.xlu0 %v942, 63
    %v983 = vpop.permute.xlu0 %982
    %984 = vrot.lane.b32.xlu0 %v943, 63
    %v985 = vpop.permute.xlu0 %984
    %986 = vrot.lane.b32.xlu0 %v944, 63
    %v987 = vpop.permute.xlu0 %986
    %988 = vrot.lane.b32.xlu0 %v945, 63
    %v989 = vpop.permute.xlu0 %988
    %990 = vrot.lane.b32.xlu0 %v946, 63
    %v991 = vpop.permute.xlu0 %990
    %992 = vrot.lane.b32.xlu0 %v947, 63
    %v993 = vpop.permute.xlu0 %992
    %994 = vrot.lane.b32.xlu0 %v948, 63
    %v995 = vpop.permute.xlu0 %994
    %996 = vrot.lane.b32.xlu0 %v949, 63
    %v997 = vpop.permute.xlu0 %996
    %998 = vrot.lane.b32.xlu0 %v950, 63
    %v999 = vpop.permute.xlu0 %998
    %1000 = vrot.lane.b32.xlu0 %v951, 63
    %v1001 = vpop.permute.xlu0 %1000
    %1002 = vrot.lane.b32.xlu0 %v952, 63
    %v1003 = vpop.permute.xlu0 %1002
    %vm1004 = vcmask 515072
    %v1005 = vsel %vm1004, %v971, %v973
    %v1006 = vsel %vm1004, %v973, %v975
    %v1007 = vsel %vm1004, %v975, %v977
    %v1008 = vsel %vm1004, %v977, %v979
    %v1009 = vsel %vm1004, %v979, %v981
    %v1010 = vsel %vm1004, %v981, %v983
    %v1011 = vsel %vm1004, %v983, %v985
    %v1012 = vsel %vm1004, %v985, %v987
    %v1013 = vsel %vm1004, %v987, %v989
    %v1014 = vsel %vm1004, %v989, %v991
    %v1015 = vsel %vm1004, %v991, %v993
    %v1016 = vsel %vm1004, %v993, %v995
    %v1017 = vsel %vm1004, %v995, %v997
    %v1018 = vsel %vm1004, %v997, %v999
    %v1019 = vsel %vm1004, %v999, %v1001
    %v1020 = vsel %vm1004, %v1001, %v1003
    %v1038 = vadd.f32 %v915, %v1005
    %v1039 = vadd.f32 %v916, %v1006
    %v1040 = vadd.f32 %v917, %v1007
    %v1041 = vadd.f32 %v918, %v1008
    %v1042 = vadd.f32 %v919, %v1009
    %v1043 = vadd.f32 %v920, %v1010
    %v1044 = vadd.f32 %v921, %v1011
    %v1045 = vadd.f32 %v922, %v1012
    %v1046 = vadd.f32 %v923, %v1013
    %v1047 = vadd.f32 %v924, %v1014
    %v1048 = vadd.f32 %v925, %v1015
    %v1049 = vadd.f32 %v926, %v1016
    %v1050 = vadd.f32 %v927, %v1017
    %v1051 = vadd.f32 %v928, %v1018
    %v1052 = vadd.f32 %v929, %v1019
    %v1053 = vadd.f32 %v930, %v1020
    %v1054 = vadd.f32 %v931, %v1003
    %1055 = vset.pattern.permute.xlu0 8
    %1056 = vperm.xlu0 %1055, %v83
    %v1057 = vpop.permute.xlu0 %1056
    %v1059 = vmul.f32 %v1057, %v95
    %v1060 = vmul.f32 %v1057, %v99
    %v1061 = vmul.f32 %v1057, %v103
    %v1062 = vmul.f32 %v1057, %v107
    %v1063 = vmul.f32 %v1057, %v111
    %v1064 = vmul.f32 %v1057, %v115
    %v1065 = vmul.f32 %v1057, %v119
    %v1066 = vmul.f32 %v1057, %v123
    %v1067 = vmul.f32 %v1057, %v127
    %v1068 = vmul.f32 %v1057, %v131
    %v1069 = vmul.f32 %v1057, %v135
    %v1070 = vmul.f32 %v1057, %v139
    %v1071 = vmul.f32 %v1057, %v143
    %v1072 = vmul.f32 %v1057, %v147
    %v1073 = vmul.f32 %v1057, %v151
    %v1074 = vmul.f32 %v1057, %v155
    %v1075 = vmul.f32 %v1057, %v159
    %1093 = vrot.lane.b32.xlu0 %v1059, 62
    %v1094 = vpop.permute.xlu0 %1093
    %1095 = vrot.lane.b32.xlu0 %v1060, 62
    %v1096 = vpop.permute.xlu0 %1095
    %1097 = vrot.lane.b32.xlu0 %v1061, 62
    %v1098 = vpop.permute.xlu0 %1097
    %1099 = vrot.lane.b32.xlu0 %v1062, 62
    %v1100 = vpop.permute.xlu0 %1099
    %1101 = vrot.lane.b32.xlu0 %v1063, 62
    %v1102 = vpop.permute.xlu0 %1101
    %1103 = vrot.lane.b32.xlu0 %v1064, 62
    %v1104 = vpop.permute.xlu0 %1103
    %1105 = vrot.lane.b32.xlu0 %v1065, 62
    %v1106 = vpop.permute.xlu0 %1105
    %1107 = vrot.lane.b32.xlu0 %v1066, 62
    %v1108 = vpop.permute.xlu0 %1107
    %1109 = vrot.lane.b32.xlu0 %v1067, 62
    %v1110 = vpop.permute.xlu0 %1109
    %1111 = vrot.lane.b32.xlu0 %v1068, 62
    %v1112 = vpop.permute.xlu0 %1111
    %1113 = vrot.lane.b32.xlu0 %v1069, 62
    %v1114 = vpop.permute.xlu0 %1113
    %1115 = vrot.lane.b32.xlu0 %v1070, 62
    %v1116 = vpop.permute.xlu0 %1115
    %1117 = vrot.lane.b32.xlu0 %v1071, 62
    %v1118 = vpop.permute.xlu0 %1117
    %1119 = vrot.lane.b32.xlu0 %v1072, 62
    %v1120 = vpop.permute.xlu0 %1119
    %1121 = vrot.lane.b32.xlu0 %v1073, 62
    %v1122 = vpop.permute.xlu0 %1121
    %1123 = vrot.lane.b32.xlu0 %v1074, 62
    %v1124 = vpop.permute.xlu0 %1123
    %1125 = vrot.lane.b32.xlu0 %v1075, 62
    %v1126 = vpop.permute.xlu0 %1125
    %vm1127 = vcmask 506880
    %v1128 = vsel %vm1127, %v1094, %v1096
    %v1129 = vsel %vm1127, %v1096, %v1098
    %v1130 = vsel %vm1127, %v1098, %v1100
    %v1131 = vsel %vm1127, %v1100, %v1102
    %v1132 = vsel %vm1127, %v1102, %v1104
    %v1133 = vsel %vm1127, %v1104, %v1106
    %v1134 = vsel %vm1127, %v1106, %v1108
    %v1135 = vsel %vm1127, %v1108, %v1110
    %v1136 = vsel %vm1127, %v1110, %v1112
    %v1137 = vsel %vm1127, %v1112, %v1114
    %v1138 = vsel %vm1127, %v1114, %v1116
    %v1139 = vsel %vm1127, %v1116, %v1118
    %v1140 = vsel %vm1127, %v1118, %v1120
    %v1141 = vsel %vm1127, %v1120, %v1122
    %v1142 = vsel %vm1127, %v1122, %v1124
    %v1143 = vsel %vm1127, %v1124, %v1126
    %v1161 = vadd.f32 %v1038, %v1128
    %v1162 = vadd.f32 %v1039, %v1129
    %v1163 = vadd.f32 %v1040, %v1130
    %v1164 = vadd.f32 %v1041, %v1131
    %v1165 = vadd.f32 %v1042, %v1132
    %v1166 = vadd.f32 %v1043, %v1133
    %v1167 = vadd.f32 %v1044, %v1134
    %v1168 = vadd.f32 %v1045, %v1135
    %v1169 = vadd.f32 %v1046, %v1136
    %v1170 = vadd.f32 %v1047, %v1137
    %v1171 = vadd.f32 %v1048, %v1138
    %v1172 = vadd.f32 %v1049, %v1139
    %v1173 = vadd.f32 %v1050, %v1140
    %v1174 = vadd.f32 %v1051, %v1141
    %v1175 = vadd.f32 %v1052, %v1142
    %v1176 = vadd.f32 %v1053, %v1143
    %v1177 = vadd.f32 %v1054, %v1126
    %1178 = vset.pattern.permute.xlu0 9
    %1179 = vperm.xlu0 %1178, %v83
    %v1180 = vpop.permute.xlu0 %1179
    %v1182 = vadd.f32 %v1161, %v1180
    %v1183 = vadd.f32 %v1162, %v1180
    %v1184 = vadd.f32 %v1163, %v1180
    %v1185 = vadd.f32 %v1164, %v1180
    %v1186 = vadd.f32 %v1165, %v1180
    %v1187 = vadd.f32 %v1166, %v1180
    %v1188 = vadd.f32 %v1167, %v1180
    %v1189 = vadd.f32 %v1168, %v1180
    %v1190 = vadd.f32 %v1169, %v1180
    %v1191 = vadd.f32 %v1170, %v1180
    %v1192 = vadd.f32 %v1171, %v1180
    %v1193 = vadd.f32 %v1172, %v1180
    %v1194 = vadd.f32 %v1173, %v1180
    %v1195 = vadd.f32 %v1174, %v1180
    %v1196 = vadd.f32 %v1175, %v1180
    %v1197 = vadd.f32 %v1176, %v1180
    %v1198 = vadd.f32 %v1177, %v1180
    %v1199 = vmax.f32 %v1182, 0.0
    %v1200 = vmax.f32 %v1183, 0.0
    %v1201 = vmax.f32 %v1184, 0.0
    %v1202 = vmax.f32 %v1185, 0.0
    %v1203 = vmax.f32 %v1186, 0.0
    %v1204 = vmax.f32 %v1187, 0.0
    %v1205 = vmax.f32 %v1188, 0.0
    %v1206 = vmax.f32 %v1189, 0.0
    %v1207 = vmax.f32 %v1190, 0.0
    %v1208 = vmax.f32 %v1191, 0.0
    %v1209 = vmax.f32 %v1192, 0.0
    %v1210 = vmax.f32 %v1193, 0.0
    %v1211 = vmax.f32 %v1194, 0.0
    %v1212 = vmax.f32 %v1195, 0.0
    %v1213 = vmax.f32 %v1196, 0.0
    %v1214 = vmax.f32 %v1197, 0.0
    %v1215 = vmax.f32 %v1198, 0.0
    %1233 = vrot.lane.b32.xlu0 %v1199, 127
    %v1234 = vpop.permute.xlu0 %1233
    %1235 = vrot.lane.b32.xlu0 %v1200, 127
    %v1236 = vpop.permute.xlu0 %1235
    %1237 = vrot.lane.b32.xlu0 %v1201, 127
    %v1238 = vpop.permute.xlu0 %1237
    %1239 = vrot.lane.b32.xlu0 %v1202, 127
    %v1240 = vpop.permute.xlu0 %1239
    %1241 = vrot.lane.b32.xlu0 %v1203, 127
    %v1242 = vpop.permute.xlu0 %1241
    %1243 = vrot.lane.b32.xlu0 %v1204, 127
    %v1244 = vpop.permute.xlu0 %1243
    %1245 = vrot.lane.b32.xlu0 %v1205, 127
    %v1246 = vpop.permute.xlu0 %1245
    %1247 = vrot.lane.b32.xlu0 %v1206, 127
    %v1248 = vpop.permute.xlu0 %1247
    %1249 = vrot.lane.b32.xlu0 %v1207, 127
    %v1250 = vpop.permute.xlu0 %1249
    %1251 = vrot.lane.b32.xlu0 %v1208, 127
    %v1252 = vpop.permute.xlu0 %1251
    %1253 = vrot.lane.b32.xlu0 %v1209, 127
    %v1254 = vpop.permute.xlu0 %1253
    %1255 = vrot.lane.b32.xlu0 %v1210, 127
    %v1256 = vpop.permute.xlu0 %1255
    %1257 = vrot.lane.b32.xlu0 %v1211, 127
    %v1258 = vpop.permute.xlu0 %1257
    %1259 = vrot.lane.b32.xlu0 %v1212, 127
    %v1260 = vpop.permute.xlu0 %1259
    %1261 = vrot.lane.b32.xlu0 %v1213, 127
    %v1262 = vpop.permute.xlu0 %1261
    %1263 = vrot.lane.b32.xlu0 %v1214, 127
    %v1264 = vpop.permute.xlu0 %1263
    %1265 = vrot.lane.b32.xlu0 %v1215, 127
    %v1266 = vpop.permute.xlu0 %1265
    %v1267 = vsel %vm266, %v1234, %v1236
    %v1268 = vsel %vm266, %v1236, %v1238
    %v1269 = vsel %vm266, %v1238, %v1240
    %v1270 = vsel %vm266, %v1240, %v1242
    %v1271 = vsel %vm266, %v1242, %v1244
    %v1272 = vsel %vm266, %v1244, %v1246
    %v1273 = vsel %vm266, %v1246, %v1248
    %v1274 = vsel %vm266, %v1248, %v1250
    %v1275 = vsel %vm266, %v1250, %v1252
    %v1276 = vsel %vm266, %v1252, %v1254
    %v1277 = vsel %vm266, %v1254, %v1256
    %v1278 = vsel %vm266, %v1256, %v1258
    %v1279 = vsel %vm266, %v1258, %v1260
    %v1280 = vsel %vm266, %v1260, %v1262
    %v1281 = vsel %vm266, %v1262, %v1264
    %v1282 = vsel %vm266, %v1264, %v1266
    %v1300 = vmax.f32 %v1199, %v1267
    %v1301 = vmax.f32 %v1200, %v1268
    %v1302 = vmax.f32 %v1201, %v1269
    %v1303 = vmax.f32 %v1202, %v1270
    %v1304 = vmax.f32 %v1203, %v1271
    %v1305 = vmax.f32 %v1204, %v1272
    %v1306 = vmax.f32 %v1205, %v1273
    %v1307 = vmax.f32 %v1206, %v1274
    %v1308 = vmax.f32 %v1207, %v1275
    %v1309 = vmax.f32 %v1208, %v1276
    %v1310 = vmax.f32 %v1209, %v1277
    %v1311 = vmax.f32 %v1210, %v1278
    %v1312 = vmax.f32 %v1211, %v1279
    %v1313 = vmax.f32 %v1212, %v1280
    %v1314 = vmax.f32 %v1213, %v1281
    %v1315 = vmax.f32 %v1214, %v1282
    %v1316 = vmax.f32 %v1215, %v1266
    %1334 = vrot.lane.b32.xlu0 %v1300, 96
    %v1335 = vpop.permute.xlu0 %1334
    %1336 = vrot.lane.b32.xlu0 %v1301, 96
    %v1337 = vpop.permute.xlu0 %1336
    %1338 = vrot.lane.b32.xlu0 %v1302, 96
    %v1339 = vpop.permute.xlu0 %1338
    %1340 = vrot.lane.b32.xlu0 %v1303, 96
    %v1341 = vpop.permute.xlu0 %1340
    %1342 = vrot.lane.b32.xlu0 %v1304, 96
    %v1343 = vpop.permute.xlu0 %1342
    %1344 = vrot.lane.b32.xlu0 %v1305, 96
    %v1345 = vpop.permute.xlu0 %1344
    %1346 = vrot.lane.b32.xlu0 %v1306, 96
    %v1347 = vpop.permute.xlu0 %1346
    %1348 = vrot.lane.b32.xlu0 %v1307, 96
    %v1349 = vpop.permute.xlu0 %1348
    %1350 = vrot.lane.b32.xlu0 %v1308, 96
    %v1351 = vpop.permute.xlu0 %1350
    %1352 = vrot.lane.b32.xlu0 %v1309, 96
    %v1353 = vpop.permute.xlu0 %1352
    %1354 = vrot.lane.b32.xlu0 %v1310, 96
    %v1355 = vpop.permute.xlu0 %1354
    %1356 = vrot.lane.b32.xlu0 %v1311, 96
    %v1357 = vpop.permute.xlu0 %1356
    %1358 = vrot.lane.b32.xlu0 %v1312, 96
    %v1359 = vpop.permute.xlu0 %1358
    %1360 = vrot.lane.b32.xlu0 %v1313, 96
    %v1361 = vpop.permute.xlu0 %1360
    %1362 = vrot.lane.b32.xlu0 %v1314, 96
    %v1363 = vpop.permute.xlu0 %1362
    %1364 = vrot.lane.b32.xlu0 %v1315, 96
    %v1365 = vpop.permute.xlu0 %1364
    %1366 = vrot.lane.b32.xlu0 %v1316, 96
    %v1367 = vpop.permute.xlu0 %1366
    %v1368 = vsel %vm512, %v1335, %v1337
    %v1369 = vsel %vm512, %v1337, %v1339
    %v1370 = vsel %vm512, %v1339, %v1341
    %v1371 = vsel %vm512, %v1341, %v1343
    %v1372 = vsel %vm512, %v1343, %v1345
    %v1373 = vsel %vm512, %v1345, %v1347
    %v1374 = vsel %vm512, %v1347, %v1349
    %v1375 = vsel %vm512, %v1349, %v1351
    %v1376 = vsel %vm512, %v1351, %v1353
    %v1377 = vsel %vm512, %v1353, %v1355
    %v1378 = vsel %vm512, %v1355, %v1357
    %v1379 = vsel %vm512, %v1357, %v1359
    %v1380 = vsel %vm512, %v1359, %v1361
    %v1381 = vsel %vm512, %v1361, %v1363
    %v1382 = vsel %vm512, %v1363, %v1365
    %v1383 = vsel %vm512, %v1365, %v1367
    %v1401 = vmax.f32 %v1300, %v1368
    %v1402 = vmax.f32 %v1301, %v1369
    %v1403 = vmax.f32 %v1302, %v1370
    %v1404 = vmax.f32 %v1303, %v1371
    %v1405 = vmax.f32 %v1304, %v1372
    %v1406 = vmax.f32 %v1305, %v1373
    %v1407 = vmax.f32 %v1306, %v1374
    %v1408 = vmax.f32 %v1307, %v1375
    %v1409 = vmax.f32 %v1308, %v1376
    %v1410 = vmax.f32 %v1309, %v1377
    %v1411 = vmax.f32 %v1310, %v1378
    %v1412 = vmax.f32 %v1311, %v1379
    %v1413 = vmax.f32 %v1312, %v1380
    %v1414 = vmax.f32 %v1313, %v1381
    %v1415 = vmax.f32 %v1314, %v1382
    %v1416 = vmax.f32 %v1315, %v1383
    %v1417 = vmax.f32 %v1316, %v1367
    %1418 = vst [vmem:[#allocation2] sm:$0x3f] %v1401
    %1419 = vst [vmem:[#allocation2 + $0x8] sm:$0x3f] %v1402
    %1420 = vst [vmem:[#allocation2 + $0x10] sm:$0x3f] %v1403
    %1421 = vst [vmem:[#allocation2 + $0x18] sm:$0x3f] %v1404
    %1422 = vst [vmem:[#allocation2 + $0x20] sm:$0x3f] %v1405
    %1423 = vst [vmem:[#allocation2 + $0x28] sm:$0x3f] %v1406
    %1424 = vst [vmem:[#allocation2 + $0x30] sm:$0x3f] %v1407
    %1425 = vst [vmem:[#allocation2 + $0x38] sm:$0x3f] %v1408
    %1426 = vst [vmem:[#allocation2 + $0x40] sm:$0x3f] %v1409
    %1427 = vst [vmem:[#allocation2 + $0x48] sm:$0x3f] %v1410
    %1428 = vst [vmem:[#allocation2 + $0x50] sm:$0x3f] %v1411
    %1429 = vst [vmem:[#allocation2 + $0x58] sm:$0x3f] %v1412
    %1430 = vst [vmem:[#allocation2 + $0x60] sm:$0x3f] %v1413
    %1431 = vst [vmem:[#allocation2 + $0x68] sm:$0x3f] %v1414
    %1432 = vst [vmem:[#allocation2 + $0x70] sm:$0x3f] %v1415
    %vm1433 = vcmask 201728
    %1434 = vst.msk [vmem:[#allocation2 + $0x78] sm:$0x3f] %vm1433, %v1416
    %v1451 = vrot.slane %v1401, 2
    %v1452 = vrot.slane %v1402, 2
    %v1453 = vrot.slane %v1403, 2
    %v1454 = vrot.slane %v1404, 2
    %v1455 = vrot.slane %v1405, 2
    %v1456 = vrot.slane %v1406, 2
    %v1457 = vrot.slane %v1407, 2
    %v1458 = vrot.slane %v1408, 2
    %v1459 = vrot.slane %v1409, 2
    %v1460 = vrot.slane %v1410, 2
    %v1461 = vrot.slane %v1411, 2
    %v1462 = vrot.slane %v1412, 2
    %v1463 = vrot.slane %v1413, 2
    %v1464 = vrot.slane %v1414, 2
    %v1465 = vrot.slane %v1415, 2
    %v1466 = vrot.slane %v1416, 2
    %1467 = vrot.lane.b32.xlu0 %v1451, 126
    %v1468 = vpop.permute.xlu0 %1467
    %1469 = vrot.lane.b32.xlu0 %v1452, 126
    %v1470 = vpop.permute.xlu0 %1469
    %1471 = vrot.lane.b32.xlu0 %v1453, 126
    %v1472 = vpop.permute.xlu0 %1471
    %1473 = vrot.lane.b32.xlu0 %v1454, 126
    %v1474 = vpop.permute.xlu0 %1473
    %1475 = vrot.lane.b32.xlu0 %v1455, 126
    %v1476 = vpop.permute.xlu0 %1475
    %1477 = vrot.lane.b32.xlu0 %v1456, 126
    %v1478 = vpop.permute.xlu0 %1477
    %1479 = vrot.lane.b32.xlu0 %v1457, 126
    %v1480 = vpop.permute.xlu0 %1479
    %1481 = vrot.lane.b32.xlu0 %v1458, 126
    %v1482 = vpop.permute.xlu0 %1481
    %1483 = vrot.lane.b32.xlu0 %v1459, 126
    %v1484 = vpop.permute.xlu0 %1483
    %1485 = vrot.lane.b32.xlu0 %v1460, 126
    %v1486 = vpop.permute.xlu0 %1485
    %1487 = vrot.lane.b32.xlu0 %v1461, 126
    %v1488 = vpop.permute.xlu0 %1487
    %1489 = vrot.lane.b32.xlu0 %v1462, 126
    %v1490 = vpop.permute.xlu0 %1489
    %1491 = vrot.lane.b32.xlu0 %v1463, 126
    %v1492 = vpop.permute.xlu0 %1491
    %1493 = vrot.lane.b32.xlu0 %v1464, 126
    %v1494 = vpop.permute.xlu0 %1493
    %1495 = vrot.lane.b32.xlu0 %v1465, 126
    %v1496 = vpop.permute.xlu0 %1495
    %1497 = vrot.lane.b32.xlu0 %v1466, 126
    %v1498 = vpop.permute.xlu0 %1497
    %v1499 = vsel %vm389, %v1468, %v1470
    %v1500 = vsel %vm389, %v1470, %v1472
    %v1501 = vsel %vm389, %v1472, %v1474
    %v1502 = vsel %vm389, %v1474, %v1476
    %v1503 = vsel %vm389, %v1476, %v1478
    %v1504 = vsel %vm389, %v1478, %v1480
    %v1505 = vsel %vm389, %v1480, %v1482
    %v1506 = vsel %vm389, %v1482, %v1484
    %v1507 = vsel %vm389, %v1484, %v1486
    %v1508 = vsel %vm389, %v1486, %v1488
    %v1509 = vsel %vm389, %v1488, %v1490
    %v1510 = vsel %vm389, %v1490, %v1492
    %v1511 = vsel %vm389, %v1492, %v1494
    %v1512 = vsel %vm389, %v1494, %v1496
    %v1513 = vsel %vm389, %v1496, %v1498
    %1530 = vst [vmem:[#allocation2] sm:$0xc0] %v1499
    %1531 = vst [vmem:[#allocation2 + $0x8] sm:$0xc0] %v1500
    %1532 = vst [vmem:[#allocation2 + $0x10] sm:$0xc0] %v1501
    %1533 = vst [vmem:[#allocation2 + $0x18] sm:$0xc0] %v1502
    %1534 = vst [vmem:[#allocation2 + $0x20] sm:$0xc0] %v1503
    %1535 = vst [vmem:[#allocation2 + $0x28] sm:$0xc0] %v1504
    %1536 = vst [vmem:[#allocation2 + $0x30] sm:$0xc0] %v1505
    %1537 = vst [vmem:[#allocation2 + $0x38] sm:$0xc0] %v1506
    %1538 = vst [vmem:[#allocation2 + $0x40] sm:$0xc0] %v1507
    %1539 = vst [vmem:[#allocation2 + $0x48] sm:$0xc0] %v1508
    %1540 = vst [vmem:[#allocation2 + $0x50] sm:$0xc0] %v1509
    %1541 = vst [vmem:[#allocation2 + $0x58] sm:$0xc0] %v1510
    %1542 = vst [vmem:[#allocation2 + $0x60] sm:$0xc0] %v1511
    %1543 = vst [vmem:[#allocation2 + $0x68] sm:$0xc0] %v1512
    %1544 = vst [vmem:[#allocation2 + $0x70] sm:$0xc0] %v1513
    %vm1545 = vcmask 203782
    %1546 = vst.msk [vmem:[#allocation2 + $0x78] sm:$0xc0] %vm1545, %v1498
    %1547 = vst [vmem:[#allocation2 + $0x80] sm:$0xf] %v1499
    %1548 = vst [vmem:[#allocation2 + $0x88] sm:$0xf] %v1500
    %1549 = vst [vmem:[#allocation2 + $0x90] sm:$0xf] %v1501
    %1550 = vst [vmem:[#allocation2 + $0x98] sm:$0xf] %v1502
    %1551 = vst [vmem:[#allocation2 + $0xa0] sm:$0xf] %v1503
    %1552 = vst [vmem:[#allocation2 + $0xa8] sm:$0xf] %v1504
    %1553 = vst [vmem:[#allocation2 + $0xb0] sm:$0xf] %v1505
    %1554 = vst [vmem:[#allocation2 + $0xb8] sm:$0xf] %v1506
    %1555 = vst [vmem:[#allocation2 + $0xc0] sm:$0xf] %v1507
    %1556 = vst [vmem:[#allocation2 + $0xc8] sm:$0xf] %v1508
    %1557 = vst [vmem:[#allocation2 + $0xd0] sm:$0xf] %v1509
    %1558 = vst [vmem:[#allocation2 + $0xd8] sm:$0xf] %v1510
    %1559 = vst [vmem:[#allocation2 + $0xe0] sm:$0xf] %v1511
    %1560 = vst [vmem:[#allocation2 + $0xe8] sm:$0xf] %v1512
    %1561 = vst [vmem:[#allocation2 + $0xf0] sm:$0xf] %v1513
    %vm1562 = vcmask 199680
    %1563 = vst.msk [vmem:[#allocation2 + $0xf8] sm:$0xf] %vm1562, %v1498
    %v1564 = vrot.slane %v1401, 4
    %v1565 = vrot.slane %v1402, 4
    %v1566 = vrot.slane %v1403, 4
    %v1567 = vrot.slane %v1404, 4
    %v1568 = vrot.slane %v1405, 4
    %v1569 = vrot.slane %v1406, 4
    %v1570 = vrot.slane %v1407, 4
    %v1571 = vrot.slane %v1408, 4
    %v1572 = vrot.slane %v1409, 4
    %v1573 = vrot.slane %v1410, 4
    %v1574 = vrot.slane %v1411, 4
    %v1575 = vrot.slane %v1412, 4
    %v1576 = vrot.slane %v1413, 4
    %v1577 = vrot.slane %v1414, 4
    %v1578 = vrot.slane %v1415, 4
    %v1579 = vrot.slane %v1416, 4
    %1580 = vrot.lane.b32.xlu0 %v1564, 124
    %v1581 = vpop.permute.xlu0 %1580
    %1582 = vrot.lane.b32.xlu0 %v1565, 124
    %v1583 = vpop.permute.xlu0 %1582
    %1584 = vrot.lane.b32.xlu0 %v1566, 124
    %v1585 = vpop.permute.xlu0 %1584
    %1586 = vrot.lane.b32.xlu0 %v1567, 124
    %v1587 = vpop.permute.xlu0 %1586
    %1588 = vrot.lane.b32.xlu0 %v1568, 124
    %v1589 = vpop.permute.xlu0 %1588
    %1590 = vrot.lane.b32.xlu0 %v1569, 124
    %v1591 = vpop.permute.xlu0 %1590
    %1592 = vrot.lane.b32.xlu0 %v1570, 124
    %v1593 = vpop.permute.xlu0 %1592
    %1594 = vrot.lane.b32.xlu0 %v1571, 124
    %v1595 = vpop.permute.xlu0 %1594
    %1596 = vrot.lane.b32.xlu0 %v1572, 124
    %v1597 = vpop.permute.xlu0 %1596
    %1598 = vrot.lane.b32.xlu0 %v1573, 124
    %v1599 = vpop.permute.xlu0 %1598
    %1600 = vrot.lane.b32.xlu0 %v1574, 124
    %v1601 = vpop.permute.xlu0 %1600
    %1602 = vrot.lane.b32.xlu0 %v1575, 124
    %v1603 = vpop.permute.xlu0 %1602
    %1604 = vrot.lane.b32.xlu0 %v1576, 124
    %v1605 = vpop.permute.xlu0 %1604
    %1606 = vrot.lane.b32.xlu0 %v1577, 124
    %v1607 = vpop.permute.xlu0 %1606
    %1608 = vrot.lane.b32.xlu0 %v1578, 124
    %v1609 = vpop.permute.xlu0 %1608
    %1610 = vrot.lane.b32.xlu0 %v1579, 124
    %v1611 = vpop.permute.xlu0 %1610
    %vm1612 = vcmask 1014784
    %v1613 = vsel %vm1612, %v1581, %v1583
    %v1614 = vsel %vm1612, %v1583, %v1585
    %v1615 = vsel %vm1612, %v1585, %v1587
    %v1616 = vsel %vm1612, %v1587, %v1589
    %v1617 = vsel %vm1612, %v1589, %v1591
    %v1618 = vsel %vm1612, %v1591, %v1593
    %v1619 = vsel %vm1612, %v1593, %v1595
    %v1620 = vsel %vm1612, %v1595, %v1597
    %v1621 = vsel %vm1612, %v1597, %v1599
    %v1622 = vsel %vm1612, %v1599, %v1601
    %v1623 = vsel %vm1612, %v1601, %v1603
    %v1624 = vsel %vm1612, %v1603, %v1605
    %v1625 = vsel %vm1612, %v1605, %v1607
    %v1626 = vsel %vm1612, %v1607, %v1609
    %v1627 = vsel %vm1612, %v1609, %v1611
    %1644 = vst [vmem:[#allocation2 + $0x80] sm:$0xf0] %v1613
    %1645 = vst [vmem:[#allocation2 + $0x88] sm:$0xf0] %v1614
    %1646 = vst [vmem:[#allocation2 + $0x90] sm:$0xf0] %v1615
    %1647 = vst [vmem:[#allocation2 + $0x98] sm:$0xf0] %v1616
    %1648 = vst [vmem:[#allocation2 + $0xa0] sm:$0xf0] %v1617
    %1649 = vst [vmem:[#allocation2 + $0xa8] sm:$0xf0] %v1618
    %1650 = vst [vmem:[#allocation2 + $0xb0] sm:$0xf0] %v1619
    %1651 = vst [vmem:[#allocation2 + $0xb8] sm:$0xf0] %v1620
    %1652 = vst [vmem:[#allocation2 + $0xc0] sm:$0xf0] %v1621
    %1653 = vst [vmem:[#allocation2 + $0xc8] sm:$0xf0] %v1622
    %1654 = vst [vmem:[#allocation2 + $0xd0] sm:$0xf0] %v1623
    %1655 = vst [vmem:[#allocation2 + $0xd8] sm:$0xf0] %v1624
    %1656 = vst [vmem:[#allocation2 + $0xe0] sm:$0xf0] %v1625
    %1657 = vst [vmem:[#allocation2 + $0xe8] sm:$0xf0] %v1626
    %1658 = vst [vmem:[#allocation2 + $0xf0] sm:$0xf0] %v1627
    %vm1659 = vcmask 203780
    %1660 = vst.msk [vmem:[#allocation2 + $0xf8] sm:$0xf0] %vm1659, %v1611
    %1661 = vst [vmem:[#allocation2 + $0x100] sm:$0x3] %v1613
    %1662 = vst [vmem:[#allocation2 + $0x108] sm:$0x3] %v1614
    %1663 = vst [vmem:[#allocation2 + $0x110] sm:$0x3] %v1615
    %1664 = vst [vmem:[#allocation2 + $0x118] sm:$0x3] %v1616
    %1665 = vst [vmem:[#allocation2 + $0x120] sm:$0x3] %v1617
    %1666 = vst [vmem:[#allocation2 + $0x128] sm:$0x3] %v1618
    %1667 = vst [vmem:[#allocation2 + $0x130] sm:$0x3] %v1619
    %1668 = vst [vmem:[#allocation2 + $0x138] sm:$0x3] %v1620
    %1669 = vst [vmem:[#allocation2 + $0x140] sm:$0x3] %v1621
    %1670 = vst [vmem:[#allocation2 + $0x148] sm:$0x3] %v1622
    %1671 = vst [vmem:[#allocation2 + $0x150] sm:$0x3] %v1623
    %1672 = vst [vmem:[#allocation2 + $0x158] sm:$0x3] %v1624
    %1673 = vst [vmem:[#allocation2 + $0x160] sm:$0x3] %v1625
    %1674 = vst [vmem:[#allocation2 + $0x168] sm:$0x3] %v1626
    %1675 = vst [vmem:[#allocation2 + $0x170] sm:$0x3] %v1627
    %vm1676 = vcmask 197632
    %1677 = vst.msk [vmem:[#allocation2 + $0x178] sm:$0x3] %vm1676, %v1611
    %v1678 = vrot.slane %v1401, 6
    %v1679 = vrot.slane %v1402, 6
    %v1680 = vrot.slane %v1403, 6
    %v1681 = vrot.slane %v1404, 6
    %v1682 = vrot.slane %v1405, 6
    %v1683 = vrot.slane %v1406, 6
    %v1684 = vrot.slane %v1407, 6
    %v1685 = vrot.slane %v1408, 6
    %v1686 = vrot.slane %v1409, 6
    %v1687 = vrot.slane %v1410, 6
    %v1688 = vrot.slane %v1411, 6
    %v1689 = vrot.slane %v1412, 6
    %v1690 = vrot.slane %v1413, 6
    %v1691 = vrot.slane %v1414, 6
    %v1692 = vrot.slane %v1415, 6
    %v1693 = vrot.slane %v1416, 6
    %1694 = vrot.lane.b32.xlu0 %v1678, 64
    %v1695 = vpop.permute.xlu0 %1694
    %1696 = vrot.lane.b32.xlu0 %v1679, 64
    %v1697 = vpop.permute.xlu0 %1696
    %1698 = vrot.lane.b32.xlu0 %v1680, 64
    %v1699 = vpop.permute.xlu0 %1698
    %1700 = vrot.lane.b32.xlu0 %v1681, 64
    %v1701 = vpop.permute.xlu0 %1700
    %1702 = vrot.lane.b32.xlu0 %v1682, 64
    %v1703 = vpop.permute.xlu0 %1702
    %1704 = vrot.lane.b32.xlu0 %v1683, 64
    %v1705 = vpop.permute.xlu0 %1704
    %1706 = vrot.lane.b32.xlu0 %v1684, 64
    %v1707 = vpop.permute.xlu0 %1706
    %1708 = vrot.lane.b32.xlu0 %v1685, 64
    %v1709 = vpop.permute.xlu0 %1708
    %1710 = vrot.lane.b32.xlu0 %v1686, 64
    %v1711 = vpop.permute.xlu0 %1710
    %1712 = vrot.lane.b32.xlu0 %v1687, 64
    %v1713 = vpop.permute.xlu0 %1712
    %1714 = vrot.lane.b32.xlu0 %v1688, 64
    %v1715 = vpop.permute.xlu0 %1714
    %1716 = vrot.lane.b32.xlu0 %v1689, 64
    %v1717 = vpop.permute.xlu0 %1716
    %1718 = vrot.lane.b32.xlu0 %v1690, 64
    %v1719 = vpop.permute.xlu0 %1718
    %1720 = vrot.lane.b32.xlu0 %v1691, 64
    %v1721 = vpop.permute.xlu0 %1720
    %1722 = vrot.lane.b32.xlu0 %v1692, 64
    %v1723 = vpop.permute.xlu0 %1722
    %1724 = vrot.lane.b32.xlu0 %v1693, 64
    %v1725 = vpop.permute.xlu0 %1724
    %v1726 = vsel %vm881, %v1695, %v1697
    %v1727 = vsel %vm881, %v1697, %v1699
    %v1728 = vsel %vm881, %v1699, %v1701
    %v1729 = vsel %vm881, %v1701, %v1703
    %v1730 = vsel %vm881, %v1703, %v1705
    %v1731 = vsel %vm881, %v1705, %v1707
    %v1732 = vsel %vm881, %v1707, %v1709
    %v1733 = vsel %vm881, %v1709, %v1711
    %v1734 = vsel %vm881, %v1711, %v1713
    %v1735 = vsel %vm881, %v1713, %v1715
    %v1736 = vsel %vm881, %v1715, %v1717
    %v1737 = vsel %vm881, %v1717, %v1719
    %v1738 = vsel %vm881, %v1719, %v1721
    %v1739 = vsel %vm881, %v1721, %v1723
    %v1740 = vsel %vm881, %v1723, %v1725
    %1757 = vst [vmem:[#allocation2 + $0x100] sm:$0xfc] %v1726
    %1758 = vst [vmem:[#allocation2 + $0x108] sm:$0xfc] %v1727
    %1759 = vst [vmem:[#allocation2 + $0x110] sm:$0xfc] %v1728
    %1760 = vst [vmem:[#allocation2 + $0x118] sm:$0xfc] %v1729
    %1761 = vst [vmem:[#allocation2 + $0x120] sm:$0xfc] %v1730
    %1762 = vst [vmem:[#allocation2 + $0x128] sm:$0xfc] %v1731
    %1763 = vst [vmem:[#allocation2 + $0x130] sm:$0xfc] %v1732
    %1764 = vst [vmem:[#allocation2 + $0x138] sm:$0xfc] %v1733
    %1765 = vst [vmem:[#allocation2 + $0x140] sm:$0xfc] %v1734
    %1766 = vst [vmem:[#allocation2 + $0x148] sm:$0xfc] %v1735
    %1767 = vst [vmem:[#allocation2 + $0x150] sm:$0xfc] %v1736
    %1768 = vst [vmem:[#allocation2 + $0x158] sm:$0xfc] %v1737
    %1769 = vst [vmem:[#allocation2 + $0x160] sm:$0xfc] %v1738
    %1770 = vst [vmem:[#allocation2 + $0x168] sm:$0xfc] %v1739
    %1771 = vst [vmem:[#allocation2 + $0x170] sm:$0xfc] %v1740
    %vm1772 = vcmask 203778
    %1773 = vst.msk [vmem:[#allocation2 + $0x178] sm:$0xfc] %vm1772, %v1725
    %1774 = vrot.lane.b32.xlu0 %v1401, 62
    %v1775 = vpop.permute.xlu0 %1774
    %1776 = vrot.lane.b32.xlu0 %v1402, 62
    %v1777 = vpop.permute.xlu0 %1776
    %1778 = vrot.lane.b32.xlu0 %v1403, 62
    %v1779 = vpop.permute.xlu0 %1778
    %1780 = vrot.lane.b32.xlu0 %v1404, 62
    %v1781 = vpop.permute.xlu0 %1780
    %1782 = vrot.lane.b32.xlu0 %v1405, 62
    %v1783 = vpop.permute.xlu0 %1782
    %1784 = vrot.lane.b32.xlu0 %v1406, 62
    %v1785 = vpop.permute.xlu0 %1784
    %1786 = vrot.lane.b32.xlu0 %v1407, 62
    %v1787 = vpop.permute.xlu0 %1786
    %1788 = vrot.lane.b32.xlu0 %v1408, 62
    %v1789 = vpop.permute.xlu0 %1788
    %1790 = vrot.lane.b32.xlu0 %v1409, 62
    %v1791 = vpop.permute.xlu0 %1790
    %1792 = vrot.lane.b32.xlu0 %v1410, 62
    %v1793 = vpop.permute.xlu0 %1792
    %1794 = vrot.lane.b32.xlu0 %v1411, 62
    %v1795 = vpop.permute.xlu0 %1794
    %1796 = vrot.lane.b32.xlu0 %v1412, 62
    %v1797 = vpop.permute.xlu0 %1796
    %1798 = vrot.lane.b32.xlu0 %v1413, 62
    %v1799 = vpop.permute.xlu0 %1798
    %1800 = vrot.lane.b32.xlu0 %v1414, 62
    %v1801 = vpop.permute.xlu0 %1800
    %1802 = vrot.lane.b32.xlu0 %v1415, 62
    %v1803 = vpop.permute.xlu0 %1802
    %1804 = vrot.lane.b32.xlu0 %v1416, 62
    %v1805 = vpop.permute.xlu0 %1804
    %v1806 = vsel %vm1127, %v1775, %v1777
    %v1807 = vsel %vm1127, %v1777, %v1779
    %v1808 = vsel %vm1127, %v1779, %v1781
    %v1809 = vsel %vm1127, %v1781, %v1783
    %v1810 = vsel %vm1127, %v1783, %v1785
    %v1811 = vsel %vm1127, %v1785, %v1787
    %v1812 = vsel %vm1127, %v1787, %v1789
    %v1813 = vsel %vm1127, %v1789, %v1791
    %v1814 = vsel %vm1127, %v1791, %v1793
    %v1815 = vsel %vm1127, %v1793, %v1795
    %v1816 = vsel %vm1127, %v1795, %v1797
    %v1817 = vsel %vm1127, %v1797, %v1799
    %v1818 = vsel %vm1127, %v1799, %v1801
    %v1819 = vsel %vm1127, %v1801, %v1803
    %v1820 = vsel %vm1127, %v1803, %v1805
    %1837 = vst [vmem:[#allocation2 + $0x180] sm:$0x3f] %v1806
    %1838 = vst [vmem:[#allocation2 + $0x188] sm:$0x3f] %v1807
    %1839 = vst [vmem:[#allocation2 + $0x190] sm:$0x3f] %v1808
    %1840 = vst [vmem:[#allocation2 + $0x198] sm:$0x3f] %v1809
    %1841 = vst [vmem:[#allocation2 + $0x1a0] sm:$0x3f] %v1810
    %1842 = vst [vmem:[#allocation2 + $0x1a8] sm:$0x3f] %v1811
    %1843 = vst [vmem:[#allocation2 + $0x1b0] sm:$0x3f] %v1812
    %1844 = vst [vmem:[#allocation2 + $0x1b8] sm:$0x3f] %v1813
    %1845 = vst [vmem:[#allocation2 + $0x1c0] sm:$0x3f] %v1814
    %1846 = vst [vmem:[#allocation2 + $0x1c8] sm:$0x3f] %v1815
    %1847 = vst [vmem:[#allocation2 + $0x1d0] sm:$0x3f] %v1816
    %1848 = vst [vmem:[#allocation2 + $0x1d8] sm:$0x3f] %v1817
    %1849 = vst [vmem:[#allocation2 + $0x1e0] sm:$0x3f] %v1818
    %1850 = vst [vmem:[#allocation2 + $0x1e8] sm:$0x3f] %v1819
    %1851 = vst [vmem:[#allocation2 + $0x1f0] sm:$0x3f] %v1820
    %1852 = vst.msk [vmem:[#allocation2 + $0x1f8] sm:$0x3f] %vm1433, %v1805
    %1853 = vrot.lane.b32.xlu0 %v1451, 60
    %v1854 = vpop.permute.xlu0 %1853
    %1855 = vrot.lane.b32.xlu0 %v1452, 60
    %v1856 = vpop.permute.xlu0 %1855
    %1857 = vrot.lane.b32.xlu0 %v1453, 60
    %v1858 = vpop.permute.xlu0 %1857
    %1859 = vrot.lane.b32.xlu0 %v1454, 60
    %v1860 = vpop.permute.xlu0 %1859
    %1861 = vrot.lane.b32.xlu0 %v1455, 60
    %v1862 = vpop.permute.xlu0 %1861
    %1863 = vrot.lane.b32.xlu0 %v1456, 60
    %v1864 = vpop.permute.xlu0 %1863
    %1865 = vrot.lane.b32.xlu0 %v1457, 60
    %v1866 = vpop.permute.xlu0 %1865
    %1867 = vrot.lane.b32.xlu0 %v1458, 60
    %v1868 = vpop.permute.xlu0 %1867
    %1869 = vrot.lane.b32.xlu0 %v1459, 60
    %v1870 = vpop.permute.xlu0 %1869
    %1871 = vrot.lane.b32.xlu0 %v1460, 60
    %v1872 = vpop.permute.xlu0 %1871
    %1873 = vrot.lane.b32.xlu0 %v1461, 60
    %v1874 = vpop.permute.xlu0 %1873
    %1875 = vrot.lane.b32.xlu0 %v1462, 60
    %v1876 = vpop.permute.xlu0 %1875
    %1877 = vrot.lane.b32.xlu0 %v1463, 60
    %v1878 = vpop.permute.xlu0 %1877
    %1879 = vrot.lane.b32.xlu0 %v1464, 60
    %v1880 = vpop.permute.xlu0 %1879
    %1881 = vrot.lane.b32.xlu0 %v1465, 60
    %v1882 = vpop.permute.xlu0 %1881
    %1883 = vrot.lane.b32.xlu0 %v1466, 60
    %v1884 = vpop.permute.xlu0 %1883
    %vm1885 = vcmask 490496
    %v1886 = vsel %vm1885, %v1854, %v1856
    %v1887 = vsel %vm1885, %v1856, %v1858
    %v1888 = vsel %vm1885, %v1858, %v1860
    %v1889 = vsel %vm1885, %v1860, %v1862
    %v1890 = vsel %vm1885, %v1862, %v1864
    %v1891 = vsel %vm1885, %v1864, %v1866
    %v1892 = vsel %vm1885, %v1866, %v1868
    %v1893 = vsel %vm1885, %v1868, %v1870
    %v1894 = vsel %vm1885, %v1870, %v1872
    %v1895 = vsel %vm1885, %v1872, %v1874
    %v1896 = vsel %vm1885, %v1874, %v1876
    %v1897 = vsel %vm1885, %v1876, %v1878
    %v1898 = vsel %vm1885, %v1878, %v1880
    %v1899 = vsel %vm1885, %v1880, %v1882
    %v1900 = vsel %vm1885, %v1882, %v1884
    %1917 = vst [vmem:[#allocation2 + $0x180] sm:$0xc0] %v1886
    %1918 = vst [vmem:[#allocation2 + $0x188] sm:$0xc0] %v1887
    %1919 = vst [vmem:[#allocation2 + $0x190] sm:$0xc0] %v1888
    %1920 = vst [vmem:[#allocation2 + $0x198] sm:$0xc0] %v1889
    %1921 = vst [vmem:[#allocation2 + $0x1a0] sm:$0xc0] %v1890
    %1922 = vst [vmem:[#allocation2 + $0x1a8] sm:$0xc0] %v1891
    %1923 = vst [vmem:[#allocation2 + $0x1b0] sm:$0xc0] %v1892
    %1924 = vst [vmem:[#allocation2 + $0x1b8] sm:$0xc0] %v1893
    %1925 = vst [vmem:[#allocation2 + $0x1c0] sm:$0xc0] %v1894
    %1926 = vst [vmem:[#allocation2 + $0x1c8] sm:$0xc0] %v1895
    %1927 = vst [vmem:[#allocation2 + $0x1d0] sm:$0xc0] %v1896
    %1928 = vst [vmem:[#allocation2 + $0x1d8] sm:$0xc0] %v1897
    %1929 = vst [vmem:[#allocation2 + $0x1e0] sm:$0xc0] %v1898
    %1930 = vst [vmem:[#allocation2 + $0x1e8] sm:$0xc0] %v1899
    %1931 = vst [vmem:[#allocation2 + $0x1f0] sm:$0xc0] %v1900
    %1932 = vst.msk [vmem:[#allocation2 + $0x1f8] sm:$0xc0] %vm1545, %v1884
    %1933 = vst [vmem:[#allocation2 + $0x200] sm:$0xf] %v1886
    %1934 = vst [vmem:[#allocation2 + $0x208] sm:$0xf] %v1887
    %1935 = vst [vmem:[#allocation2 + $0x210] sm:$0xf] %v1888
    %1936 = vst [vmem:[#allocation2 + $0x218] sm:$0xf] %v1889
    %1937 = vst [vmem:[#allocation2 + $0x220] sm:$0xf] %v1890
    %1938 = vst [vmem:[#allocation2 + $0x228] sm:$0xf] %v1891
    %1939 = vst [vmem:[#allocation2 + $0x230] sm:$0xf] %v1892
    %1940 = vst [vmem:[#allocation2 + $0x238] sm:$0xf] %v1893
    %1941 = vst [vmem:[#allocation2 + $0x240] sm:$0xf] %v1894
    %1942 = vst [vmem:[#allocation2 + $0x248] sm:$0xf] %v1895
    %1943 = vst [vmem:[#allocation2 + $0x250] sm:$0xf] %v1896
    %1944 = vst [vmem:[#allocation2 + $0x258] sm:$0xf] %v1897
    %1945 = vst [vmem:[#allocation2 + $0x260] sm:$0xf] %v1898
    %1946 = vst [vmem:[#allocation2 + $0x268] sm:$0xf] %v1899
    %1947 = vst [vmem:[#allocation2 + $0x270] sm:$0xf] %v1900
    %1948 = vst.msk [vmem:[#allocation2 + $0x278] sm:$0xf] %vm1562, %v1884
    %v1950 = vrot.slane %v1417, 4
    %1967 = vst [vmem:[#allocation2 + $0x200] sm:$0xf0] %v1565
    %1968 = vst [vmem:[#allocation2 + $0x208] sm:$0xf0] %v1566
    %1969 = vst [vmem:[#allocation2 + $0x210] sm:$0xf0] %v1567
    %1970 = vst [vmem:[#allocation2 + $0x218] sm:$0xf0] %v1568
    %1971 = vst [vmem:[#allocation2 + $0x220] sm:$0xf0] %v1569
    %1972 = vst [vmem:[#allocation2 + $0x228] sm:$0xf0] %v1570
    %1973 = vst [vmem:[#allocation2 + $0x230] sm:$0xf0] %v1571
    %1974 = vst [vmem:[#allocation2 + $0x238] sm:$0xf0] %v1572
    %1975 = vst [vmem:[#allocation2 + $0x240] sm:$0xf0] %v1573
    %1976 = vst [vmem:[#allocation2 + $0x248] sm:$0xf0] %v1574
    %1977 = vst [vmem:[#allocation2 + $0x250] sm:$0xf0] %v1575
    %1978 = vst [vmem:[#allocation2 + $0x258] sm:$0xf0] %v1576
    %1979 = vst [vmem:[#allocation2 + $0x260] sm:$0xf0] %v1577
    %1980 = vst [vmem:[#allocation2 + $0x268] sm:$0xf0] %v1578
    %1981 = vst [vmem:[#allocation2 + $0x270] sm:$0xf0] %v1579
    %1982 = vst.msk [vmem:[#allocation2 + $0x278] sm:$0xf0] %vm1659, %v1950
    %1983 = vst [vmem:[#allocation2 + $0x280] sm:$0x3] %v1565
    %1984 = vst [vmem:[#allocation2 + $0x288] sm:$0x3] %v1566
    %1985 = vst [vmem:[#allocation2 + $0x290] sm:$0x3] %v1567
    %1986 = vst [vmem:[#allocation2 + $0x298] sm:$0x3] %v1568
    %1987 = vst [vmem:[#allocation2 + $0x2a0] sm:$0x3] %v1569
    %1988 = vst [vmem:[#allocation2 + $0x2a8] sm:$0x3] %v1570
    %1989 = vst [vmem:[#allocation2 + $0x2b0] sm:$0x3] %v1571
    %1990 = vst [vmem:[#allocation2 + $0x2b8] sm:$0x3] %v1572
    %1991 = vst [vmem:[#allocation2 + $0x2c0] sm:$0x3] %v1573
    %1992 = vst [vmem:[#allocation2 + $0x2c8] sm:$0x3] %v1574
    %1993 = vst [vmem:[#allocation2 + $0x2d0] sm:$0x3] %v1575
    %1994 = vst [vmem:[#allocation2 + $0x2d8] sm:$0x3] %v1576
    %1995 = vst [vmem:[#allocation2 + $0x2e0] sm:$0x3] %v1577
    %1996 = vst [vmem:[#allocation2 + $0x2e8] sm:$0x3] %v1578
    %1997 = vst [vmem:[#allocation2 + $0x2f0] sm:$0x3] %v1579
    %1998 = vst.msk [vmem:[#allocation2 + $0x2f8] sm:$0x3] %vm1676, %v1950
    %v1999 = vrot.slane %v1417, 6
    %2000 = vrot.lane.b32.xlu0 %v1679, 126
    %v2001 = vpop.permute.xlu0 %2000
    %2002 = vrot.lane.b32.xlu0 %v1680, 126
    %v2003 = vpop.permute.xlu0 %2002
    %2004 = vrot.lane.b32.xlu0 %v1681, 126
    %v2005 = vpop.permute.xlu0 %2004
    %2006 = vrot.lane.b32.xlu0 %v1682, 126
    %v2007 = vpop.permute.xlu0 %2006
    %2008 = vrot.lane.b32.xlu0 %v1683, 126
    %v2009 = vpop.permute.xlu0 %2008
    %2010 = vrot.lane.b32.xlu0 %v1684, 126
    %v2011 = vpop.permute.xlu0 %2010
    %2012 = vrot.lane.b32.xlu0 %v1685, 126
    %v2013 = vpop.permute.xlu0 %2012
    %2014 = vrot.lane.b32.xlu0 %v1686, 126
    %v2015 = vpop.permute.xlu0 %2014
    %2016 = vrot.lane.b32.xlu0 %v1687, 126
    %v2017 = vpop.permute.xlu0 %2016
    %2018 = vrot.lane.b32.xlu0 %v1688, 126
    %v2019 = vpop.permute.xlu0 %2018
    %2020 = vrot.lane.b32.xlu0 %v1689, 126
    %v2021 = vpop.permute.xlu0 %2020
    %2022 = vrot.lane.b32.xlu0 %v1690, 126
    %v2023 = vpop.permute.xlu0 %2022
    %2024 = vrot.lane.b32.xlu0 %v1691, 126
    %v2025 = vpop.permute.xlu0 %2024
    %2026 = vrot.lane.b32.xlu0 %v1692, 126
    %v2027 = vpop.permute.xlu0 %2026
    %2028 = vrot.lane.b32.xlu0 %v1693, 126
    %v2029 = vpop.permute.xlu0 %2028
    %2030 = vrot.lane.b32.xlu0 %v1999, 126
    %v2031 = vpop.permute.xlu0 %2030
    %v2032 = vsel %vm389, %v2001, %v2003
    %v2033 = vsel %vm389, %v2003, %v2005
    %v2034 = vsel %vm389, %v2005, %v2007
    %v2035 = vsel %vm389, %v2007, %v2009
    %v2036 = vsel %vm389, %v2009, %v2011
    %v2037 = vsel %vm389, %v2011, %v2013
    %v2038 = vsel %vm389, %v2013, %v2015
    %v2039 = vsel %vm389, %v2015, %v2017
    %v2040 = vsel %vm389, %v2017, %v2019
    %v2041 = vsel %vm389, %v2019, %v2021
    %v2042 = vsel %vm389, %v2021, %v2023
    %v2043 = vsel %vm389, %v2023, %v2025
    %v2044 = vsel %vm389, %v2025, %v2027
    %v2045 = vsel %vm389, %v2027, %v2029
    %v2046 = vsel %vm389, %v2029, %v2031
    %2063 = vst [vmem:[#allocation2 + $0x280] sm:$0xfc] %v2032
    %2064 = vst [vmem:[#allocation2 + $0x288] sm:$0xfc] %v2033
    %2065 = vst [vmem:[#allocation2 + $0x290] sm:$0xfc] %v2034
    %2066 = vst [vmem:[#allocation2 + $0x298] sm:$0xfc] %v2035
    %2067 = vst [vmem:[#allocation2 + $0x2a0] sm:$0xfc] %v2036
    %2068 = vst [vmem:[#allocation2 + $0x2a8] sm:$0xfc] %v2037
    %2069 = vst [vmem:[#allocation2 + $0x2b0] sm:$0xfc] %v2038
    %2070 = vst [vmem:[#allocation2 + $0x2b8] sm:$0xfc] %v2039
    %2071 = vst [vmem:[#allocation2 + $0x2c0] sm:$0xfc] %v2040
    %2072 = vst [vmem:[#allocation2 + $0x2c8] sm:$0xfc] %v2041
    %2073 = vst [vmem:[#allocation2 + $0x2d0] sm:$0xfc] %v2042
    %2074 = vst [vmem:[#allocation2 + $0x2d8] sm:$0xfc] %v2043
    %2075 = vst [vmem:[#allocation2 + $0x2e0] sm:$0xfc] %v2044
    %2076 = vst [vmem:[#allocation2 + $0x2e8] sm:$0xfc] %v2045
    %2077 = vst [vmem:[#allocation2 + $0x2f0] sm:$0xfc] %v2046
    %2078 = vst.msk [vmem:[#allocation2 + $0x2f8] sm:$0xfc] %vm1772, %v2031
    %2079 = vrot.lane.b32.xlu0 %v1402, 124
    %v2080 = vpop.permute.xlu0 %2079
    %2081 = vrot.lane.b32.xlu0 %v1403, 124
    %v2082 = vpop.permute.xlu0 %2081
    %2083 = vrot.lane.b32.xlu0 %v1404, 124
    %v2084 = vpop.permute.xlu0 %2083
    %2085 = vrot.lane.b32.xlu0 %v1405, 124
    %v2086 = vpop.permute.xlu0 %2085
    %2087 = vrot.lane.b32.xlu0 %v1406, 124
    %v2088 = vpop.permute.xlu0 %2087
    %2089 = vrot.lane.b32.xlu0 %v1407, 124
    %v2090 = vpop.permute.xlu0 %2089
    %2091 = vrot.lane.b32.xlu0 %v1408, 124
    %v2092 = vpop.permute.xlu0 %2091
    %2093 = vrot.lane.b32.xlu0 %v1409, 124
    %v2094 = vpop.permute.xlu0 %2093
    %2095 = vrot.lane.b32.xlu0 %v1410, 124
    %v2096 = vpop.permute.xlu0 %2095
    %2097 = vrot.lane.b32.xlu0 %v1411, 124
    %v2098 = vpop.permute.xlu0 %2097
    %2099 = vrot.lane.b32.xlu0 %v1412, 124
    %v2100 = vpop.permute.xlu0 %2099
    %2101 = vrot.lane.b32.xlu0 %v1413, 124
    %v2102 = vpop.permute.xlu0 %2101
    %2103 = vrot.lane.b32.xlu0 %v1414, 124
    %v2104 = vpop.permute.xlu0 %2103
    %2105 = vrot.lane.b32.xlu0 %v1415, 124
    %v2106 = vpop.permute.xlu0 %2105
    %2107 = vrot.lane.b32.xlu0 %v1416, 124
    %v2108 = vpop.permute.xlu0 %2107
    %2109 = vrot.lane.b32.xlu0 %v1417, 124
    %v2110 = vpop.permute.xlu0 %2109
    %v2111 = vsel %vm1612, %v2080, %v2082
    %v2112 = vsel %vm1612, %v2082, %v2084
    %v2113 = vsel %vm1612, %v2084, %v2086
    %v2114 = vsel %vm1612, %v2086, %v2088
    %v2115 = vsel %vm1612, %v2088, %v2090
    %v2116 = vsel %vm1612, %v2090, %v2092
    %v2117 = vsel %vm1612, %v2092, %v2094
    %v2118 = vsel %vm1612, %v2094, %v2096
    %v2119 = vsel %vm1612, %v2096, %v2098
    %v2120 = vsel %vm1612, %v2098, %v2100
    %v2121 = vsel %vm1612, %v2100, %v2102
    %v2122 = vsel %vm1612, %v2102, %v2104
    %v2123 = vsel %vm1612, %v2104, %v2106
    %v2124 = vsel %vm1612, %v2106, %v2108
    %v2125 = vsel %vm1612, %v2108, %v2110
    %2142 = vst [vmem:[#allocation2 + $0x300] sm:$0x3f] %v2111
    %2143 = vst [vmem:[#allocation2 + $0x308] sm:$0x3f] %v2112
    %2144 = vst [vmem:[#allocation2 + $0x310] sm:$0x3f] %v2113
    %2145 = vst [vmem:[#allocation2 + $0x318] sm:$0x3f] %v2114
    %2146 = vst [vmem:[#allocation2 + $0x320] sm:$0x3f] %v2115
    %2147 = vst [vmem:[#allocation2 + $0x328] sm:$0x3f] %v2116
    %2148 = vst [vmem:[#allocation2 + $0x330] sm:$0x3f] %v2117
    %2149 = vst [vmem:[#allocation2 + $0x338] sm:$0x3f] %v2118
    %2150 = vst [vmem:[#allocation2 + $0x340] sm:$0x3f] %v2119
    %2151 = vst [vmem:[#allocation2 + $0x348] sm:$0x3f] %v2120
    %2152 = vst [vmem:[#allocation2 + $0x350] sm:$0x3f] %v2121
    %2153 = vst [vmem:[#allocation2 + $0x358] sm:$0x3f] %v2122
    %2154 = vst [vmem:[#allocation2 + $0x360] sm:$0x3f] %v2123
    %2155 = vst [vmem:[#allocation2 + $0x368] sm:$0x3f] %v2124
    %2156 = vst [vmem:[#allocation2 + $0x370] sm:$0x3f] %v2125
    %2157 = vst.msk [vmem:[#allocation2 + $0x378] sm:$0x3f] %vm1433, %v2110
    %v2158 = vld [vmem:[#allocation7] sm:$0xff]
    %v2159 = vld [vmem:[#allocation7 + $0x8] sm:$0xff]
    %v2160 = vld [vmem:[#allocation2] sm:$0xff]
    %v2161 = vld [vmem:[#allocation2 + $0x8] sm:$0xff]
    %v2162 = vld [vmem:[#allocation2 + $0x10] sm:$0xff]
    %v2163 = vld [vmem:[#allocation2 + $0x18] sm:$0xff]
    %v2164 = vld [vmem:[#allocation2 + $0x20] sm:$0xff]
    %v2165 = vld [vmem:[#allocation2 + $0x28] sm:$0xff]
    %v2166 = vld [vmem:[#allocation2 + $0x30] sm:$0xff]
    %v2167 = vld [vmem:[#allocation2 + $0x38] sm:$0xff]
    %v2168 = vld [vmem:[#allocation2 + $0x40] sm:$0xff]
    %v2169 = vld [vmem:[#allocation2 + $0x48] sm:$0xff]
    %v2170 = vld [vmem:[#allocation2 + $0x50] sm:$0xff]
    %v2171 = vld [vmem:[#allocation2 + $0x58] sm:$0xff]
    %v2172 = vld [vmem:[#allocation2 + $0x60] sm:$0xff]
    %v2173 = vld [vmem:[#allocation2 + $0x68] sm:$0xff]
    %v2174 = vld [vmem:[#allocation2 + $0x70] sm:$0xff]
    %v2175 = vld [vmem:[#allocation2 + $0x78] sm:$0xff]
    %v2176 = vld [vmem:[#allocation2 + $0x80] sm:$0xff]
    %v2177 = vld [vmem:[#allocation2 + $0x88] sm:$0xff]
    %v2178 = vld [vmem:[#allocation2 + $0x90] sm:$0xff]
    %v2179 = vld [vmem:[#allocation2 + $0x98] sm:$0xff]
    %v2180 = vld [vmem:[#allocation2 + $0xa0] sm:$0xff]
    %v2181 = vld [vmem:[#allocation2 + $0xa8] sm:$0xff]
    %v2182 = vld [vmem:[#allocation2 + $0xb0] sm:$0xff]
    %v2183 = vld [vmem:[#allocation2 + $0xb8] sm:$0xff]
    %v2184 = vld [vmem:[#allocation2 + $0xc0] sm:$0xff]
    %v2185 = vld [vmem:[#allocation2 + $0xc8] sm:$0xff]
    %v2186 = vld [vmem:[#allocation2 + $0xd0] sm:$0xff]
    %v2187 = vld [vmem:[#allocation2 + $0xd8] sm:$0xff]
    %v2188 = vld [vmem:[#allocation2 + $0xe0] sm:$0xff]
    %v2189 = vld [vmem:[#allocation2 + $0xe8] sm:$0xff]
    %v2190 = vld [vmem:[#allocation2 + $0xf0] sm:$0xff]
    %v2191 = vld [vmem:[#allocation2 + $0xf8] sm:$0xff]
    %v2192 = vld [vmem:[#allocation2 + $0x100] sm:$0xff]
    %v2193 = vld [vmem:[#allocation2 + $0x108] sm:$0xff]
    %v2194 = vld [vmem:[#allocation2 + $0x110] sm:$0xff]
    %v2195 = vld [vmem:[#allocation2 + $0x118] sm:$0xff]
    %v2196 = vld [vmem:[#allocation2 + $0x120] sm:$0xff]
    %v2197 = vld [vmem:[#allocation2 + $0x128] sm:$0xff]
    %v2198 = vld [vmem:[#allocation2 + $0x130] sm:$0xff]
    %v2199 = vld [vmem:[#allocation2 + $0x138] sm:$0xff]
    %v2200 = vld [vmem:[#allocation2 + $0x140] sm:$0xff]
    %v2201 = vld [vmem:[#allocation2 + $0x148] sm:$0xff]
    %v2202 = vld [vmem:[#allocation2 + $0x150] sm:$0xff]
    %v2203 = vld [vmem:[#allocation2 + $0x158] sm:$0xff]
    %v2204 = vld [vmem:[#allocation2 + $0x160] sm:$0xff]
    %v2205 = vld [vmem:[#allocation2 + $0x168] sm:$0xff]
    %v2206 = vld [vmem:[#allocation2 + $0x170] sm:$0xff]
    %v2207 = vld [vmem:[#allocation2 + $0x178] sm:$0xff]
    %v2208 = vld [vmem:[#allocation2 + $0x180] sm:$0xff]
    %v2209 = vld [vmem:[#allocation2 + $0x188] sm:$0xff]
    %v2210 = vld [vmem:[#allocation2 + $0x190] sm:$0xff]
    %v2211 = vld [vmem:[#allocation2 + $0x198] sm:$0xff]
    %v2212 = vld [vmem:[#allocation2 + $0x1a0] sm:$0xff]
    %v2213 = vld [vmem:[#allocation2 + $0x1a8] sm:$0xff]
    %v2214 = vld [vmem:[#allocation2 + $0x1b0] sm:$0xff]
    %v2215 = vld [vmem:[#allocation2 + $0x1b8] sm:$0xff]
    %v2216 = vld [vmem:[#allocation2 + $0x1c0] sm:$0xff]
    %v2217 = vld [vmem:[#allocation2 + $0x1c8] sm:$0xff]
    %v2218 = vld [vmem:[#allocation2 + $0x1d0] sm:$0xff]
    %v2219 = vld [vmem:[#allocation2 + $0x1d8] sm:$0xff]
    %v2220 = vld [vmem:[#allocation2 + $0x1e0] sm:$0xff]
    %v2221 = vld [vmem:[#allocation2 + $0x1e8] sm:$0xff]
    %v2222 = vld [vmem:[#allocation2 + $0x1f0] sm:$0xff]
    %v2223 = vld [vmem:[#allocation2 + $0x1f8] sm:$0xff]
    %v2224 = vld [vmem:[#allocation2 + $0x200] sm:$0xff]
    %v2225 = vld [vmem:[#allocation2 + $0x208] sm:$0xff]
    %v2226 = vld [vmem:[#allocation2 + $0x210] sm:$0xff]
    %v2227 = vld [vmem:[#allocation2 + $0x218] sm:$0xff]
    %v2228 = vld [vmem:[#allocation2 + $0x220] sm:$0xff]
    %v2229 = vld [vmem:[#allocation2 + $0x228] sm:$0xff]
    %v2230 = vld [vmem:[#allocation2 + $0x230] sm:$0xff]
    %v2231 = vld [vmem:[#allocation2 + $0x238] sm:$0xff]
    %v2232 = vld [vmem:[#allocation2 + $0x240] sm:$0xff]
    %v2233 = vld [vmem:[#allocation2 + $0x248] sm:$0xff]
    %v2234 = vld [vmem:[#allocation2 + $0x250] sm:$0xff]
    %v2235 = vld [vmem:[#allocation2 + $0x258] sm:$0xff]
    %v2236 = vld [vmem:[#allocation2 + $0x260] sm:$0xff]
    %v2237 = vld [vmem:[#allocation2 + $0x268] sm:$0xff]
    %v2238 = vld [vmem:[#allocation2 + $0x270] sm:$0xff]
    %v2239 = vld [vmem:[#allocation2 + $0x278] sm:$0xff]
    %v2240 = vld [vmem:[#allocation2 + $0x280] sm:$0xff]
    %v2241 = vld [vmem:[#allocation2 + $0x288] sm:$0xff]
    %v2242 = vld [vmem:[#allocation2 + $0x290] sm:$0xff]
    %v2243 = vld [vmem:[#allocation2 + $0x298] sm:$0xff]
    %v2244 = vld [vmem:[#allocation2 + $0x2a0] sm:$0xff]
    %v2245 = vld [vmem:[#allocation2 + $0x2a8] sm:$0xff]
    %v2246 = vld [vmem:[#allocation2 + $0x2b0] sm:$0xff]
    %v2247 = vld [vmem:[#allocation2 + $0x2b8] sm:$0xff]
    %v2248 = vld [vmem:[#allocation2 + $0x2c0] sm:$0xff]
    %v2249 = vld [vmem:[#allocation2 + $0x2c8] sm:$0xff]
    %v2250 = vld [vmem:[#allocation2 + $0x2d0] sm:$0xff]
    %v2251 = vld [vmem:[#allocation2 + $0x2d8] sm:$0xff]
    %v2252 = vld [vmem:[#allocation2 + $0x2e0] sm:$0xff]
    %v2253 = vld [vmem:[#allocation2 + $0x2e8] sm:$0xff]
    %v2254 = vld [vmem:[#allocation2 + $0x2f0] sm:$0xff]
    %v2255 = vld [vmem:[#allocation2 + $0x2f8] sm:$0xff]
    %v2256 = vld [vmem:[#allocation2 + $0x300] sm:$0x3f]
    %v2257 = vld [vmem:[#allocation2 + $0x308] sm:$0x3f]
    %v2258 = vld [vmem:[#allocation2 + $0x310] sm:$0x3f]
    %v2259 = vld [vmem:[#allocation2 + $0x318] sm:$0x3f]
    %v2260 = vld [vmem:[#allocation2 + $0x320] sm:$0x3f]
    %v2261 = vld [vmem:[#allocation2 + $0x328] sm:$0x3f]
    %v2262 = vld [vmem:[#allocation2 + $0x330] sm:$0x3f]
    %v2263 = vld [vmem:[#allocation2 + $0x338] sm:$0x3f]
    %v2264 = vld [vmem:[#allocation2 + $0x340] sm:$0x3f]
    %v2265 = vld [vmem:[#allocation2 + $0x348] sm:$0x3f]
    %v2266 = vld [vmem:[#allocation2 + $0x350] sm:$0x3f]
    %v2267 = vld [vmem:[#allocation2 + $0x358] sm:$0x3f]
    %v2268 = vld [vmem:[#allocation2 + $0x360] sm:$0x3f]
    %v2269 = vld [vmem:[#allocation2 + $0x368] sm:$0x3f]
    %v2270 = vld [vmem:[#allocation2 + $0x370] sm:$0x3f]
    %v2271 = vld [vmem:[#allocation2 + $0x378] sm:$0x3f]
    %2273 = vset.pattern.permute.xlu0 54
    %2274 = vperm.xlu0 %2273, %v2158
    %v2275 = vpop.permute.xlu0 %2274
    %2278 = vset.pattern.permute.xlu0 54
    %2279 = vperm.xlu0 %2278, %v2159
    %v2280 = vpop.permute.xlu0 %2279
    %vm2282 = vcmask 441344
    %v2283 = vsel %vm2282, %v2158, 0
    %v2285 = vsel %vm2282, %v2159, 0
    %vm2287 = vcmask 1045504
    %v2289 = vsel %vm2287, %v2256, 0
    %v2292 = vsel %vm2287, %v2257, 0
    %v2295 = vsel %vm2287, %v2258, 0
    %v2298 = vsel %vm2287, %v2259, 0
    %v2301 = vsel %vm2287, %v2260, 0
    %v2304 = vsel %vm2287, %v2261, 0
    %v2307 = vsel %vm2287, %v2262, 0
    %v2310 = vsel %vm2287, %v2263, 0
    %v2313 = vsel %vm2287, %v2264, 0
    %v2316 = vsel %vm2287, %v2265, 0
    %v2319 = vsel %vm2287, %v2266, 0
    %v2322 = vsel %vm2287, %v2267, 0
    %v2325 = vsel %vm2287, %v2268, 0
    %v2328 = vsel %vm2287, %v2269, 0
    %v2331 = vsel %vm2287, %v2270, 0
    %v2334 = vsel %vm2287, %v2271, 0
    %2336 = vmatprep.subr.mxu0 0.0
    %2337 = vmatpush1.msra.mxu0 0.0
    %2338 = vmatprep.subr.mxu0 0.0
    %2339 = vmatpush1.msra.mxu0 0.0
    %2340 = vmatprep.subr.mxu0 0.0
    %2341 = vmatpush1.msra.mxu0 0.0
    %2342 = vmatprep.subr.mxu0 0.0
    %2343 = vmatpush1.msra.mxu0 0.0
    %2344 = vmatprep.subr.mxu0 0.0
    %2345 = vmatpush1.msra.mxu0 0.0
    %2346 = vmatprep.subr.mxu0 0.0
    %2347 = vmatpush1.msra.mxu0 0.0
    %2348 = vmatprep.subr.mxu0 0.0
    %2349 = vmatpush1.msra.mxu0 0.0
    %2350 = vmatprep.subr.mxu0 0.0
    %2351 = vmatpush1.msra.mxu0 0.0
    %2352 = vmatprep.subr.mxu0 0.0
    %2353 = vmatpush1.msra.mxu0 0.0
    %2354 = vmatprep.subr.mxu0 %v2292
    %2355 = vmatpush1.msra.mxu0 %v2289
    %2356 = vmatprep.subr.mxu0 %v2241
    %2357 = vmatpush1.msra.mxu0 %v2240
    %2358 = vmatprep.subr.mxu0 %v2225
    %2359 = vmatpush1.msra.mxu0 %v2224
    %2360 = vmatprep.subr.mxu0 %v2209
    %2361 = vmatpush1.msra.mxu0 %v2208
    %2362 = vmatprep.subr.mxu0 %v2193
    %2363 = vmatpush1.msra.mxu0 %v2192
    %2364 = vmatprep.subr.mxu0 %v2177
    %2365 = vmatpush1.msra.mxu0 %v2176
    %2366 = vmatprep.subr.mxu0 %v2161
    %2367 = vmatpush1.msra.mxu0 %v2160
    %2368 = vmatprep.subr.mxu0 0.0
    %2369 = vmatpush2.msra.mxu0 0.0
    %2370 = vmatprep.subr.mxu0 0.0
    %2371 = vmatpush2.msra.mxu0 0.0
    %2372 = vmatprep.subr.mxu0 0.0
    %2373 = vmatpush2.msra.mxu0 0.0
    %2374 = vmatprep.subr.mxu0 0.0
    %2375 = vmatpush2.msra.mxu0 0.0
    %2376 = vmatprep.subr.mxu0 0.0
    %2377 = vmatpush2.msra.mxu0 0.0
    %2378 = vmatprep.subr.mxu0 0.0
    %2379 = vmatpush2.msra.mxu0 0.0
    %2380 = vmatprep.subr.mxu0 0.0
    %2381 = vmatpush2.msra.mxu0 0.0
    %2382 = vmatprep.subr.mxu0 0.0
    %2383 = vmatpush2.msra.mxu0 0.0
    %2384 = vmatprep.subr.mxu0 0.0
    %2385 = vmatpush2.msra.mxu0 0.0
    %2386 = vmatprep.subr.mxu0 0.0
    %2387 = vmatpush2.msra.mxu0 0.0
    %2388 = vmatprep.subr.mxu0 0.0
    %2389 = vmatpush2.msra.mxu0 0.0
    %2390 = vmatprep.subr.mxu0 0.0
    %2391 = vmatpush2.msra.mxu0 0.0
    %2392 = vmatprep.subr.mxu0 0.0
    %2393 = vmatpush2.msra.mxu0 0.0
    %2394 = vmatprep.subr.mxu0 0.0
    %2395 = vmatpush2.msra.mxu0 0.0
    %2396 = vmatprep.subr.mxu0 0.0
    %2397 = vmatpush2.msra.mxu0 0.0
    %2398 = vmatprep.subr.mxu0 0.0
    %2399 = vmatpush2.msra.mxu0 0.0
    %2400 = vmatprep.mubr.f32.mxu0 0.0
    %2401 = vmatmul.mubr.f32.gmra.mxu0 %v2283
    %v2402 = vpop.f32.mrf.mxu0
    %v2403 = vadd.f32 %v2275, %v2402
    %v2404 = vpop.f32.mrf.mxu0
    %v2405 = vadd.f32 %v2275, %v2404
    %2406 = vmatprep.mubr.f32.mxu0 0.0
    %2407 = vmatmul.mubr.f32.gmra.mxu0 %v2285
    %v2408 = vpop.f32.mrf.mxu0
    %v2409 = vadd.f32 %v2280, %v2408
    %v2410 = vpop.f32.mrf.mxu0
    %v2411 = vadd.f32 %v2280, %v2410
    %2412 = vdwg.mxu0
    %2413 = vmatprep.subr.mxu0 0.0
    %2414 = vmatpush1.msra.mxu0 0.0
    %2415 = vmatprep.subr.mxu0 0.0
    %2416 = vmatpush1.msra.mxu0 0.0
    %2417 = vmatprep.subr.mxu0 0.0
    %2418 = vmatpush1.msra.mxu0 0.0
    %2419 = vmatprep.subr.mxu0 0.0
    %2420 = vmatpush1.msra.mxu0 0.0
    %2421 = vmatprep.subr.mxu0 0.0
    %2422 = vmatpush1.msra.mxu0 0.0
    %2423 = vmatprep.subr.mxu0 0.0
    %2424 = vmatpush1.msra.mxu0 0.0
    %2425 = vmatprep.subr.mxu0 0.0
    %2426 = vmatpush1.msra.mxu0 0.0
    %2427 = vmatprep.subr.mxu0 0.0
    %2428 = vmatpush1.msra.mxu0 0.0
    %2429 = vmatprep.subr.mxu0 0.0
    %2430 = vmatpush1.msra.mxu0 0.0
    %2431 = vmatprep.subr.mxu0 %v2298
    %2432 = vmatpush1.msra.mxu0 %v2295
    %2433 = vmatprep.subr.mxu0 %v2243
    %2434 = vmatpush1.msra.mxu0 %v2242
    %2435 = vmatprep.subr.mxu0 %v2227
    %2436 = vmatpush1.msra.mxu0 %v2226
    %2437 = vmatprep.subr.mxu0 %v2211
    %2438 = vmatpush1.msra.mxu0 %v2210
    %2439 = vmatprep.subr.mxu0 %v2195
    %2440 = vmatpush1.msra.mxu0 %v2194
    %2441 = vmatprep.subr.mxu0 %v2179
    %2442 = vmatpush1.msra.mxu0 %v2178
    %2443 = vmatprep.subr.mxu0 %v2163
    %2444 = vmatpush1.msra.mxu0 %v2162
    %2445 = vmatprep.subr.mxu0 0.0
    %2446 = vmatpush2.msra.mxu0 0.0
    %2447 = vmatprep.subr.mxu0 0.0
    %2448 = vmatpush2.msra.mxu0 0.0
    %2449 = vmatprep.subr.mxu0 0.0
    %2450 = vmatpush2.msra.mxu0 0.0
    %2451 = vmatprep.subr.mxu0 0.0
    %2452 = vmatpush2.msra.mxu0 0.0
    %2453 = vmatprep.subr.mxu0 0.0
    %2454 = vmatpush2.msra.mxu0 0.0
    %2455 = vmatprep.subr.mxu0 0.0
    %2456 = vmatpush2.msra.mxu0 0.0
    %2457 = vmatprep.subr.mxu0 0.0
    %2458 = vmatpush2.msra.mxu0 0.0
    %2459 = vmatprep.subr.mxu0 0.0
    %2460 = vmatpush2.msra.mxu0 0.0
    %2461 = vmatprep.subr.mxu0 0.0
    %2462 = vmatpush2.msra.mxu0 0.0
    %2463 = vmatprep.subr.mxu0 0.0
    %2464 = vmatpush2.msra.mxu0 0.0
    %2465 = vmatprep.subr.mxu0 0.0
    %2466 = vmatpush2.msra.mxu0 0.0
    %2467 = vmatprep.subr.mxu0 0.0
    %2468 = vmatpush2.msra.mxu0 0.0
    %2469 = vmatprep.subr.mxu0 0.0
    %2470 = vmatpush2.msra.mxu0 0.0
    %2471 = vmatprep.subr.mxu0 0.0
    %2472 = vmatpush2.msra.mxu0 0.0
    %2473 = vmatprep.subr.mxu0 0.0
    %2474 = vmatpush2.msra.mxu0 0.0
    %2475 = vmatprep.subr.mxu0 0.0
    %2476 = vmatpush2.msra.mxu0 0.0
    %2477 = vmatprep.mubr.f32.mxu0 0.0
    %2478 = vmatmul.mubr.f32.gmra.mxu0 %v2283
    %v2479 = vpop.f32.mrf.mxu0
    %v2480 = vadd.f32 %v2275, %v2479
    %v2481 = vpop.f32.mrf.mxu0
    %v2482 = vadd.f32 %v2275, %v2481
    %2483 = vmatprep.mubr.f32.mxu0 0.0
    %2484 = vmatmul.mubr.f32.gmra.mxu0 %v2285
    %v2485 = vpop.f32.mrf.mxu0
    %v2486 = vadd.f32 %v2280, %v2485
    %v2487 = vpop.f32.mrf.mxu0
    %v2488 = vadd.f32 %v2280, %v2487
    %2489 = vdwg.mxu0
    %2490 = vmatprep.subr.mxu0 0.0
    %2491 = vmatpush1.msra.mxu0 0.0
    %2492 = vmatprep.subr.mxu0 0.0
    %2493 = vmatpush1.msra.mxu0 0.0
    %2494 = vmatprep.subr.mxu0 0.0
    %2495 = vmatpush1.msra.mxu0 0.0
    %2496 = vmatprep.subr.mxu0 0.0
    %2497 = vmatpush1.msra.mxu0 0.0
    %2498 = vmatprep.subr.mxu0 0.0
    %2499 = vmatpush1.msra.mxu0 0.0
    %2500 = vmatprep.subr.mxu0 0.0
    %2501 = vmatpush1.msra.mxu0 0.0
    %2502 = vmatprep.subr.mxu0 0.0
    %2503 = vmatpush1.msra.mxu0 0.0
    %2504 = vmatprep.subr.mxu0 0.0
    %2505 = vmatpush1.msra.mxu0 0.0
    %2506 = vmatprep.subr.mxu0 0.0
    %2507 = vmatpush1.msra.mxu0 0.0
    %2508 = vmatprep.subr.mxu0 %v2304
    %2509 = vmatpush1.msra.mxu0 %v2301
    %2510 = vmatprep.subr.mxu0 %v2245
    %2511 = vmatpush1.msra.mxu0 %v2244
    %2512 = vmatprep.subr.mxu0 %v2229
    %2513 = vmatpush1.msra.mxu0 %v2228
    %2514 = vmatprep.subr.mxu0 %v2213
    %2515 = vmatpush1.msra.mxu0 %v2212
    %2516 = vmatprep.subr.mxu0 %v2197
    %2517 = vmatpush1.msra.mxu0 %v2196
    %2518 = vmatprep.subr.mxu0 %v2181
    %2519 = vmatpush1.msra.mxu0 %v2180
    %2520 = vmatprep.subr.mxu0 %v2165
    %2521 = vmatpush1.msra.mxu0 %v2164
    %2522 = vmatprep.subr.mxu0 0.0
    %2523 = vmatpush2.msra.mxu0 0.0
    %2524 = vmatprep.subr.mxu0 0.0
    %2525 = vmatpush2.msra.mxu0 0.0
    %2526 = vmatprep.subr.mxu0 0.0
    %2527 = vmatpush2.msra.mxu0 0.0
    %2528 = vmatprep.subr.mxu0 0.0
    %2529 = vmatpush2.msra.mxu0 0.0
    %2530 = vmatprep.subr.mxu0 0.0
    %2531 = vmatpush2.msra.mxu0 0.0
    %2532 = vmatprep.subr.mxu0 0.0
    %2533 = vmatpush2.msra.mxu0 0.0
    %2534 = vmatprep.subr.mxu0 0.0
    %2535 = vmatpush2.msra.mxu0 0.0
    %2536 = vmatprep.subr.mxu0 0.0
    %2537 = vmatpush2.msra.mxu0 0.0
    %2538 = vmatprep.subr.mxu0 0.0
    %2539 = vmatpush2.msra.mxu0 0.0
    %2540 = vmatprep.subr.mxu0 0.0
    %2541 = vmatpush2.msra.mxu0 0.0
    %2542 = vmatprep.subr.mxu0 0.0
    %2543 = vmatpush2.msra.mxu0 0.0
    %2544 = vmatprep.subr.mxu0 0.0
    %2545 = vmatpush2.msra.mxu0 0.0
    %2546 = vmatprep.subr.mxu0 0.0
    %2547 = vmatpush2.msra.mxu0 0.0
    %2548 = vmatprep.subr.mxu0 0.0
    %2549 = vmatpush2.msra.mxu0 0.0
    %2550 = vmatprep.subr.mxu0 0.0
    %2551 = vmatpush2.msra.mxu0 0.0
    %2552 = vmatprep.subr.mxu0 0.0
    %2553 = vmatpush2.msra.mxu0 0.0
    %2554 = vmatprep.mubr.f32.mxu0 0.0
    %2555 = vmatmul.mubr.f32.gmra.mxu0 %v2283
    %v2556 = vpop.f32.mrf.mxu0
    %v2557 = vadd.f32 %v2275, %v2556
    %v2558 = vpop.f32.mrf.mxu0
    %v2559 = vadd.f32 %v2275, %v2558
    %2560 = vmatprep.mubr.f32.mxu0 0.0
    %2561 = vmatmul.mubr.f32.gmra.mxu0 %v2285
    %v2562 = vpop.f32.mrf.mxu0
    %v2563 = vadd.f32 %v2280, %v2562
    %v2564 = vpop.f32.mrf.mxu0
    %v2565 = vadd.f32 %v2280, %v2564
    %2566 = vdwg.mxu0
    %2567 = vmatprep.subr.mxu0 0.0
    %2568 = vmatpush1.msra.mxu0 0.0
    %2569 = vmatprep.subr.mxu0 0.0
    %2570 = vmatpush1.msra.mxu0 0.0
    %2571 = vmatprep.subr.mxu0 0.0
    %2572 = vmatpush1.msra.mxu0 0.0
    %2573 = vmatprep.subr.mxu0 0.0
    %2574 = vmatpush1.msra.mxu0 0.0
    %2575 = vmatprep.subr.mxu0 0.0
    %2576 = vmatpush1.msra.mxu0 0.0
    %2577 = vmatprep.subr.mxu0 0.0
    %2578 = vmatpush1.msra.mxu0 0.0
    %2579 = vmatprep.subr.mxu0 0.0
    %2580 = vmatpush1.msra.mxu0 0.0
    %2581 = vmatprep.subr.mxu0 0.0
    %2582 = vmatpush1.msra.mxu0 0.0
    %2583 = vmatprep.subr.mxu0 0.0
    %2584 = vmatpush1.msra.mxu0 0.0
    %2585 = vmatprep.subr.mxu0 %v2310
    %2586 = vmatpush1.msra.mxu0 %v2307
    %2587 = vmatprep.subr.mxu0 %v2247
    %2588 = vmatpush1.msra.mxu0 %v2246
    %2589 = vmatprep.subr.mxu0 %v2231
    %2590 = vmatpush1.msra.mxu0 %v2230
    %2591 = vmatprep.subr.mxu0 %v2215
    %2592 = vmatpush1.msra.mxu0 %v2214
    %2593 = vmatprep.subr.mxu0 %v2199
    %2594 = vmatpush1.msra.mxu0 %v2198
    %2595 = vmatprep.subr.mxu0 %v2183
    %2596 = vmatpush1.msra.mxu0 %v2182
    %2597 = vmatprep.subr.mxu0 %v2167
    %2598 = vmatpush1.msra.mxu0 %v2166
    %2599 = vmatprep.subr.mxu0 0.0
    %2600 = vmatpush2.msra.mxu0 0.0
    %2601 = vmatprep.subr.mxu0 0.0
    %2602 = vmatpush2.msra.mxu0 0.0
    %2603 = vmatprep.subr.mxu0 0.0
    %2604 = vmatpush2.msra.mxu0 0.0
    %2605 = vmatprep.subr.mxu0 0.0
    %2606 = vmatpush2.msra.mxu0 0.0
    %2607 = vmatprep.subr.mxu0 0.0
    %2608 = vmatpush2.msra.mxu0 0.0
    %2609 = vmatprep.subr.mxu0 0.0
    %2610 = vmatpush2.msra.mxu0 0.0
    %2611 = vmatprep.subr.mxu0 0.0
    %2612 = vmatpush2.msra.mxu0 0.0
    %2613 = vmatprep.subr.mxu0 0.0
    %2614 = vmatpush2.msra.mxu0 0.0
    %2615 = vmatprep.subr.mxu0 0.0
    %2616 = vmatpush2.msra.mxu0 0.0
    %2617 = vmatprep.subr.mxu0 0.0
    %2618 = vmatpush2.msra.mxu0 0.0
    %2619 = vmatprep.subr.mxu0 0.0
    %2620 = vmatpush2.msra.mxu0 0.0
    %2621 = vmatprep.subr.mxu0 0.0
    %2622 = vmatpush2.msra.mxu0 0.0
    %2623 = vmatprep.subr.mxu0 0.0
    %2624 = vmatpush2.msra.mxu0 0.0
    %2625 = vmatprep.subr.mxu0 0.0
    %2626 = vmatpush2.msra.mxu0 0.0
    %2627 = vmatprep.subr.mxu0 0.0
    %2628 = vmatpush2.msra.mxu0 0.0
    %2629 = vmatprep.subr.mxu0 0.0
    %2630 = vmatpush2.msra.mxu0 0.0
    %2631 = vmatprep.mubr.f32.mxu0 0.0
    %2632 = vmatmul.mubr.f32.gmra.mxu0 %v2283
    %v2633 = vpop.f32.mrf.mxu0
    %v2634 = vadd.f32 %v2275, %v2633
    %v2635 = vpop.f32.mrf.mxu0
    %v2636 = vadd.f32 %v2275, %v2635
    %2637 = vmatprep.mubr.f32.mxu0 0.0
    %2638 = vmatmul.mubr.f32.gmra.mxu0 %v2285
    %v2639 = vpop.f32.mrf.mxu0
    %v2640 = vadd.f32 %v2280, %v2639
    %v2641 = vpop.f32.mrf.mxu0
    %v2642 = vadd.f32 %v2280, %v2641
    %2643 = vdwg.mxu0
    %2644 = vmatprep.subr.mxu0 0.0
    %2645 = vmatpush1.msra.mxu0 0.0
    %2646 = vmatprep.subr.mxu0 0.0
    %2647 = vmatpush1.msra.mxu0 0.0
    %2648 = vmatprep.subr.mxu0 0.0
    %2649 = vmatpush1.msra.mxu0 0.0
    %2650 = vmatprep.subr.mxu0 0.0
    %2651 = vmatpush1.msra.mxu0 0.0
    %2652 = vmatprep.subr.mxu0 0.0
    %2653 = vmatpush1.msra.mxu0 0.0
    %2654 = vmatprep.subr.mxu0 0.0
    %2655 = vmatpush1.msra.mxu0 0.0
    %2656 = vmatprep.subr.mxu0 0.0
    %2657 = vmatpush1.msra.mxu0 0.0
    %2658 = vmatprep.subr.mxu0 0.0
    %2659 = vmatpush1.msra.mxu0 0.0
    %2660 = vmatprep.subr.mxu0 0.0
    %2661 = vmatpush1.msra.mxu0 0.0
    %2662 = vmatprep.subr.mxu0 %v2316
    %2663 = vmatpush1.msra.mxu0 %v2313
    %2664 = vmatprep.subr.mxu0 %v2249
    %2665 = vmatpush1.msra.mxu0 %v2248
    %2666 = vmatprep.subr.mxu0 %v2233
    %2667 = vmatpush1.msra.mxu0 %v2232
    %2668 = vmatprep.subr.mxu0 %v2217
    %2669 = vmatpush1.msra.mxu0 %v2216
    %2670 = vmatprep.subr.mxu0 %v2201
    %2671 = vmatpush1.msra.mxu0 %v2200
    %2672 = vmatprep.subr.mxu0 %v2185
    %2673 = vmatpush1.msra.mxu0 %v2184
    %2674 = vmatprep.subr.mxu0 %v2169
    %2675 = vmatpush1.msra.mxu0 %v2168
    %2676 = vmatprep.subr.mxu0 0.0
    %2677 = vmatpush2.msra.mxu0 0.0
    %2678 = vmatprep.subr.mxu0 0.0
    %2679 = vmatpush2.msra.mxu0 0.0
    %2680 = vmatprep.subr.mxu0 0.0
    %2681 = vmatpush2.msra.mxu0 0.0
    %2682 = vmatprep.subr.mxu0 0.0
    %2683 = vmatpush2.msra.mxu0 0.0
    %2684 = vmatprep.subr.mxu0 0.0
    %2685 = vmatpush2.msra.mxu0 0.0
    %2686 = vmatprep.subr.mxu0 0.0
    %2687 = vmatpush2.msra.mxu0 0.0
    %2688 = vmatprep.subr.mxu0 0.0
    %2689 = vmatpush2.msra.mxu0 0.0
    %2690 = vmatprep.subr.mxu0 0.0
    %2691 = vmatpush2.msra.mxu0 0.0
    %2692 = vmatprep.subr.mxu0 0.0
    %2693 = vmatpush2.msra.mxu0 0.0
    %2694 = vmatprep.subr.mxu0 0.0
    %2695 = vmatpush2.msra.mxu0 0.0
    %2696 = vmatprep.subr.mxu0 0.0
    %2697 = vmatpush2.msra.mxu0 0.0
    %2698 = vmatprep.subr.mxu0 0.0
    %2699 = vmatpush2.msra.mxu0 0.0
    %2700 = vmatprep.subr.mxu0 0.0
    %2701 = vmatpush2.msra.mxu0 0.0
    %2702 = vmatprep.subr.mxu0 0.0
    %2703 = vmatpush2.msra.mxu0 0.0
    %2704 = vmatprep.subr.mxu0 0.0
    %2705 = vmatpush2.msra.mxu0 0.0
    %2706 = vmatprep.subr.mxu0 0.0
    %2707 = vmatpush2.msra.mxu0 0.0
    %2708 = vmatprep.mubr.f32.mxu0 0.0
    %2709 = vmatmul.mubr.f32.gmra.mxu0 %v2283
    %v2710 = vpop.f32.mrf.mxu0
    %v2711 = vadd.f32 %v2275, %v2710
    %v2712 = vpop.f32.mrf.mxu0
    %v2713 = vadd.f32 %v2275, %v2712
    %2714 = vmatprep.mubr.f32.mxu0 0.0
    %2715 = vmatmul.mubr.f32.gmra.mxu0 %v2285
    %v2716 = vpop.f32.mrf.mxu0
    %v2717 = vadd.f32 %v2280, %v2716
    %v2718 = vpop.f32.mrf.mxu0
    %v2719 = vadd.f32 %v2280, %v2718
    %2720 = vdwg.mxu0
    %2721 = vmatprep.subr.mxu0 0.0
    %2722 = vmatpush1.msra.mxu0 0.0
    %2723 = vmatprep.subr.mxu0 0.0
    %2724 = vmatpush1.msra.mxu0 0.0
    %2725 = vmatprep.subr.mxu0 0.0
    %2726 = vmatpush1.msra.mxu0 0.0
    %2727 = vmatprep.subr.mxu0 0.0
    %2728 = vmatpush1.msra.mxu0 0.0
    %2729 = vmatprep.subr.mxu0 0.0
    %2730 = vmatpush1.msra.mxu0 0.0
    %2731 = vmatprep.subr.mxu0 0.0
    %2732 = vmatpush1.msra.mxu0 0.0
    %2733 = vmatprep.subr.mxu0 0.0
    %2734 = vmatpush1.msra.mxu0 0.0
    %2735 = vmatprep.subr.mxu0 0.0
    %2736 = vmatpush1.msra.mxu0 0.0
    %2737 = vmatprep.subr.mxu0 0.0
    %2738 = vmatpush1.msra.mxu0 0.0
    %2739 = vmatprep.subr.mxu0 %v2322
    %2740 = vmatpush1.msra.mxu0 %v2319
    %2741 = vmatprep.subr.mxu0 %v2251
    %2742 = vmatpush1.msra.mxu0 %v2250
    %2743 = vmatprep.subr.mxu0 %v2235
    %2744 = vmatpush1.msra.mxu0 %v2234
    %2745 = vmatprep.subr.mxu0 %v2219
    %2746 = vmatpush1.msra.mxu0 %v2218
    %2747 = vmatprep.subr.mxu0 %v2203
    %2748 = vmatpush1.msra.mxu0 %v2202
    %2749 = vmatprep.subr.mxu0 %v2187
    %2750 = vmatpush1.msra.mxu0 %v2186
    %2751 = vmatprep.subr.mxu0 %v2171
    %2752 = vmatpush1.msra.mxu0 %v2170
    %2753 = vmatprep.subr.mxu0 0.0
    %2754 = vmatpush2.msra.mxu0 0.0
    %2755 = vmatprep.subr.mxu0 0.0
    %2756 = vmatpush2.msra.mxu0 0.0
    %2757 = vmatprep.subr.mxu0 0.0
    %2758 = vmatpush2.msra.mxu0 0.0
    %2759 = vmatprep.subr.mxu0 0.0
    %2760 = vmatpush2.msra.mxu0 0.0
    %2761 = vmatprep.subr.mxu0 0.0
    %2762 = vmatpush2.msra.mxu0 0.0
    %2763 = vmatprep.subr.mxu0 0.0
    %2764 = vmatpush2.msra.mxu0 0.0
    %2765 = vmatprep.subr.mxu0 0.0
    %2766 = vmatpush2.msra.mxu0 0.0
    %2767 = vmatprep.subr.mxu0 0.0
    %2768 = vmatpush2.msra.mxu0 0.0
    %2769 = vmatprep.subr.mxu0 0.0
    %2770 = vmatpush2.msra.mxu0 0.0
    %2771 = vmatprep.subr.mxu0 0.0
    %2772 = vmatpush2.msra.mxu0 0.0
    %2773 = vmatprep.subr.mxu0 0.0
    %2774 = vmatpush2.msra.mxu0 0.0
    %2775 = vmatprep.subr.mxu0 0.0
    %2776 = vmatpush2.msra.mxu0 0.0
    %2777 = vmatprep.subr.mxu0 0.0
    %2778 = vmatpush2.msra.mxu0 0.0
    %2779 = vmatprep.subr.mxu0 0.0
    %2780 = vmatpush2.msra.mxu0 0.0
    %2781 = vmatprep.subr.mxu0 0.0
    %2782 = vmatpush2.msra.mxu0 0.0
    %2783 = vmatprep.subr.mxu0 0.0
    %2784 = vmatpush2.msra.mxu0 0.0
    %2785 = vmatprep.mubr.f32.mxu0 0.0
    %2786 = vmatmul.mubr.f32.gmra.mxu0 %v2283
    %v2787 = vpop.f32.mrf.mxu0
    %v2788 = vadd.f32 %v2275, %v2787
    %v2789 = vpop.f32.mrf.mxu0
    %v2790 = vadd.f32 %v2275, %v2789
    %2791 = vmatprep.mubr.f32.mxu0 0.0
    %2792 = vmatmul.mubr.f32.gmra.mxu0 %v2285
    %v2793 = vpop.f32.mrf.mxu0
    %v2794 = vadd.f32 %v2280, %v2793
    %v2795 = vpop.f32.mrf.mxu0
    %v2796 = vadd.f32 %v2280, %v2795
    %2797 = vdwg.mxu0
    %2798 = vmatprep.subr.mxu0 0.0
    %2799 = vmatpush1.msra.mxu0 0.0
    %2800 = vmatprep.subr.mxu0 0.0
    %2801 = vmatpush1.msra.mxu0 0.0
    %2802 = vmatprep.subr.mxu0 0.0
    %2803 = vmatpush1.msra.mxu0 0.0
    %2804 = vmatprep.subr.mxu0 0.0
    %2805 = vmatpush1.msra.mxu0 0.0
    %2806 = vmatprep.subr.mxu0 0.0
    %2807 = vmatpush1.msra.mxu0 0.0
    %2808 = vmatprep.subr.mxu0 0.0
    %2809 = vmatpush1.msra.mxu0 0.0
    %2810 = vmatprep.subr.mxu0 0.0
    %2811 = vmatpush1.msra.mxu0 0.0
    %2812 = vmatprep.subr.mxu0 0.0
    %2813 = vmatpush1.msra.mxu0 0.0
    %2814 = vmatprep.subr.mxu0 0.0
    %2815 = vmatpush1.msra.mxu0 0.0
    %2816 = vmatprep.subr.mxu0 %v2328
    %2817 = vmatpush1.msra.mxu0 %v2325
    %2818 = vmatprep.subr.mxu0 %v2253
    %2819 = vmatpush1.msra.mxu0 %v2252
    %2820 = vmatprep.subr.mxu0 %v2237
    %2821 = vmatpush1.msra.mxu0 %v2236
    %2822 = vmatprep.subr.mxu0 %v2221
    %2823 = vmatpush1.msra.mxu0 %v2220
    %2824 = vmatprep.subr.mxu0 %v2205
    %2825 = vmatpush1.msra.mxu0 %v2204
    %2826 = vmatprep.subr.mxu0 %v2189
    %2827 = vmatpush1.msra.mxu0 %v2188
    %2828 = vmatprep.subr.mxu0 %v2173
    %2829 = vmatpush1.msra.mxu0 %v2172
    %2830 = vmatprep.subr.mxu0 0.0
    %2831 = vmatpush2.msra.mxu0 0.0
    %2832 = vmatprep.subr.mxu0 0.0
    %2833 = vmatpush2.msra.mxu0 0.0
    %2834 = vmatprep.subr.mxu0 0.0
    %2835 = vmatpush2.msra.mxu0 0.0
    %2836 = vmatprep.subr.mxu0 0.0
    %2837 = vmatpush2.msra.mxu0 0.0
    %2838 = vmatprep.subr.mxu0 0.0
    %2839 = vmatpush2.msra.mxu0 0.0
    %2840 = vmatprep.subr.mxu0 0.0
    %2841 = vmatpush2.msra.mxu0 0.0
    %2842 = vmatprep.subr.mxu0 0.0
    %2843 = vmatpush2.msra.mxu0 0.0
    %2844 = vmatprep.subr.mxu0 0.0
    %2845 = vmatpush2.msra.mxu0 0.0
    %2846 = vmatprep.subr.mxu0 0.0
    %2847 = vmatpush2.msra.mxu0 0.0
    %2848 = vmatprep.subr.mxu0 0.0
    %2849 = vmatpush2.msra.mxu0 0.0
    %2850 = vmatprep.subr.mxu0 0.0
    %2851 = vmatpush2.msra.mxu0 0.0
    %2852 = vmatprep.subr.mxu0 0.0
    %2853 = vmatpush2.msra.mxu0 0.0
    %2854 = vmatprep.subr.mxu0 0.0
    %2855 = vmatpush2.msra.mxu0 0.0
    %2856 = vmatprep.subr.mxu0 0.0
    %2857 = vmatpush2.msra.mxu0 0.0
    %2858 = vmatprep.subr.mxu0 0.0
    %2859 = vmatpush2.msra.mxu0 0.0
    %2860 = vmatprep.subr.mxu0 0.0
    %2861 = vmatpush2.msra.mxu0 0.0
    %2862 = vmatprep.mubr.f32.mxu0 0.0
    %2863 = vmatmul.mubr.f32.gmra.mxu0 %v2283
    %v2864 = vpop.f32.mrf.mxu0
    %v2865 = vadd.f32 %v2275, %v2864
    %v2866 = vpop.f32.mrf.mxu0
    %v2867 = vadd.f32 %v2275, %v2866
    %2868 = vmatprep.mubr.f32.mxu0 0.0
    %2869 = vmatmul.mubr.f32.gmra.mxu0 %v2285
    %v2870 = vpop.f32.mrf.mxu0
    %v2871 = vadd.f32 %v2280, %v2870
    %v2872 = vpop.f32.mrf.mxu0
    %v2873 = vadd.f32 %v2280, %v2872
    %2874 = vdwg.mxu0
    %2875 = vmatprep.subr.mxu0 0.0
    %2876 = vmatpush1.msra.mxu0 0.0
    %2877 = vmatprep.subr.mxu0 0.0
    %2878 = vmatpush1.msra.mxu0 0.0
    %2879 = vmatprep.subr.mxu0 0.0
    %2880 = vmatpush1.msra.mxu0 0.0
    %2881 = vmatprep.subr.mxu0 0.0
    %2882 = vmatpush1.msra.mxu0 0.0
    %2883 = vmatprep.subr.mxu0 0.0
    %2884 = vmatpush1.msra.mxu0 0.0
    %2885 = vmatprep.subr.mxu0 0.0
    %2886 = vmatpush1.msra.mxu0 0.0
    %2887 = vmatprep.subr.mxu0 0.0
    %2888 = vmatpush1.msra.mxu0 0.0
    %2889 = vmatprep.subr.mxu0 0.0
    %2890 = vmatpush1.msra.mxu0 0.0
    %2891 = vmatprep.subr.mxu0 0.0
    %2892 = vmatpush1.msra.mxu0 0.0
    %2893 = vmatprep.subr.mxu0 %v2334
    %2894 = vmatpush1.msra.mxu0 %v2331
    %2895 = vmatprep.subr.mxu0 %v2255
    %2896 = vmatpush1.msra.mxu0 %v2254
    %2897 = vmatprep.subr.mxu0 %v2239
    %2898 = vmatpush1.msra.mxu0 %v2238
    %2899 = vmatprep.subr.mxu0 %v2223
    %2900 = vmatpush1.msra.mxu0 %v2222
    %2901 = vmatprep.subr.mxu0 %v2207
    %2902 = vmatpush1.msra.mxu0 %v2206
    %2903 = vmatprep.subr.mxu0 %v2191
    %2904 = vmatpush1.msra.mxu0 %v2190
    %2905 = vmatprep.subr.mxu0 %v2175
    %2906 = vmatpush1.msra.mxu0 %v2174
    %2907 = vmatprep.subr.mxu0 0.0
    %2908 = vmatpush2.msra.mxu0 0.0
    %2909 = vmatprep.subr.mxu0 0.0
    %2910 = vmatpush2.msra.mxu0 0.0
    %2911 = vmatprep.subr.mxu0 0.0
    %2912 = vmatpush2.msra.mxu0 0.0
    %2913 = vmatprep.subr.mxu0 0.0
    %2914 = vmatpush2.msra.mxu0 0.0
    %2915 = vmatprep.subr.mxu0 0.0
    %2916 = vmatpush2.msra.mxu0 0.0
    %2917 = vmatprep.subr.mxu0 0.0
    %2918 = vmatpush2.msra.mxu0 0.0
    %2919 = vmatprep.subr.mxu0 0.0
    %2920 = vmatpush2.msra.mxu0 0.0
    %2921 = vmatprep.subr.mxu0 0.0
    %2922 = vmatpush2.msra.mxu0 0.0
    %2923 = vmatprep.subr.mxu0 0.0
    %2924 = vmatpush2.msra.mxu0 0.0
    %2925 = vmatprep.subr.mxu0 0.0
    %2926 = vmatpush2.msra.mxu0 0.0
    %2927 = vmatprep.subr.mxu0 0.0
    %2928 = vmatpush2.msra.mxu0 0.0
    %2929 = vmatprep.subr.mxu0 0.0
    %2930 = vmatpush2.msra.mxu0 0.0
    %2931 = vmatprep.subr.mxu0 0.0
    %2932 = vmatpush2.msra.mxu0 0.0
    %2933 = vmatprep.subr.mxu0 0.0
    %2934 = vmatpush2.msra.mxu0 0.0
    %2935 = vmatprep.subr.mxu0 0.0
    %2936 = vmatpush2.msra.mxu0 0.0
    %2937 = vmatprep.subr.mxu0 0.0
    %2938 = vmatpush2.msra.mxu0 0.0
    %2939 = vmatprep.mubr.f32.mxu0 0.0
    %2940 = vmatmul.mubr.f32.gmra.mxu0 %v2283
    %v2941 = vpop.f32.mrf.mxu0
    %v2942 = vadd.f32 %v2275, %v2941
    %v2943 = vpop.f32.mrf.mxu0
    %v2944 = vadd.f32 %v2275, %v2943
    %2945 = vmatprep.mubr.f32.mxu0 0.0
    %2946 = vmatmul.mubr.f32.gmra.mxu0 %v2285
    %v2947 = vpop.f32.mrf.mxu0
    %v2948 = vadd.f32 %v2280, %v2947
    %v2949 = vpop.f32.mrf.mxu0
    %v2950 = vadd.f32 %v2280, %v2949
    %2951 = vdwg.mxu0
    %v2952 = vmax.f32 %v2403, 0.0
    %v2953 = vmax.f32 %v2405, 0.0
    %v2954 = vmax.f32 %v2480, 0.0
    %v2955 = vmax.f32 %v2482, 0.0
    %v2956 = vmax.f32 %v2557, 0.0
    %v2957 = vmax.f32 %v2559, 0.0
    %v2958 = vmax.f32 %v2634, 0.0
    %v2959 = vmax.f32 %v2636, 0.0
    %v2960 = vmax.f32 %v2711, 0.0
    %v2961 = vmax.f32 %v2713, 0.0
    %v2962 = vmax.f32 %v2788, 0.0
    %v2963 = vmax.f32 %v2790, 0.0
    %v2964 = vmax.f32 %v2865, 0.0
    %v2965 = vmax.f32 %v2867, 0.0
    %v2966 = vmax.f32 %v2942, 0.0
    %v2967 = vmax.f32 %v2944, 0.0
    %v2968 = vmax.f32 %v2409, 0.0
    %v2969 = vmax.f32 %v2411, 0.0
    %v2970 = vmax.f32 %v2486, 0.0
    %v2971 = vmax.f32 %v2488, 0.0
    %v2972 = vmax.f32 %v2563, 0.0
    %v2973 = vmax.f32 %v2565, 0.0
    %v2974 = vmax.f32 %v2640, 0.0
    %v2975 = vmax.f32 %v2642, 0.0
    %v2976 = vmax.f32 %v2717, 0.0
    %v2977 = vmax.f32 %v2719, 0.0
    %v2978 = vmax.f32 %v2794, 0.0
    %v2979 = vmax.f32 %v2796, 0.0
    %v2980 = vmax.f32 %v2871, 0.0
    %v2981 = vmax.f32 %v2873, 0.0
    %v2982 = vmax.f32 %v2948, 0.0
    %v2983 = vmax.f32 %v2950, 0.0
    %3012 = vrot.lane.b32.xlu0 %v2952, 126
    %v3013 = vpop.permute.xlu0 %3012
    %3014 = vrot.lane.b32.xlu0 %v2953, 126
    %v3015 = vpop.permute.xlu0 %3014
    %3016 = vrot.lane.b32.xlu0 %v2954, 126
    %v3017 = vpop.permute.xlu0 %3016
    %3018 = vrot.lane.b32.xlu0 %v2955, 126
    %v3019 = vpop.permute.xlu0 %3018
    %3020 = vrot.lane.b32.xlu0 %v2956, 126
    %v3021 = vpop.permute.xlu0 %3020
    %3022 = vrot.lane.b32.xlu0 %v2957, 126
    %v3023 = vpop.permute.xlu0 %3022
    %3024 = vrot.lane.b32.xlu0 %v2958, 126
    %v3025 = vpop.permute.xlu0 %3024
    %3026 = vrot.lane.b32.xlu0 %v2960, 126
    %v3027 = vpop.permute.xlu0 %3026
    %3028 = vrot.lane.b32.xlu0 %v2961, 126
    %v3029 = vpop.permute.xlu0 %3028
    %3030 = vrot.lane.b32.xlu0 %v2962, 126
    %v3031 = vpop.permute.xlu0 %3030
    %3032 = vrot.lane.b32.xlu0 %v2963, 126
    %v3033 = vpop.permute.xlu0 %3032
    %3034 = vrot.lane.b32.xlu0 %v2964, 126
    %v3035 = vpop.permute.xlu0 %3034
    %3036 = vrot.lane.b32.xlu0 %v2965, 126
    %v3037 = vpop.permute.xlu0 %3036
    %3038 = vrot.lane.b32.xlu0 %v2966, 126
    %v3039 = vpop.permute.xlu0 %3038
    %3040 = vrot.lane.b32.xlu0 %v2968, 126
    %v3041 = vpop.permute.xlu0 %3040
    %3042 = vrot.lane.b32.xlu0 %v2969, 126
    %v3043 = vpop.permute.xlu0 %3042
    %3044 = vrot.lane.b32.xlu0 %v2970, 126
    %v3045 = vpop.permute.xlu0 %3044
    %3046 = vrot.lane.b32.xlu0 %v2971, 126
    %v3047 = vpop.permute.xlu0 %3046
    %3048 = vrot.lane.b32.xlu0 %v2972, 126
    %v3049 = vpop.permute.xlu0 %3048
    %3050 = vrot.lane.b32.xlu0 %v2973, 126
    %v3051 = vpop.permute.xlu0 %3050
    %3052 = vrot.lane.b32.xlu0 %v2974, 126
    %v3053 = vpop.permute.xlu0 %3052
    %3054 = vrot.lane.b32.xlu0 %v2976, 126
    %v3055 = vpop.permute.xlu0 %3054
    %3056 = vrot.lane.b32.xlu0 %v2977, 126
    %v3057 = vpop.permute.xlu0 %3056
    %3058 = vrot.lane.b32.xlu0 %v2978, 126
    %v3059 = vpop.permute.xlu0 %3058
    %3060 = vrot.lane.b32.xlu0 %v2979, 126
    %v3061 = vpop.permute.xlu0 %3060
    %3062 = vrot.lane.b32.xlu0 %v2980, 126
    %v3063 = vpop.permute.xlu0 %3062
    %3064 = vrot.lane.b32.xlu0 %v2981, 126
    %v3065 = vpop.permute.xlu0 %3064
    %3066 = vrot.lane.b32.xlu0 %v2982, 126
    %v3067 = vpop.permute.xlu0 %3066
    %v3068 = vsel %vm389, %v3013, %v3015
    %v3069 = vsel %vm389, %v3015, %v3017
    %v3070 = vsel %vm389, %v3017, %v3019
    %v3071 = vsel %vm389, %v3019, %v3021
    %v3072 = vsel %vm389, %v3021, %v3023
    %v3073 = vsel %vm389, %v3023, %v3025
    %v3074 = vsel %vm389, %v3027, %v3029
    %v3075 = vsel %vm389, %v3029, %v3031
    %v3076 = vsel %vm389, %v3031, %v3033
    %v3077 = vsel %vm389, %v3033, %v3035
    %v3078 = vsel %vm389, %v3035, %v3037
    %v3079 = vsel %vm389, %v3037, %v3039
    %v3080 = vsel %vm389, %v3041, %v3043
    %v3081 = vsel %vm389, %v3043, %v3045
    %v3082 = vsel %vm389, %v3045, %v3047
    %v3083 = vsel %vm389, %v3047, %v3049
    %v3084 = vsel %vm389, %v3049, %v3051
    %v3085 = vsel %vm389, %v3051, %v3053
    %v3086 = vsel %vm389, %v3055, %v3057
    %v3087 = vsel %vm389, %v3057, %v3059
    %v3088 = vsel %vm389, %v3059, %v3061
    %v3089 = vsel %vm389, %v3061, %v3063
    %v3090 = vsel %vm389, %v3063, %v3065
    %v3091 = vsel %vm389, %v3065, %v3067
    %v3116 = vmax.f32 %v2952, %v3068
    %v3117 = vmax.f32 %v2953, %v3069
    %v3118 = vmax.f32 %v2954, %v3070
    %v3119 = vmax.f32 %v2955, %v3071
    %v3120 = vmax.f32 %v2956, %v3072
    %v3121 = vmax.f32 %v2957, %v3073
    %v3122 = vmax.f32 %v2960, %v3074
    %v3123 = vmax.f32 %v2961, %v3075
    %v3124 = vmax.f32 %v2962, %v3076
    %v3125 = vmax.f32 %v2963, %v3077
    %v3126 = vmax.f32 %v2964, %v3078
    %v3127 = vmax.f32 %v2965, %v3079
    %v3128 = vmax.f32 %v2968, %v3080
    %v3129 = vmax.f32 %v2969, %v3081
    %v3130 = vmax.f32 %v2970, %v3082
    %v3131 = vmax.f32 %v2971, %v3083
    %v3132 = vmax.f32 %v2972, %v3084
    %v3133 = vmax.f32 %v2973, %v3085
    %v3134 = vmax.f32 %v2976, %v3086
    %v3135 = vmax.f32 %v2977, %v3087
    %v3136 = vmax.f32 %v2978, %v3088
    %v3137 = vmax.f32 %v2979, %v3089
    %v3138 = vmax.f32 %v2980, %v3090
    %v3139 = vmax.f32 %v2981, %v3091
    %3144 = vrot.lane.b32.xlu0 %v2959, 126
    %v3145 = vpop.permute.xlu0 %3144
    %3146 = vrot.lane.b32.xlu0 %v2967, 126
    %v3147 = vpop.permute.xlu0 %3146
    %3148 = vrot.lane.b32.xlu0 %v2975, 126
    %v3149 = vpop.permute.xlu0 %3148
    %3150 = vrot.lane.b32.xlu0 %v2983, 126
    %v3151 = vpop.permute.xlu0 %3150
    %v3152 = vsel %vm389, %v3025, %v3145
    %v3153 = vsel %vm389, %v3039, %v3147
    %v3154 = vsel %vm389, %v3053, %v3149
    %v3155 = vsel %vm389, %v3067, %v3151
    %v3160 = vmax.f32 %v2958, %v3152
    %v3161 = vmax.f32 %v2966, %v3153
    %v3162 = vmax.f32 %v2974, %v3154
    %v3163 = vmax.f32 %v2982, %v3155
    %3192 = vrot.lane.b32.xlu0 %v3116, 64
    %v3193 = vpop.permute.xlu0 %3192
    %3194 = vrot.lane.b32.xlu0 %v3117, 64
    %v3195 = vpop.permute.xlu0 %3194
    %3196 = vrot.lane.b32.xlu0 %v3118, 64
    %v3197 = vpop.permute.xlu0 %3196
    %3198 = vrot.lane.b32.xlu0 %v3119, 64
    %v3199 = vpop.permute.xlu0 %3198
    %3200 = vrot.lane.b32.xlu0 %v3120, 64
    %v3201 = vpop.permute.xlu0 %3200
    %3202 = vrot.lane.b32.xlu0 %v3121, 64
    %v3203 = vpop.permute.xlu0 %3202
    %3204 = vrot.lane.b32.xlu0 %v3160, 64
    %v3205 = vpop.permute.xlu0 %3204
    %3206 = vrot.lane.b32.xlu0 %v3122, 64
    %v3207 = vpop.permute.xlu0 %3206
    %3208 = vrot.lane.b32.xlu0 %v3123, 64
    %v3209 = vpop.permute.xlu0 %3208
    %3210 = vrot.lane.b32.xlu0 %v3124, 64
    %v3211 = vpop.permute.xlu0 %3210
    %3212 = vrot.lane.b32.xlu0 %v3125, 64
    %v3213 = vpop.permute.xlu0 %3212
    %3214 = vrot.lane.b32.xlu0 %v3126, 64
    %v3215 = vpop.permute.xlu0 %3214
    %3216 = vrot.lane.b32.xlu0 %v3127, 64
    %v3217 = vpop.permute.xlu0 %3216
    %3218 = vrot.lane.b32.xlu0 %v3161, 64
    %v3219 = vpop.permute.xlu0 %3218
    %3220 = vrot.lane.b32.xlu0 %v3128, 64
    %v3221 = vpop.permute.xlu0 %3220
    %3222 = vrot.lane.b32.xlu0 %v3129, 64
    %v3223 = vpop.permute.xlu0 %3222
    %3224 = vrot.lane.b32.xlu0 %v3130, 64
    %v3225 = vpop.permute.xlu0 %3224
    %3226 = vrot.lane.b32.xlu0 %v3131, 64
    %v3227 = vpop.permute.xlu0 %3226
    %3228 = vrot.lane.b32.xlu0 %v3132, 64
    %v3229 = vpop.permute.xlu0 %3228
    %3230 = vrot.lane.b32.xlu0 %v3133, 64
    %v3231 = vpop.permute.xlu0 %3230
    %3232 = vrot.lane.b32.xlu0 %v3162, 64
    %v3233 = vpop.permute.xlu0 %3232
    %3234 = vrot.lane.b32.xlu0 %v3134, 64
    %v3235 = vpop.permute.xlu0 %3234
    %3236 = vrot.lane.b32.xlu0 %v3135, 64
    %v3237 = vpop.permute.xlu0 %3236
    %3238 = vrot.lane.b32.xlu0 %v3136, 64
    %v3239 = vpop.permute.xlu0 %3238
    %3240 = vrot.lane.b32.xlu0 %v3137, 64
    %v3241 = vpop.permute.xlu0 %3240
    %3242 = vrot.lane.b32.xlu0 %v3138, 64
    %v3243 = vpop.permute.xlu0 %3242
    %3244 = vrot.lane.b32.xlu0 %v3139, 64
    %v3245 = vpop.permute.xlu0 %3244
    %3246 = vrot.lane.b32.xlu0 %v3163, 64
    %v3247 = vpop.permute.xlu0 %3246
    %v3248 = vsel %vm881, %v3193, %v3195
    %v3249 = vsel %vm881, %v3195, %v3197
    %v3250 = vsel %vm881, %v3197, %v3199
    %v3251 = vsel %vm881, %v3199, %v3201
    %v3252 = vsel %vm881, %v3201, %v3203
    %v3253 = vsel %vm881, %v3203, %v3205
    %v3254 = vsel %vm881, %v3207, %v3209
    %v3255 = vsel %vm881, %v3209, %v3211
    %v3256 = vsel %vm881, %v3211, %v3213
    %v3257 = vsel %vm881, %v3213, %v3215
    %v3258 = vsel %vm881, %v3215, %v3217
    %v3259 = vsel %vm881, %v3217, %v3219
    %v3260 = vsel %vm881, %v3221, %v3223
    %v3261 = vsel %vm881, %v3223, %v3225
    %v3262 = vsel %vm881, %v3225, %v3227
    %v3263 = vsel %vm881, %v3227, %v3229
    %v3264 = vsel %vm881, %v3229, %v3231
    %v3265 = vsel %vm881, %v3231, %v3233
    %v3266 = vsel %vm881, %v3235, %v3237
    %v3267 = vsel %vm881, %v3237, %v3239
    %v3268 = vsel %vm881, %v3239, %v3241
    %v3269 = vsel %vm881, %v3241, %v3243
    %v3270 = vsel %vm881, %v3243, %v3245
    %v3271 = vsel %vm881, %v3245, %v3247
    %v3296 = vmax.f32 %v3116, %v3248
    %v3297 = vmax.f32 %v3117, %v3249
    %v3298 = vmax.f32 %v3118, %v3250
    %v3299 = vmax.f32 %v3119, %v3251
    %v3300 = vmax.f32 %v3120, %v3252
    %v3301 = vmax.f32 %v3121, %v3253
    %v3302 = vmax.f32 %v3122, %v3254
    %v3303 = vmax.f32 %v3123, %v3255
    %v3304 = vmax.f32 %v3124, %v3256
    %v3305 = vmax.f32 %v3125, %v3257
    %v3306 = vmax.f32 %v3126, %v3258
    %v3307 = vmax.f32 %v3127, %v3259
    %v3308 = vmax.f32 %v3128, %v3260
    %v3309 = vmax.f32 %v3129, %v3261
    %v3310 = vmax.f32 %v3130, %v3262
    %v3311 = vmax.f32 %v3131, %v3263
    %v3312 = vmax.f32 %v3132, %v3264
    %v3313 = vmax.f32 %v3133, %v3265
    %v3314 = vmax.f32 %v3134, %v3266
    %v3315 = vmax.f32 %v3135, %v3267
    %v3316 = vmax.f32 %v3136, %v3268
    %v3317 = vmax.f32 %v3137, %v3269
    %v3318 = vmax.f32 %v3138, %v3270
    %v3319 = vmax.f32 %v3139, %v3271
    %v3320 = vld [vmem:[#allocation9] sm:$0xff]
    %v3321 = vld [vmem:[#allocation9 + $0x8] sm:$0xff]
    %v3322 = vld [vmem:[#allocation9 + $0x10] sm:$0xff]
    %v3323 = vld [vmem:[#allocation9 + $0x18] sm:$0xff]
    %v3324 = vld [vmem:[#allocation9 + $0x20] sm:$0xff]
    %v3325 = vld [vmem:[#allocation9 + $0x28] sm:$0xff]
    %v3326 = vld [vmem:[#allocation9 + $0x30] sm:$0xff]
    %v3327 = vld [vmem:[#allocation9 + $0x38] sm:$0xff]
    %v3328 = vld [vmem:[#allocation9 + $0x40] sm:$0xff]
    %v3329 = vld [vmem:[#allocation9 + $0x48] sm:$0xff]
    %v3330 = vld [vmem:[#allocation9 + $0x50] sm:$0xff]
    %v3331 = vld [vmem:[#allocation9 + $0x58] sm:$0xff]
    %v3332 = vld [vmem:[#allocation9 + $0x60] sm:$0xff]
    %v3333 = vld [vmem:[#allocation9 + $0x68] sm:$0xff]
    %v3334 = vld [vmem:[#allocation9 + $0x70] sm:$0xff]
    %v3335 = vld [vmem:[#allocation9 + $0x78] sm:$0xff]
    %v3336 = vld [vmem:[#allocation9 + $0x80] sm:$0xff]
    %v3337 = vld [vmem:[#allocation9 + $0x88] sm:$0xff]
    %v3338 = vld [vmem:[#allocation9 + $0x90] sm:$0xff]
    %v3339 = vld [vmem:[#allocation9 + $0x98] sm:$0xff]
    %v3340 = vld [vmem:[#allocation9 + $0xa0] sm:$0xff]
    %v3341 = vld [vmem:[#allocation9 + $0xa8] sm:$0xff]
    %v3342 = vld [vmem:[#allocation9 + $0xb0] sm:$0xff]
    %v3343 = vld [vmem:[#allocation9 + $0xb8] sm:$0xff]
    %v3344 = vld [vmem:[#allocation9 + $0xc0] sm:$0xff]
    %v3345 = vld [vmem:[#allocation9 + $0xc8] sm:$0xff]
    %v3346 = vld [vmem:[#allocation9 + $0xd0] sm:$0xff]
    %v3347 = vld [vmem:[#allocation9 + $0xd8] sm:$0xff]
    %v3348 = vld [vmem:[#allocation9 + $0xe0] sm:$0xff]
    %v3349 = vld [vmem:[#allocation9 + $0xe8] sm:$0xff]
    %v3350 = vld [vmem:[#allocation9 + $0xf0] sm:$0xff]
    %v3351 = vld [vmem:[#allocation9 + $0xf8] sm:$0xff]
    %v3352 = vld [vmem:[#allocation9 + $0x100] sm:$0xff]
    %v3353 = vld [vmem:[#allocation9 + $0x108] sm:$0xff]
    %v3354 = vld [vmem:[#allocation9 + $0x110] sm:$0xff]
    %v3355 = vld [vmem:[#allocation9 + $0x118] sm:$0xff]
    %v3356 = vld [vmem:[#allocation9 + $0x120] sm:$0xff]
    %v3357 = vld [vmem:[#allocation9 + $0x128] sm:$0xff]
    %v3358 = vld [vmem:[#allocation9 + $0x130] sm:$0xff]
    %v3359 = vld [vmem:[#allocation9 + $0x138] sm:$0xff]
    %v3360 = vld [vmem:[#allocation9 + $0x140] sm:$0xff]
    %v3361 = vld [vmem:[#allocation9 + $0x148] sm:$0xff]
    %v3362 = vld [vmem:[#allocation9 + $0x150] sm:$0xff]
    %v3363 = vld [vmem:[#allocation9 + $0x158] sm:$0xff]
    %v3364 = vld [vmem:[#allocation9 + $0x160] sm:$0xff]
    %v3365 = vld [vmem:[#allocation9 + $0x168] sm:$0xff]
    %v3366 = vld [vmem:[#allocation9 + $0x170] sm:$0xff]
    %v3367 = vld [vmem:[#allocation9 + $0x178] sm:$0xff]
    %v3368 = vld [vmem:[#allocation9 + $0x180] sm:$0xff]
    %v3369 = vld [vmem:[#allocation9 + $0x188] sm:$0xff]
    %v3370 = vld [vmem:[#allocation9 + $0x190] sm:$0xff]
    %v3371 = vld [vmem:[#allocation9 + $0x198] sm:$0xff]
    %v3372 = vld [vmem:[#allocation9 + $0x1a0] sm:$0xff]
    %v3373 = vld [vmem:[#allocation9 + $0x1a8] sm:$0xff]
    %v3374 = vld [vmem:[#allocation9 + $0x1b0] sm:$0xff]
    %v3375 = vld [vmem:[#allocation9 + $0x1b8] sm:$0xff]
    %v3376 = vld [vmem:[#allocation9 + $0x1c0] sm:$0xff]
    %v3377 = vld [vmem:[#allocation9 + $0x1c8] sm:$0xff]
    %v3378 = vld [vmem:[#allocation9 + $0x1d0] sm:$0xff]
    %v3379 = vld [vmem:[#allocation9 + $0x1d8] sm:$0xff]
    %v3380 = vld [vmem:[#allocation9 + $0x1e0] sm:$0xff]
    %v3381 = vld [vmem:[#allocation9 + $0x1e8] sm:$0xff]
    %v3382 = vld [vmem:[#allocation9 + $0x1f0] sm:$0xff]
    %v3383 = vld [vmem:[#allocation9 + $0x1f8] sm:$0xff]
    %v3384 = vld [vmem:[#allocation9 + $0x200] sm:$0xff]
    %v3385 = vld [vmem:[#allocation9 + $0x208] sm:$0xff]
    %v3386 = vld [vmem:[#allocation9 + $0x210] sm:$0xff]
    %v3387 = vld [vmem:[#allocation9 + $0x218] sm:$0xff]
    %v3388 = vld [vmem:[#allocation9 + $0x220] sm:$0xff]
    %v3389 = vld [vmem:[#allocation9 + $0x228] sm:$0xff]
    %v3390 = vld [vmem:[#allocation9 + $0x230] sm:$0xff]
    %v3391 = vld [vmem:[#allocation9 + $0x238] sm:$0xff]
    %v3392 = vld [vmem:[#allocation9 + $0x240] sm:$0xff]
    %v3393 = vld [vmem:[#allocation9 + $0x248] sm:$0xff]
    %v3394 = vld [vmem:[#allocation9 + $0x250] sm:$0xff]
    %v3395 = vld [vmem:[#allocation9 + $0x258] sm:$0xff]
    %v3396 = vld [vmem:[#allocation9 + $0x260] sm:$0xff]
    %v3397 = vld [vmem:[#allocation9 + $0x268] sm:$0xff]
    %v3398 = vld [vmem:[#allocation9 + $0x270] sm:$0xff]
    %v3399 = vld [vmem:[#allocation9 + $0x278] sm:$0xff]
    %v3400 = vld [vmem:[#allocation9 + $0x280] sm:$0xff]
    %v3401 = vld [vmem:[#allocation9 + $0x288] sm:$0xff]
    %v3402 = vld [vmem:[#allocation9 + $0x290] sm:$0xff]
    %v3403 = vld [vmem:[#allocation9 + $0x298] sm:$0xff]
    %v3404 = vld [vmem:[#allocation9 + $0x2a0] sm:$0xff]
    %v3405 = vld [vmem:[#allocation9 + $0x2a8] sm:$0xff]
    %v3406 = vld [vmem:[#allocation9 + $0x2b0] sm:$0xff]
    %v3407 = vld [vmem:[#allocation9 + $0x2b8] sm:$0xff]
    %v3408 = vld [vmem:[#allocation9 + $0x2c0] sm:$0xff]
    %v3409 = vld [vmem:[#allocation9 + $0x2c8] sm:$0xff]
    %v3410 = vld [vmem:[#allocation9 + $0x2d0] sm:$0xff]
    %v3411 = vld [vmem:[#allocation9 + $0x2d8] sm:$0xff]
    %v3412 = vld [vmem:[#allocation9 + $0x2e0] sm:$0xff]
    %v3413 = vld [vmem:[#allocation9 + $0x2e8] sm:$0xff]
    %v3414 = vld [vmem:[#allocation9 + $0x2f0] sm:$0xff]
    %v3415 = vld [vmem:[#allocation9 + $0x2f8] sm:$0xff]
    %v3416 = vld [vmem:[#allocation9 + $0x300] sm:$0xff]
    %v3417 = vld [vmem:[#allocation9 + $0x308] sm:$0xff]
    %v3418 = vld [vmem:[#allocation9 + $0x310] sm:$0xff]
    %v3419 = vld [vmem:[#allocation9 + $0x318] sm:$0xff]
    %v3420 = vld [vmem:[#allocation9 + $0x320] sm:$0xff]
    %v3421 = vld [vmem:[#allocation9 + $0x328] sm:$0xff]
    %v3422 = vld [vmem:[#allocation9 + $0x330] sm:$0xff]
    %v3423 = vld [vmem:[#allocation9 + $0x338] sm:$0xff]
    %v3424 = vld [vmem:[#allocation9 + $0x340] sm:$0xff]
    %v3425 = vld [vmem:[#allocation9 + $0x348] sm:$0xff]
    %v3426 = vld [vmem:[#allocation9 + $0x350] sm:$0xff]
    %v3427 = vld [vmem:[#allocation9 + $0x358] sm:$0xff]
    %v3428 = vld [vmem:[#allocation9 + $0x360] sm:$0xff]
    %v3429 = vld [vmem:[#allocation9 + $0x368] sm:$0xff]
    %v3430 = vld [vmem:[#allocation9 + $0x370] sm:$0xff]
    %v3431 = vld [vmem:[#allocation9 + $0x378] sm:$0xff]
    %v3432 = vld [vmem:[#allocation9 + $0x380] sm:$0xff]
    %v3433 = vld [vmem:[#allocation9 + $0x388] sm:$0xff]
    %v3434 = vld [vmem:[#allocation9 + $0x390] sm:$0xff]
    %v3435 = vld [vmem:[#allocation9 + $0x398] sm:$0xff]
    %v3436 = vld [vmem:[#allocation9 + $0x3a0] sm:$0xff]
    %v3437 = vld [vmem:[#allocation9 + $0x3a8] sm:$0xff]
    %v3438 = vld [vmem:[#allocation9 + $0x3b0] sm:$0xff]
    %v3439 = vld [vmem:[#allocation9 + $0x3b8] sm:$0xff]
    %v3440 = vld [vmem:[#allocation9 + $0x3c0] sm:$0xff]
    %v3441 = vld [vmem:[#allocation9 + $0x3c8] sm:$0xff]
    %v3442 = vld [vmem:[#allocation9 + $0x3d0] sm:$0xff]
    %v3443 = vld [vmem:[#allocation9 + $0x3d8] sm:$0xff]
    %v3444 = vld [vmem:[#allocation9 + $0x3e0] sm:$0xff]
    %v3445 = vld [vmem:[#allocation9 + $0x3e8] sm:$0xff]
    %v3446 = vld [vmem:[#allocation9 + $0x3f0] sm:$0xff]
    %v3447 = vld [vmem:[#allocation9 + $0x3f8] sm:$0xff]
    %v3448 = vld [vmem:[#allocation9 + $0x400] sm:$0xff]
    %v3449 = vld [vmem:[#allocation9 + $0x408] sm:$0xff]
    %v3450 = vld [vmem:[#allocation9 + $0x410] sm:$0xff]
    %v3451 = vld [vmem:[#allocation9 + $0x418] sm:$0xff]
    %v3452 = vld [vmem:[#allocation9 + $0x420] sm:$0xff]
    %v3453 = vld [vmem:[#allocation9 + $0x428] sm:$0xff]
    %v3454 = vld [vmem:[#allocation9 + $0x430] sm:$0xff]
    %v3455 = vld [vmem:[#allocation9 + $0x438] sm:$0xff]
    %v3456 = vld [vmem:[#allocation9 + $0x440] sm:$0xff]
    %v3457 = vld [vmem:[#allocation9 + $0x448] sm:$0xff]
    %v3458 = vld [vmem:[#allocation9 + $0x450] sm:$0xff]
    %v3459 = vld [vmem:[#allocation9 + $0x458] sm:$0xff]
    %v3460 = vld [vmem:[#allocation9 + $0x460] sm:$0xff]
    %v3461 = vld [vmem:[#allocation9 + $0x468] sm:$0xff]
    %v3462 = vld [vmem:[#allocation9 + $0x470] sm:$0xff]
    %v3463 = vld [vmem:[#allocation9 + $0x478] sm:$0xff]
    %v3464 = vld [vmem:[#allocation9 + $0x480] sm:$0xff]
    %v3465 = vld [vmem:[#allocation9 + $0x488] sm:$0xff]
    %v3466 = vld [vmem:[#allocation9 + $0x490] sm:$0xff]
    %v3467 = vld [vmem:[#allocation9 + $0x498] sm:$0xff]
    %v3468 = vld [vmem:[#allocation9 + $0x4a0] sm:$0xff]
    %v3469 = vld [vmem:[#allocation9 + $0x4a8] sm:$0xff]
    %v3470 = vld [vmem:[#allocation9 + $0x4b0] sm:$0xff]
    %v3471 = vld [vmem:[#allocation9 + $0x4b8] sm:$0xff]
    %v3472 = vld [vmem:[#allocation9 + $0x4c0] sm:$0xff]
    %v3473 = vld [vmem:[#allocation9 + $0x4c8] sm:$0xff]
    %v3474 = vld [vmem:[#allocation9 + $0x4d0] sm:$0xff]
    %v3475 = vld [vmem:[#allocation9 + $0x4d8] sm:$0xff]
    %v3476 = vld [vmem:[#allocation9 + $0x4e0] sm:$0xff]
    %v3477 = vld [vmem:[#allocation9 + $0x4e8] sm:$0xff]
    %v3478 = vld [vmem:[#allocation9 + $0x4f0] sm:$0xff]
    %v3479 = vld [vmem:[#allocation9 + $0x4f8] sm:$0xff]
    %v3480 = vld [vmem:[#allocation9 + $0x500] sm:$0xff]
    %v3481 = vld [vmem:[#allocation9 + $0x508] sm:$0xff]
    %v3482 = vld [vmem:[#allocation9 + $0x510] sm:$0xff]
    %v3483 = vld [vmem:[#allocation9 + $0x518] sm:$0xff]
    %v3484 = vld [vmem:[#allocation9 + $0x520] sm:$0xff]
    %v3485 = vld [vmem:[#allocation9 + $0x528] sm:$0xff]
    %v3486 = vld [vmem:[#allocation9 + $0x530] sm:$0xff]
    %v3487 = vld [vmem:[#allocation9 + $0x538] sm:$0xff]
    %v3488 = vld [vmem:[#allocation9 + $0x540] sm:$0xff]
    %v3489 = vld [vmem:[#allocation9 + $0x548] sm:$0xff]
    %v3490 = vld [vmem:[#allocation9 + $0x550] sm:$0xff]
    %v3491 = vld [vmem:[#allocation9 + $0x558] sm:$0xff]
    %v3492 = vld [vmem:[#allocation9 + $0x560] sm:$0xff]
    %v3493 = vld [vmem:[#allocation9 + $0x568] sm:$0xff]
    %v3494 = vld [vmem:[#allocation9 + $0x570] sm:$0xff]
    %v3495 = vld [vmem:[#allocation9 + $0x578] sm:$0xff]
    %v3496 = vld [vmem:[#allocation9 + $0x580] sm:$0xff]
    %v3497 = vld [vmem:[#allocation9 + $0x588] sm:$0xff]
    %v3498 = vld [vmem:[#allocation9 + $0x590] sm:$0xff]
    %v3499 = vld [vmem:[#allocation9 + $0x598] sm:$0xff]
    %v3500 = vld [vmem:[#allocation9 + $0x5a0] sm:$0xff]
    %v3501 = vld [vmem:[#allocation9 + $0x5a8] sm:$0xff]
    %v3502 = vld [vmem:[#allocation9 + $0x5b0] sm:$0xff]
    %v3503 = vld [vmem:[#allocation9 + $0x5b8] sm:$0xff]
    %v3504 = vld [vmem:[#allocation9 + $0x5c0] sm:$0xff]
    %v3505 = vld [vmem:[#allocation9 + $0x5c8] sm:$0xff]
    %v3506 = vld [vmem:[#allocation9 + $0x5d0] sm:$0xff]
    %v3507 = vld [vmem:[#allocation9 + $0x5d8] sm:$0xff]
    %v3508 = vld [vmem:[#allocation9 + $0x5e0] sm:$0xff]
    %v3509 = vld [vmem:[#allocation9 + $0x5e8] sm:$0xff]
    %v3510 = vld [vmem:[#allocation9 + $0x5f0] sm:$0xff]
    %v3511 = vld [vmem:[#allocation9 + $0x5f8] sm:$0xff]
    %v3512 = vld [vmem:[#allocation9 + $0x600] sm:$0xff]
    %v3513 = vld [vmem:[#allocation9 + $0x608] sm:$0xff]
    %v3514 = vld [vmem:[#allocation9 + $0x610] sm:$0xff]
    %v3515 = vld [vmem:[#allocation9 + $0x618] sm:$0xff]
    %v3516 = vld [vmem:[#allocation9 + $0x620] sm:$0xff]
    %v3517 = vld [vmem:[#allocation9 + $0x628] sm:$0xff]
    %v3518 = vld [vmem:[#allocation9 + $0x630] sm:$0xff]
    %v3519 = vld [vmem:[#allocation9 + $0x638] sm:$0xff]
    %v3520 = vld [vmem:[#allocation9 + $0x640] sm:$0xff]
    %v3521 = vld [vmem:[#allocation9 + $0x648] sm:$0xff]
    %v3522 = vld [vmem:[#allocation9 + $0x650] sm:$0xff]
    %v3523 = vld [vmem:[#allocation9 + $0x658] sm:$0xff]
    %v3524 = vld [vmem:[#allocation9 + $0x660] sm:$0xff]
    %v3525 = vld [vmem:[#allocation9 + $0x668] sm:$0xff]
    %v3526 = vld [vmem:[#allocation9 + $0x670] sm:$0xff]
    %v3527 = vld [vmem:[#allocation9 + $0x678] sm:$0xff]
    %v3528 = vld [vmem:[#allocation9 + $0x680] sm:$0xff]
    %v3529 = vld [vmem:[#allocation9 + $0x688] sm:$0xff]
    %v3530 = vld [vmem:[#allocation9 + $0x690] sm:$0xff]
    %v3531 = vld [vmem:[#allocation9 + $0x698] sm:$0xff]
    %v3532 = vld [vmem:[#allocation9 + $0x6a0] sm:$0xff]
    %v3533 = vld [vmem:[#allocation9 + $0x6a8] sm:$0xff]
    %v3534 = vld [vmem:[#allocation9 + $0x6b0] sm:$0xff]
    %v3535 = vld [vmem:[#allocation9 + $0x6b8] sm:$0xff]
    %v3536 = vld [vmem:[#allocation9 + $0x6c0] sm:$0xff]
    %v3537 = vld [vmem:[#allocation9 + $0x6c8] sm:$0xff]
    %v3538 = vld [vmem:[#allocation9 + $0x6d0] sm:$0xff]
    %v3539 = vld [vmem:[#allocation9 + $0x6d8] sm:$0xff]
    %v3540 = vld [vmem:[#allocation9 + $0x6e0] sm:$0xff]
    %v3541 = vld [vmem:[#allocation9 + $0x6e8] sm:$0xff]
    %v3542 = vld [vmem:[#allocation9 + $0x6f0] sm:$0xff]
    %v3543 = vld [vmem:[#allocation9 + $0x6f8] sm:$0xff]
    %v3544 = vld [vmem:[#allocation9 + $0x700] sm:$0xff]
    %v3545 = vld [vmem:[#allocation9 + $0x708] sm:$0xff]
    %v3546 = vld [vmem:[#allocation9 + $0x710] sm:$0xff]
    %v3547 = vld [vmem:[#allocation9 + $0x718] sm:$0xff]
    %v3548 = vld [vmem:[#allocation9 + $0x720] sm:$0xff]
    %v3549 = vld [vmem:[#allocation9 + $0x728] sm:$0xff]
    %v3550 = vld [vmem:[#allocation9 + $0x730] sm:$0xff]
    %v3551 = vld [vmem:[#allocation9 + $0x738] sm:$0xff]
    %v3552 = vld [vmem:[#allocation9 + $0x740] sm:$0xff]
    %v3553 = vld [vmem:[#allocation9 + $0x748] sm:$0xff]
    %v3554 = vld [vmem:[#allocation9 + $0x750] sm:$0xff]
    %v3555 = vld [vmem:[#allocation9 + $0x758] sm:$0xff]
    %v3556 = vld [vmem:[#allocation9 + $0x760] sm:$0xff]
    %v3557 = vld [vmem:[#allocation9 + $0x768] sm:$0xff]
    %v3558 = vld [vmem:[#allocation9 + $0x770] sm:$0xff]
    %v3559 = vld [vmem:[#allocation9 + $0x778] sm:$0xff]
    %v3560 = vld [vmem:[#allocation9 + $0x780] sm:$0xff]
    %v3561 = vld [vmem:[#allocation9 + $0x788] sm:$0xff]
    %v3562 = vld [vmem:[#allocation9 + $0x790] sm:$0xff]
    %v3563 = vld [vmem:[#allocation9 + $0x798] sm:$0xff]
    %v3564 = vld [vmem:[#allocation9 + $0x7a0] sm:$0xff]
    %v3565 = vld [vmem:[#allocation9 + $0x7a8] sm:$0xff]
    %v3566 = vld [vmem:[#allocation9 + $0x7b0] sm:$0xff]
    %v3567 = vld [vmem:[#allocation9 + $0x7b8] sm:$0xff]
    %v3568 = vld [vmem:[#allocation9 + $0x7c0] sm:$0xff]
    %v3569 = vld [vmem:[#allocation9 + $0x7c8] sm:$0xff]
    %v3570 = vld [vmem:[#allocation9 + $0x7d0] sm:$0xff]
    %v3571 = vld [vmem:[#allocation9 + $0x7d8] sm:$0xff]
    %v3572 = vld [vmem:[#allocation9 + $0x7e0] sm:$0xff]
    %v3573 = vld [vmem:[#allocation9 + $0x7e8] sm:$0xff]
    %v3574 = vld [vmem:[#allocation9 + $0x7f0] sm:$0xff]
    %v3575 = vld [vmem:[#allocation9 + $0x7f8] sm:$0xff]
    %v3576 = vld [vmem:[#allocation9 + $0x800] sm:$0xff]
    %v3577 = vld [vmem:[#allocation9 + $0x808] sm:$0xff]
    %v3578 = vld [vmem:[#allocation9 + $0x810] sm:$0xff]
    %v3579 = vld [vmem:[#allocation9 + $0x818] sm:$0xff]
    %v3580 = vld [vmem:[#allocation9 + $0x820] sm:$0xff]
    %v3581 = vld [vmem:[#allocation9 + $0x828] sm:$0xff]
    %v3582 = vld [vmem:[#allocation9 + $0x830] sm:$0xff]
    %v3583 = vld [vmem:[#allocation9 + $0x838] sm:$0xff]
    %v3584 = vld [vmem:[#allocation9 + $0x840] sm:$0xff]
    %v3585 = vld [vmem:[#allocation9 + $0x848] sm:$0xff]
    %v3586 = vld [vmem:[#allocation9 + $0x850] sm:$0xff]
    %v3587 = vld [vmem:[#allocation9 + $0x858] sm:$0xff]
    %v3588 = vld [vmem:[#allocation9 + $0x860] sm:$0xff]
    %v3589 = vld [vmem:[#allocation9 + $0x868] sm:$0xff]
    %v3590 = vld [vmem:[#allocation9 + $0x870] sm:$0xff]
    %v3591 = vld [vmem:[#allocation9 + $0x878] sm:$0xff]
    %v3592 = vld [vmem:[#allocation9 + $0x880] sm:$0xff]
    %v3593 = vld [vmem:[#allocation9 + $0x888] sm:$0xff]
    %v3594 = vld [vmem:[#allocation9 + $0x890] sm:$0xff]
    %v3595 = vld [vmem:[#allocation9 + $0x898] sm:$0xff]
    %v3596 = vld [vmem:[#allocation9 + $0x8a0] sm:$0xff]
    %v3597 = vld [vmem:[#allocation9 + $0x8a8] sm:$0xff]
    %v3598 = vld [vmem:[#allocation9 + $0x8b0] sm:$0xff]
    %v3599 = vld [vmem:[#allocation9 + $0x8b8] sm:$0xff]
    %v3600 = vld [vmem:[#allocation9 + $0x8c0] sm:$0xff]
    %v3601 = vld [vmem:[#allocation9 + $0x8c8] sm:$0xff]
    %v3602 = vld [vmem:[#allocation9 + $0x8d0] sm:$0xff]
    %v3603 = vld [vmem:[#allocation9 + $0x8d8] sm:$0xff]
    %v3604 = vld [vmem:[#allocation9 + $0x8e0] sm:$0xff]
    %v3605 = vld [vmem:[#allocation9 + $0x8e8] sm:$0xff]
    %v3606 = vld [vmem:[#allocation9 + $0x8f0] sm:$0xff]
    %v3607 = vld [vmem:[#allocation9 + $0x8f8] sm:$0xff]
    %v3608 = vld [vmem:[#allocation9 + $0x900] sm:$0xff]
    %v3609 = vld [vmem:[#allocation9 + $0x908] sm:$0xff]
    %v3610 = vld [vmem:[#allocation9 + $0x910] sm:$0xff]
    %v3611 = vld [vmem:[#allocation9 + $0x918] sm:$0xff]
    %v3612 = vld [vmem:[#allocation9 + $0x920] sm:$0xff]
    %v3613 = vld [vmem:[#allocation9 + $0x928] sm:$0xff]
    %v3614 = vld [vmem:[#allocation9 + $0x930] sm:$0xff]
    %v3615 = vld [vmem:[#allocation9 + $0x938] sm:$0xff]
    %v3616 = vld [vmem:[#allocation9 + $0x940] sm:$0xff]
    %v3617 = vld [vmem:[#allocation9 + $0x948] sm:$0xff]
    %v3618 = vld [vmem:[#allocation9 + $0x950] sm:$0xff]
    %v3619 = vld [vmem:[#allocation9 + $0x958] sm:$0xff]
    %v3620 = vld [vmem:[#allocation9 + $0x960] sm:$0xff]
    %v3621 = vld [vmem:[#allocation9 + $0x968] sm:$0xff]
    %v3622 = vld [vmem:[#allocation9 + $0x970] sm:$0xff]
    %v3623 = vld [vmem:[#allocation9 + $0x978] sm:$0xff]
    %v3624 = vld [vmem:[#allocation9 + $0x980] sm:$0xff]
    %v3625 = vld [vmem:[#allocation9 + $0x988] sm:$0xff]
    %v3626 = vld [vmem:[#allocation9 + $0x990] sm:$0xff]
    %v3627 = vld [vmem:[#allocation9 + $0x998] sm:$0xff]
    %v3628 = vld [vmem:[#allocation9 + $0x9a0] sm:$0xff]
    %v3629 = vld [vmem:[#allocation9 + $0x9a8] sm:$0xff]
    %v3630 = vld [vmem:[#allocation9 + $0x9b0] sm:$0xff]
    %v3631 = vld [vmem:[#allocation9 + $0x9b8] sm:$0xff]
    %v3632 = vld [vmem:[#allocation9 + $0x9c0] sm:$0xff]
    %v3633 = vld [vmem:[#allocation9 + $0x9c8] sm:$0xff]
    %v3634 = vld [vmem:[#allocation9 + $0x9d0] sm:$0xff]
    %v3635 = vld [vmem:[#allocation9 + $0x9d8] sm:$0xff]
    %v3636 = vld [vmem:[#allocation9 + $0x9e0] sm:$0xff]
    %v3637 = vld [vmem:[#allocation9 + $0x9e8] sm:$0xff]
    %v3638 = vld [vmem:[#allocation9 + $0x9f0] sm:$0xff]
    %v3639 = vld [vmem:[#allocation9 + $0x9f8] sm:$0xff]
    %v3640 = vld [vmem:[#allocation9 + $0xa00] sm:$0xff]
    %v3641 = vld [vmem:[#allocation9 + $0xa08] sm:$0xff]
    %v3642 = vld [vmem:[#allocation9 + $0xa10] sm:$0xff]
    %v3643 = vld [vmem:[#allocation9 + $0xa18] sm:$0xff]
    %v3644 = vld [vmem:[#allocation9 + $0xa20] sm:$0xff]
    %v3645 = vld [vmem:[#allocation9 + $0xa28] sm:$0xff]
    %v3646 = vld [vmem:[#allocation9 + $0xa30] sm:$0xff]
    %v3647 = vld [vmem:[#allocation9 + $0xa38] sm:$0xff]
    %v3648 = vld [vmem:[#allocation9 + $0xa40] sm:$0xff]
    %v3649 = vld [vmem:[#allocation9 + $0xa48] sm:$0xff]
    %v3650 = vld [vmem:[#allocation9 + $0xa50] sm:$0xff]
    %v3651 = vld [vmem:[#allocation9 + $0xa58] sm:$0xff]
    %v3652 = vld [vmem:[#allocation9 + $0xa60] sm:$0xff]
    %v3653 = vld [vmem:[#allocation9 + $0xa68] sm:$0xff]
    %v3654 = vld [vmem:[#allocation9 + $0xa70] sm:$0xff]
    %v3655 = vld [vmem:[#allocation9 + $0xa78] sm:$0xff]
    %v3656 = vld [vmem:[#allocation9 + $0xa80] sm:$0xff]
    %v3657 = vld [vmem:[#allocation9 + $0xa88] sm:$0xff]
    %v3658 = vld [vmem:[#allocation9 + $0xa90] sm:$0xff]
    %v3659 = vld [vmem:[#allocation9 + $0xa98] sm:$0xff]
    %v3660 = vld [vmem:[#allocation9 + $0xaa0] sm:$0xff]
    %v3661 = vld [vmem:[#allocation9 + $0xaa8] sm:$0xff]
    %v3662 = vld [vmem:[#allocation9 + $0xab0] sm:$0xff]
    %v3663 = vld [vmem:[#allocation9 + $0xab8] sm:$0xff]
    %v3664 = vld [vmem:[#allocation9 + $0xac0] sm:$0xff]
    %v3665 = vld [vmem:[#allocation9 + $0xac8] sm:$0xff]
    %v3666 = vld [vmem:[#allocation9 + $0xad0] sm:$0xff]
    %v3667 = vld [vmem:[#allocation9 + $0xad8] sm:$0xff]
    %v3668 = vld [vmem:[#allocation9 + $0xae0] sm:$0xff]
    %v3669 = vld [vmem:[#allocation9 + $0xae8] sm:$0xff]
    %v3670 = vld [vmem:[#allocation9 + $0xaf0] sm:$0xff]
    %v3671 = vld [vmem:[#allocation9 + $0xaf8] sm:$0xff]
    %v3672 = vld [vmem:[#allocation9 + $0xb00] sm:$0xff]
    %v3673 = vld [vmem:[#allocation9 + $0xb08] sm:$0xff]
    %v3674 = vld [vmem:[#allocation9 + $0xb10] sm:$0xff]
    %v3675 = vld [vmem:[#allocation9 + $0xb18] sm:$0xff]
    %v3676 = vld [vmem:[#allocation9 + $0xb20] sm:$0xff]
    %v3677 = vld [vmem:[#allocation9 + $0xb28] sm:$0xff]
    %v3678 = vld [vmem:[#allocation9 + $0xb30] sm:$0xff]
    %v3679 = vld [vmem:[#allocation9 + $0xb38] sm:$0xff]
    %v3680 = vld [vmem:[#allocation9 + $0xb40] sm:$0xff]
    %v3681 = vld [vmem:[#allocation9 + $0xb48] sm:$0xff]
    %v3682 = vld [vmem:[#allocation9 + $0xb50] sm:$0xff]
    %v3683 = vld [vmem:[#allocation9 + $0xb58] sm:$0xff]
    %v3684 = vld [vmem:[#allocation9 + $0xb60] sm:$0xff]
    %v3685 = vld [vmem:[#allocation9 + $0xb68] sm:$0xff]
    %v3686 = vld [vmem:[#allocation9 + $0xb70] sm:$0xff]
    %v3687 = vld [vmem:[#allocation9 + $0xb78] sm:$0xff]
    %v3688 = vld [vmem:[#allocation9 + $0xb80] sm:$0xff]
    %v3689 = vld [vmem:[#allocation9 + $0xb88] sm:$0xff]
    %v3690 = vld [vmem:[#allocation9 + $0xb90] sm:$0xff]
    %v3691 = vld [vmem:[#allocation9 + $0xb98] sm:$0xff]
    %v3692 = vld [vmem:[#allocation9 + $0xba0] sm:$0xff]
    %v3693 = vld [vmem:[#allocation9 + $0xba8] sm:$0xff]
    %v3694 = vld [vmem:[#allocation9 + $0xbb0] sm:$0xff]
    %v3695 = vld [vmem:[#allocation9 + $0xbb8] sm:$0xff]
    %v3696 = vld [vmem:[#allocation9 + $0xbc0] sm:$0xff]
    %v3697 = vld [vmem:[#allocation9 + $0xbc8] sm:$0xff]
    %v3698 = vld [vmem:[#allocation9 + $0xbd0] sm:$0xff]
    %v3699 = vld [vmem:[#allocation9 + $0xbd8] sm:$0xff]
    %v3700 = vld [vmem:[#allocation9 + $0xbe0] sm:$0xff]
    %v3701 = vld [vmem:[#allocation9 + $0xbe8] sm:$0xff]
    %v3702 = vld [vmem:[#allocation9 + $0xbf0] sm:$0xff]
    %v3703 = vld [vmem:[#allocation9 + $0xbf8] sm:$0xff]
    %v3704 = vld [vmem:[#allocation9 + $0xc00] sm:$0xff]
    %v3705 = vld [vmem:[#allocation9 + $0xc08] sm:$0xff]
    %v3706 = vld [vmem:[#allocation9 + $0xc10] sm:$0xff]
    %v3707 = vld [vmem:[#allocation9 + $0xc18] sm:$0xff]
    %v3708 = vld [vmem:[#allocation9 + $0xc20] sm:$0xff]
    %v3709 = vld [vmem:[#allocation9 + $0xc28] sm:$0xff]
    %v3710 = vld [vmem:[#allocation9 + $0xc30] sm:$0xff]
    %v3711 = vld [vmem:[#allocation9 + $0xc38] sm:$0xff]
    %v3712 = vld [vmem:[#allocation9 + $0xc40] sm:$0xff]
    %v3713 = vld [vmem:[#allocation9 + $0xc48] sm:$0xff]
    %v3714 = vld [vmem:[#allocation9 + $0xc50] sm:$0xff]
    %v3715 = vld [vmem:[#allocation9 + $0xc58] sm:$0xff]
    %v3716 = vld [vmem:[#allocation9 + $0xc60] sm:$0xff]
    %v3717 = vld [vmem:[#allocation9 + $0xc68] sm:$0xff]
    %v3718 = vld [vmem:[#allocation9 + $0xc70] sm:$0xff]
    %v3719 = vld [vmem:[#allocation9 + $0xc78] sm:$0xff]
    %v3720 = vld [vmem:[#allocation9 + $0xc80] sm:$0xff]
    %v3721 = vld [vmem:[#allocation9 + $0xc88] sm:$0xff]
    %v3722 = vld [vmem:[#allocation9 + $0xc90] sm:$0xff]
    %v3723 = vld [vmem:[#allocation9 + $0xc98] sm:$0xff]
    %v3724 = vld [vmem:[#allocation9 + $0xca0] sm:$0xff]
    %v3725 = vld [vmem:[#allocation9 + $0xca8] sm:$0xff]
    %v3726 = vld [vmem:[#allocation9 + $0xcb0] sm:$0xff]
    %v3727 = vld [vmem:[#allocation9 + $0xcb8] sm:$0xff]
    %v3728 = vld [vmem:[#allocation9 + $0xcc0] sm:$0xff]
    %v3729 = vld [vmem:[#allocation9 + $0xcc8] sm:$0xff]
    %v3730 = vld [vmem:[#allocation9 + $0xcd0] sm:$0xff]
    %v3731 = vld [vmem:[#allocation9 + $0xcd8] sm:$0xff]
    %v3732 = vld [vmem:[#allocation9 + $0xce0] sm:$0xff]
    %v3733 = vld [vmem:[#allocation9 + $0xce8] sm:$0xff]
    %v3734 = vld [vmem:[#allocation9 + $0xcf0] sm:$0xff]
    %v3735 = vld [vmem:[#allocation9 + $0xcf8] sm:$0xff]
    %v3736 = vld [vmem:[#allocation9 + $0xd00] sm:$0xff]
    %v3737 = vld [vmem:[#allocation9 + $0xd08] sm:$0xff]
    %v3738 = vld [vmem:[#allocation9 + $0xd10] sm:$0xff]
    %v3739 = vld [vmem:[#allocation9 + $0xd18] sm:$0xff]
    %v3740 = vld [vmem:[#allocation9 + $0xd20] sm:$0xff]
    %v3741 = vld [vmem:[#allocation9 + $0xd28] sm:$0xff]
    %v3742 = vld [vmem:[#allocation9 + $0xd30] sm:$0xff]
    %v3743 = vld [vmem:[#allocation9 + $0xd38] sm:$0xff]
    %v3744 = vld [vmem:[#allocation9 + $0xd40] sm:$0xff]
    %v3745 = vld [vmem:[#allocation9 + $0xd48] sm:$0xff]
    %v3746 = vld [vmem:[#allocation9 + $0xd50] sm:$0xff]
    %v3747 = vld [vmem:[#allocation9 + $0xd58] sm:$0xff]
    %v3748 = vld [vmem:[#allocation9 + $0xd60] sm:$0xff]
    %v3749 = vld [vmem:[#allocation9 + $0xd68] sm:$0xff]
    %v3750 = vld [vmem:[#allocation9 + $0xd70] sm:$0xff]
    %v3751 = vld [vmem:[#allocation9 + $0xd78] sm:$0xff]
    %v3752 = vld [vmem:[#allocation9 + $0xd80] sm:$0xff]
    %v3753 = vld [vmem:[#allocation9 + $0xd88] sm:$0xff]
    %v3754 = vld [vmem:[#allocation9 + $0xd90] sm:$0xff]
    %v3755 = vld [vmem:[#allocation9 + $0xd98] sm:$0xff]
    %v3756 = vld [vmem:[#allocation9 + $0xda0] sm:$0xff]
    %v3757 = vld [vmem:[#allocation9 + $0xda8] sm:$0xff]
    %v3758 = vld [vmem:[#allocation9 + $0xdb0] sm:$0xff]
    %v3759 = vld [vmem:[#allocation9 + $0xdb8] sm:$0xff]
    %v3760 = vld [vmem:[#allocation9 + $0xdc0] sm:$0xff]
    %v3761 = vld [vmem:[#allocation9 + $0xdc8] sm:$0xff]
    %v3762 = vld [vmem:[#allocation9 + $0xdd0] sm:$0xff]
    %v3763 = vld [vmem:[#allocation9 + $0xdd8] sm:$0xff]
    %v3764 = vld [vmem:[#allocation9 + $0xde0] sm:$0xff]
    %v3765 = vld [vmem:[#allocation9 + $0xde8] sm:$0xff]
    %v3766 = vld [vmem:[#allocation9 + $0xdf0] sm:$0xff]
    %v3767 = vld [vmem:[#allocation9 + $0xdf8] sm:$0xff]
    %v3768 = vld [vmem:[#allocation9 + $0xe00] sm:$0xff]
    %v3769 = vld [vmem:[#allocation9 + $0xe08] sm:$0xff]
    %v3770 = vld [vmem:[#allocation9 + $0xe10] sm:$0xff]
    %v3771 = vld [vmem:[#allocation9 + $0xe18] sm:$0xff]
    %v3772 = vld [vmem:[#allocation9 + $0xe20] sm:$0xff]
    %v3773 = vld [vmem:[#allocation9 + $0xe28] sm:$0xff]
    %v3774 = vld [vmem:[#allocation9 + $0xe30] sm:$0xff]
    %v3775 = vld [vmem:[#allocation9 + $0xe38] sm:$0xff]
    %v3776 = vld [vmem:[#allocation9 + $0xe40] sm:$0xff]
    %v3777 = vld [vmem:[#allocation9 + $0xe48] sm:$0xff]
    %v3778 = vld [vmem:[#allocation9 + $0xe50] sm:$0xff]
    %v3779 = vld [vmem:[#allocation9 + $0xe58] sm:$0xff]
    %v3780 = vld [vmem:[#allocation9 + $0xe60] sm:$0xff]
    %v3781 = vld [vmem:[#allocation9 + $0xe68] sm:$0xff]
    %v3782 = vld [vmem:[#allocation9 + $0xe70] sm:$0xff]
    %v3783 = vld [vmem:[#allocation9 + $0xe78] sm:$0xff]
    %v3784 = vld [vmem:[#allocation9 + $0xe80] sm:$0xff]
    %v3785 = vld [vmem:[#allocation9 + $0xe88] sm:$0xff]
    %v3786 = vld [vmem:[#allocation9 + $0xe90] sm:$0xff]
    %v3787 = vld [vmem:[#allocation9 + $0xe98] sm:$0xff]
    %v3788 = vld [vmem:[#allocation9 + $0xea0] sm:$0xff]
    %v3789 = vld [vmem:[#allocation9 + $0xea8] sm:$0xff]
    %v3790 = vld [vmem:[#allocation9 + $0xeb0] sm:$0xff]
    %v3791 = vld [vmem:[#allocation9 + $0xeb8] sm:$0xff]
    %v3792 = vld [vmem:[#allocation9 + $0xec0] sm:$0xff]
    %v3793 = vld [vmem:[#allocation9 + $0xec8] sm:$0xff]
    %v3794 = vld [vmem:[#allocation9 + $0xed0] sm:$0xff]
    %v3795 = vld [vmem:[#allocation9 + $0xed8] sm:$0xff]
    %v3796 = vld [vmem:[#allocation9 + $0xee0] sm:$0xff]
    %v3797 = vld [vmem:[#allocation9 + $0xee8] sm:$0xff]
    %v3798 = vld [vmem:[#allocation9 + $0xef0] sm:$0xff]
    %v3799 = vld [vmem:[#allocation9 + $0xef8] sm:$0xff]
    %v3800 = vld [vmem:[#allocation9 + $0xf00] sm:$0xff]
    %v3801 = vld [vmem:[#allocation9 + $0xf08] sm:$0xff]
    %v3802 = vld [vmem:[#allocation9 + $0xf10] sm:$0xff]
    %v3803 = vld [vmem:[#allocation9 + $0xf18] sm:$0xff]
    %v3804 = vld [vmem:[#allocation9 + $0xf20] sm:$0xff]
    %v3805 = vld [vmem:[#allocation9 + $0xf28] sm:$0xff]
    %v3806 = vld [vmem:[#allocation9 + $0xf30] sm:$0xff]
    %v3807 = vld [vmem:[#allocation9 + $0xf38] sm:$0xff]
    %v3808 = vld [vmem:[#allocation9 + $0xf40] sm:$0xff]
    %v3809 = vld [vmem:[#allocation9 + $0xf48] sm:$0xff]
    %3810 = vmatprep.subr.mxu0 %v3396
    %3811 = vmatpush1.msra.mxu0 %v3395
    %3812 = vmatprep.subr.mxu0 %v3391
    %3813 = vmatpush1.msra.mxu0 %v3390
    %3814 = vmatprep.subr.mxu0 %v3386
    %3815 = vmatpush1.msra.mxu0 %v3385
    %3816 = vmatprep.subr.mxu0 %v3381
    %3817 = vmatpush1.msra.mxu0 %v3380
    %3818 = vmatprep.subr.mxu0 %v3376
    %3819 = vmatpush1.msra.mxu0 %v3375
    %3820 = vmatprep.subr.mxu0 %v3371
    %3821 = vmatpush1.msra.mxu0 %v3370
    %3822 = vmatprep.subr.mxu0 %v3366
    %3823 = vmatpush1.msra.mxu0 %v3365
    %3824 = vmatprep.subr.mxu0 %v3361
    %3825 = vmatpush1.msra.mxu0 %v3360
    %3826 = vmatprep.subr.mxu0 %v3356
    %3827 = vmatpush1.msra.mxu0 %v3355
    %3828 = vmatprep.subr.mxu0 %v3351
    %3829 = vmatpush1.msra.mxu0 %v3350
    %3830 = vmatprep.subr.mxu0 %v3346
    %3831 = vmatpush1.msra.mxu0 %v3345
    %3832 = vmatprep.subr.mxu0 %v3341
    %3833 = vmatpush1.msra.mxu0 %v3340
    %3834 = vmatprep.subr.mxu0 %v3336
    %3835 = vmatpush1.msra.mxu0 %v3335
    %3836 = vmatprep.subr.mxu0 %v3331
    %3837 = vmatpush1.msra.mxu0 %v3330
    %3838 = vmatprep.subr.mxu0 %v3326
    %3839 = vmatpush1.msra.mxu0 %v3325
    %3840 = vmatprep.subr.mxu0 %v3321
    %3841 = vmatpush1.msra.mxu0 %v3320
    %3842 = vmatprep.subr.mxu0 %v3476
    %3843 = vmatpush2.msra.mxu0 %v3475
    %3844 = vmatprep.subr.mxu0 %v3471
    %3845 = vmatpush2.msra.mxu0 %v3470
    %3846 = vmatprep.subr.mxu0 %v3466
    %3847 = vmatpush2.msra.mxu0 %v3465
    %3848 = vmatprep.subr.mxu0 %v3461
    %3849 = vmatpush2.msra.mxu0 %v3460
    %3850 = vmatprep.subr.mxu0 %v3456
    %3851 = vmatpush2.msra.mxu0 %v3455
    %3852 = vmatprep.subr.mxu0 %v3451
    %3853 = vmatpush2.msra.mxu0 %v3450
    %3854 = vmatprep.subr.mxu0 %v3446
    %3855 = vmatpush2.msra.mxu0 %v3445
    %3856 = vmatprep.subr.mxu0 %v3441
    %3857 = vmatpush2.msra.mxu0 %v3440
    %3858 = vmatprep.subr.mxu0 %v3436
    %3859 = vmatpush2.msra.mxu0 %v3435
    %3860 = vmatprep.subr.mxu0 %v3431
    %3861 = vmatpush2.msra.mxu0 %v3430
    %3862 = vmatprep.subr.mxu0 %v3426
    %3863 = vmatpush2.msra.mxu0 %v3425
    %3864 = vmatprep.subr.mxu0 %v3421
    %3865 = vmatpush2.msra.mxu0 %v3420
    %3866 = vmatprep.subr.mxu0 %v3416
    %3867 = vmatpush2.msra.mxu0 %v3415
    %3868 = vmatprep.subr.mxu0 %v3411
    %3869 = vmatpush2.msra.mxu0 %v3410
    %3870 = vmatprep.subr.mxu0 %v3406
    %3871 = vmatpush2.msra.mxu0 %v3405
    %3872 = vmatprep.subr.mxu0 %v3401
    %3873 = vmatpush2.msra.mxu0 %v3400
    %3874 = vmatprep.mubr.f32.mxu0 %v3297
    %3875 = vmatmul.mubr.f32.gmra.mxu0 %v3296
    %v3876 = vpop.f32.mrf.mxu0
    %v3877 = vadd.f32 0.0, %v3876
    %v3878 = vpop.f32.mrf.mxu0
    %v3879 = vadd.f32 0.0, %v3878
    %3880 = vmatprep.mubr.f32.mxu0 %v3309
    %3881 = vmatmul.mubr.f32.gmra.mxu0 %v3308
    %v3882 = vpop.f32.mrf.mxu0
    %v3883 = vadd.f32 0.0, %v3882
    %v3884 = vpop.f32.mrf.mxu0
    %v3885 = vadd.f32 0.0, %v3884
    %3886 = vdwg.mxu0
    %3887 = vmatprep.subr.mxu0 %v3556
    %3888 = vmatpush1.msra.mxu0 %v3555
    %3889 = vmatprep.subr.mxu0 %v3551
    %3890 = vmatpush1.msra.mxu0 %v3550
    %3891 = vmatprep.subr.mxu0 %v3546
    %3892 = vmatpush1.msra.mxu0 %v3545
    %3893 = vmatprep.subr.mxu0 %v3541
    %3894 = vmatpush1.msra.mxu0 %v3540
    %3895 = vmatprep.subr.mxu0 %v3536
    %3896 = vmatpush1.msra.mxu0 %v3535
    %3897 = vmatprep.subr.mxu0 %v3531
    %3898 = vmatpush1.msra.mxu0 %v3530
    %3899 = vmatprep.subr.mxu0 %v3526
    %3900 = vmatpush1.msra.mxu0 %v3525
    %3901 = vmatprep.subr.mxu0 %v3521
    %3902 = vmatpush1.msra.mxu0 %v3520
    %3903 = vmatprep.subr.mxu0 %v3516
    %3904 = vmatpush1.msra.mxu0 %v3515
    %3905 = vmatprep.subr.mxu0 %v3511
    %3906 = vmatpush1.msra.mxu0 %v3510
    %3907 = vmatprep.subr.mxu0 %v3506
    %3908 = vmatpush1.msra.mxu0 %v3505
    %3909 = vmatprep.subr.mxu0 %v3501
    %3910 = vmatpush1.msra.mxu0 %v3500
    %3911 = vmatprep.subr.mxu0 %v3496
    %3912 = vmatpush1.msra.mxu0 %v3495
    %3913 = vmatprep.subr.mxu0 %v3491
    %3914 = vmatpush1.msra.mxu0 %v3490
    %3915 = vmatprep.subr.mxu0 %v3486
    %3916 = vmatpush1.msra.mxu0 %v3485
    %3917 = vmatprep.subr.mxu0 %v3481
    %3918 = vmatpush1.msra.mxu0 %v3480
    %3919 = vmatprep.subr.mxu0 %v3636
    %3920 = vmatpush2.msra.mxu0 %v3635
    %3921 = vmatprep.subr.mxu0 %v3631
    %3922 = vmatpush2.msra.mxu0 %v3630
    %3923 = vmatprep.subr.mxu0 %v3626
    %3924 = vmatpush2.msra.mxu0 %v3625
    %3925 = vmatprep.subr.mxu0 %v3621
    %3926 = vmatpush2.msra.mxu0 %v3620
    %3927 = vmatprep.subr.mxu0 %v3616
    %3928 = vmatpush2.msra.mxu0 %v3615
    %3929 = vmatprep.subr.mxu0 %v3611
    %3930 = vmatpush2.msra.mxu0 %v3610
    %3931 = vmatprep.subr.mxu0 %v3606
    %3932 = vmatpush2.msra.mxu0 %v3605
    %3933 = vmatprep.subr.mxu0 %v3601
    %3934 = vmatpush2.msra.mxu0 %v3600
    %3935 = vmatprep.subr.mxu0 %v3596
    %3936 = vmatpush2.msra.mxu0 %v3595
    %3937 = vmatprep.subr.mxu0 %v3591
    %3938 = vmatpush2.msra.mxu0 %v3590
    %3939 = vmatprep.subr.mxu0 %v3586
    %3940 = vmatpush2.msra.mxu0 %v3585
    %3941 = vmatprep.subr.mxu0 %v3581
    %3942 = vmatpush2.msra.mxu0 %v3580
    %3943 = vmatprep.subr.mxu0 %v3576
    %3944 = vmatpush2.msra.mxu0 %v3575
    %3945 = vmatprep.subr.mxu0 %v3571
    %3946 = vmatpush2.msra.mxu0 %v3570
    %3947 = vmatprep.subr.mxu0 %v3566
    %3948 = vmatpush2.msra.mxu0 %v3565
    %3949 = vmatprep.subr.mxu0 %v3561
    %3950 = vmatpush2.msra.mxu0 %v3560
    %3951 = vmatprep.mubr.f32.mxu0 %v3299
    %3952 = vmatmul.mubr.f32.gmra.mxu0 %v3298
    %v3953 = vpop.f32.mrf.mxu0
    %v3954 = vadd.f32 %v3877, %v3953
    %v3955 = vpop.f32.mrf.mxu0
    %v3956 = vadd.f32 %v3879, %v3955
    %3957 = vmatprep.mubr.f32.mxu0 %v3311
    %3958 = vmatmul.mubr.f32.gmra.mxu0 %v3310
    %v3959 = vpop.f32.mrf.mxu0
    %v3960 = vadd.f32 %v3883, %v3959
    %v3961 = vpop.f32.mrf.mxu0
    %v3962 = vadd.f32 %v3885, %v3961
    %3963 = vdwg.mxu0
    %3964 = vmatprep.subr.mxu0 %v3716
    %3965 = vmatpush1.msra.mxu0 %v3715
    %3966 = vmatprep.subr.mxu0 %v3711
    %3967 = vmatpush1.msra.mxu0 %v3710
    %3968 = vmatprep.subr.mxu0 %v3706
    %3969 = vmatpush1.msra.mxu0 %v3705
    %3970 = vmatprep.subr.mxu0 %v3701
    %3971 = vmatpush1.msra.mxu0 %v3700
    %3972 = vmatprep.subr.mxu0 %v3696
    %3973 = vmatpush1.msra.mxu0 %v3695
    %3974 = vmatprep.subr.mxu0 %v3691
    %3975 = vmatpush1.msra.mxu0 %v3690
    %3976 = vmatprep.subr.mxu0 %v3686
    %3977 = vmatpush1.msra.mxu0 %v3685
    %3978 = vmatprep.subr.mxu0 %v3681
    %3979 = vmatpush1.msra.mxu0 %v3680
    %3980 = vmatprep.subr.mxu0 %v3676
    %3981 = vmatpush1.msra.mxu0 %v3675
    %3982 = vmatprep.subr.mxu0 %v3671
    %3983 = vmatpush1.msra.mxu0 %v3670
    %3984 = vmatprep.subr.mxu0 %v3666
    %3985 = vmatpush1.msra.mxu0 %v3665
    %3986 = vmatprep.subr.mxu0 %v3661
    %3987 = vmatpush1.msra.mxu0 %v3660
    %3988 = vmatprep.subr.mxu0 %v3656
    %3989 = vmatpush1.msra.mxu0 %v3655
    %3990 = vmatprep.subr.mxu0 %v3651
    %3991 = vmatpush1.msra.mxu0 %v3650
    %3992 = vmatprep.subr.mxu0 %v3646
    %3993 = vmatpush1.msra.mxu0 %v3645
    %3994 = vmatprep.subr.mxu0 %v3641
    %3995 = vmatpush1.msra.mxu0 %v3640
    %3996 = vmatprep.subr.mxu0 %v3796
    %3997 = vmatpush2.msra.mxu0 %v3795
    %3998 = vmatprep.subr.mxu0 %v3791
    %3999 = vmatpush2.msra.mxu0 %v3790
    %4000 = vmatprep.subr.mxu0 %v3786
    %4001 = vmatpush2.msra.mxu0 %v3785
    %4002 = vmatprep.subr.mxu0 %v3781
    %4003 = vmatpush2.msra.mxu0 %v3780
    %4004 = vmatprep.subr.mxu0 %v3776
    %4005 = vmatpush2.msra.mxu0 %v3775
    %4006 = vmatprep.subr.mxu0 %v3771
    %4007 = vmatpush2.msra.mxu0 %v3770
    %4008 = vmatprep.subr.mxu0 %v3766
    %4009 = vmatpush2.msra.mxu0 %v3765
    %4010 = vmatprep.subr.mxu0 %v3761
    %4011 = vmatpush2.msra.mxu0 %v3760
    %4012 = vmatprep.subr.mxu0 %v3756
    %4013 = vmatpush2.msra.mxu0 %v3755
    %4014 = vmatprep.subr.mxu0 %v3751
    %4015 = vmatpush2.msra.mxu0 %v3750
    %4016 = vmatprep.subr.mxu0 %v3746
    %4017 = vmatpush2.msra.mxu0 %v3745
    %4018 = vmatprep.subr.mxu0 %v3741
    %4019 = vmatpush2.msra.mxu0 %v3740
    %4020 = vmatprep.subr.mxu0 %v3736
    %4021 = vmatpush2.msra.mxu0 %v3735
    %4022 = vmatprep.subr.mxu0 %v3731
    %4023 = vmatpush2.msra.mxu0 %v3730
    %4024 = vmatprep.subr.mxu0 %v3726
    %4025 = vmatpush2.msra.mxu0 %v3725
    %4026 = vmatprep.subr.mxu0 %v3721
    %4027 = vmatpush2.msra.mxu0 %v3720
    %4028 = vmatprep.mubr.f32.mxu0 %v3301
    %4029 = vmatmul.mubr.f32.gmra.mxu0 %v3300
    %v4030 = vpop.f32.mrf.mxu0
    %v4031 = vadd.f32 %v3954, %v4030
    %v4032 = vpop.f32.mrf.mxu0
    %v4033 = vadd.f32 %v3956, %v4032
    %4034 = vmatprep.mubr.f32.mxu0 %v3313
    %4035 = vmatmul.mubr.f32.gmra.mxu0 %v3312
    %v4036 = vpop.f32.mrf.mxu0
    %v4037 = vadd.f32 %v3960, %v4036
    %v4038 = vpop.f32.mrf.mxu0
    %v4039 = vadd.f32 %v3962, %v4038
    %4040 = vdwg.mxu0
    %4041 = vmatprep.subr.mxu0 %v3398
    %4042 = vmatpush1.msra.mxu0 %v3397
    %4043 = vmatprep.subr.mxu0 %v3393
    %4044 = vmatpush1.msra.mxu0 %v3392
    %4045 = vmatprep.subr.mxu0 %v3388
    %4046 = vmatpush1.msra.mxu0 %v3387
    %4047 = vmatprep.subr.mxu0 %v3383
    %4048 = vmatpush1.msra.mxu0 %v3382
    %4049 = vmatprep.subr.mxu0 %v3378
    %4050 = vmatpush1.msra.mxu0 %v3377
    %4051 = vmatprep.subr.mxu0 %v3373
    %4052 = vmatpush1.msra.mxu0 %v3372
    %4053 = vmatprep.subr.mxu0 %v3368
    %4054 = vmatpush1.msra.mxu0 %v3367
    %4055 = vmatprep.subr.mxu0 %v3363
    %4056 = vmatpush1.msra.mxu0 %v3362
    %4057 = vmatprep.subr.mxu0 %v3358
    %4058 = vmatpush1.msra.mxu0 %v3357
    %4059 = vmatprep.subr.mxu0 %v3353
    %4060 = vmatpush1.msra.mxu0 %v3352
    %4061 = vmatprep.subr.mxu0 %v3348
    %4062 = vmatpush1.msra.mxu0 %v3347
    %4063 = vmatprep.subr.mxu0 %v3343
    %4064 = vmatpush1.msra.mxu0 %v3342
    %4065 = vmatprep.subr.mxu0 %v3338
    %4066 = vmatpush1.msra.mxu0 %v3337
    %4067 = vmatprep.subr.mxu0 %v3333
    %4068 = vmatpush1.msra.mxu0 %v3332
    %4069 = vmatprep.subr.mxu0 %v3328
    %4070 = vmatpush1.msra.mxu0 %v3327
    %4071 = vmatprep.subr.mxu0 %v3323
    %4072 = vmatpush1.msra.mxu0 %v3322
    %4073 = vmatprep.subr.mxu0 %v3478
    %4074 = vmatpush2.msra.mxu0 %v3477
    %4075 = vmatprep.subr.mxu0 %v3473
    %4076 = vmatpush2.msra.mxu0 %v3472
    %4077 = vmatprep.subr.mxu0 %v3468
    %4078 = vmatpush2.msra.mxu0 %v3467
    %4079 = vmatprep.subr.mxu0 %v3463
    %4080 = vmatpush2.msra.mxu0 %v3462
    %4081 = vmatprep.subr.mxu0 %v3458
    %4082 = vmatpush2.msra.mxu0 %v3457
    %4083 = vmatprep.subr.mxu0 %v3453
    %4084 = vmatpush2.msra.mxu0 %v3452
    %4085 = vmatprep.subr.mxu0 %v3448
    %4086 = vmatpush2.msra.mxu0 %v3447
    %4087 = vmatprep.subr.mxu0 %v3443
    %4088 = vmatpush2.msra.mxu0 %v3442
    %4089 = vmatprep.subr.mxu0 %v3438
    %4090 = vmatpush2.msra.mxu0 %v3437
    %4091 = vmatprep.subr.mxu0 %v3433
    %4092 = vmatpush2.msra.mxu0 %v3432
    %4093 = vmatprep.subr.mxu0 %v3428
    %4094 = vmatpush2.msra.mxu0 %v3427
    %4095 = vmatprep.subr.mxu0 %v3423
    %4096 = vmatpush2.msra.mxu0 %v3422
    %4097 = vmatprep.subr.mxu0 %v3418
    %4098 = vmatpush2.msra.mxu0 %v3417
    %4099 = vmatprep.subr.mxu0 %v3413
    %4100 = vmatpush2.msra.mxu0 %v3412
    %4101 = vmatprep.subr.mxu0 %v3408
    %4102 = vmatpush2.msra.mxu0 %v3407
    %4103 = vmatprep.subr.mxu0 %v3403
    %4104 = vmatpush2.msra.mxu0 %v3402
    %4105 = vmatprep.mubr.f32.mxu0 %v3297
    %4106 = vmatmul.mubr.f32.gmra.mxu0 %v3296
    %v4107 = vpop.f32.mrf.mxu0
    %v4108 = vadd.f32 0.0, %v4107
    %v4109 = vpop.f32.mrf.mxu0
    %v4110 = vadd.f32 0.0, %v4109
    %4111 = vmatprep.mubr.f32.mxu0 %v3309
    %4112 = vmatmul.mubr.f32.gmra.mxu0 %v3308
    %v4113 = vpop.f32.mrf.mxu0
    %v4114 = vadd.f32 0.0, %v4113
    %v4115 = vpop.f32.mrf.mxu0
    %v4116 = vadd.f32 0.0, %v4115
    %4117 = vdwg.mxu0
    %4118 = vmatprep.subr.mxu0 %v3558
    %4119 = vmatpush1.msra.mxu0 %v3557
    %4120 = vmatprep.subr.mxu0 %v3553
    %4121 = vmatpush1.msra.mxu0 %v3552
    %4122 = vmatprep.subr.mxu0 %v3548
    %4123 = vmatpush1.msra.mxu0 %v3547
    %4124 = vmatprep.subr.mxu0 %v3543
    %4125 = vmatpush1.msra.mxu0 %v3542
    %4126 = vmatprep.subr.mxu0 %v3538
    %4127 = vmatpush1.msra.mxu0 %v3537
    %4128 = vmatprep.subr.mxu0 %v3533
    %4129 = vmatpush1.msra.mxu0 %v3532
    %4130 = vmatprep.subr.mxu0 %v3528
    %4131 = vmatpush1.msra.mxu0 %v3527
    %4132 = vmatprep.subr.mxu0 %v3523
    %4133 = vmatpush1.msra.mxu0 %v3522
    %4134 = vmatprep.subr.mxu0 %v3518
    %4135 = vmatpush1.msra.mxu0 %v3517
    %4136 = vmatprep.subr.mxu0 %v3513
    %4137 = vmatpush1.msra.mxu0 %v3512
    %4138 = vmatprep.subr.mxu0 %v3508
    %4139 = vmatpush1.msra.mxu0 %v3507
    %4140 = vmatprep.subr.mxu0 %v3503
    %4141 = vmatpush1.msra.mxu0 %v3502
    %4142 = vmatprep.subr.mxu0 %v3498
    %4143 = vmatpush1.msra.mxu0 %v3497
    %4144 = vmatprep.subr.mxu0 %v3493
    %4145 = vmatpush1.msra.mxu0 %v3492
    %4146 = vmatprep.subr.mxu0 %v3488
    %4147 = vmatpush1.msra.mxu0 %v3487
    %4148 = vmatprep.subr.mxu0 %v3483
    %4149 = vmatpush1.msra.mxu0 %v3482
    %4150 = vmatprep.subr.mxu0 %v3638
    %4151 = vmatpush2.msra.mxu0 %v3637
    %4152 = vmatprep.subr.mxu0 %v3633
    %4153 = vmatpush2.msra.mxu0 %v3632
    %4154 = vmatprep.subr.mxu0 %v3628
    %4155 = vmatpush2.msra.mxu0 %v3627
    %4156 = vmatprep.subr.mxu0 %v3623
    %4157 = vmatpush2.msra.mxu0 %v3622
    %4158 = vmatprep.subr.mxu0 %v3618
    %4159 = vmatpush2.msra.mxu0 %v3617
    %4160 = vmatprep.subr.mxu0 %v3613
    %4161 = vmatpush2.msra.mxu0 %v3612
    %4162 = vmatprep.subr.mxu0 %v3608
    %4163 = vmatpush2.msra.mxu0 %v3607
    %4164 = vmatprep.subr.mxu0 %v3603
    %4165 = vmatpush2.msra.mxu0 %v3602
    %4166 = vmatprep.subr.mxu0 %v3598
    %4167 = vmatpush2.msra.mxu0 %v3597
    %4168 = vmatprep.subr.mxu0 %v3593
    %4169 = vmatpush2.msra.mxu0 %v3592
    %4170 = vmatprep.subr.mxu0 %v3588
    %4171 = vmatpush2.msra.mxu0 %v3587
    %4172 = vmatprep.subr.mxu0 %v3583
    %4173 = vmatpush2.msra.mxu0 %v3582
    %4174 = vmatprep.subr.mxu0 %v3578
    %4175 = vmatpush2.msra.mxu0 %v3577
    %4176 = vmatprep.subr.mxu0 %v3573
    %4177 = vmatpush2.msra.mxu0 %v3572
    %4178 = vmatprep.subr.mxu0 %v3568
    %4179 = vmatpush2.msra.mxu0 %v3567
    %4180 = vmatprep.subr.mxu0 %v3563
    %4181 = vmatpush2.msra.mxu0 %v3562
    %4182 = vmatprep.mubr.f32.mxu0 %v3299
    %4183 = vmatmul.mubr.f32.gmra.mxu0 %v3298
    %v4184 = vpop.f32.mrf.mxu0
    %v4185 = vadd.f32 %v4108, %v4184
    %v4186 = vpop.f32.mrf.mxu0
    %v4187 = vadd.f32 %v4110, %v4186
    %4188 = vmatprep.mubr.f32.mxu0 %v3311
    %4189 = vmatmul.mubr.f32.gmra.mxu0 %v3310
    %v4190 = vpop.f32.mrf.mxu0
    %v4191 = vadd.f32 %v4114, %v4190
    %v4192 = vpop.f32.mrf.mxu0
    %v4193 = vadd.f32 %v4116, %v4192
    %4194 = vdwg.mxu0
    %4195 = vmatprep.subr.mxu0 %v3718
    %4196 = vmatpush1.msra.mxu0 %v3717
    %4197 = vmatprep.subr.mxu0 %v3713
    %4198 = vmatpush1.msra.mxu0 %v3712
    %4199 = vmatprep.subr.mxu0 %v3708
    %4200 = vmatpush1.msra.mxu0 %v3707
    %4201 = vmatprep.subr.mxu0 %v3703
    %4202 = vmatpush1.msra.mxu0 %v3702
    %4203 = vmatprep.subr.mxu0 %v3698
    %4204 = vmatpush1.msra.mxu0 %v3697
    %4205 = vmatprep.subr.mxu0 %v3693
    %4206 = vmatpush1.msra.mxu0 %v3692
    %4207 = vmatprep.subr.mxu0 %v3688
    %4208 = vmatpush1.msra.mxu0 %v3687
    %4209 = vmatprep.subr.mxu0 %v3683
    %4210 = vmatpush1.msra.mxu0 %v3682
    %4211 = vmatprep.subr.mxu0 %v3678
    %4212 = vmatpush1.msra.mxu0 %v3677
    %4213 = vmatprep.subr.mxu0 %v3673
    %4214 = vmatpush1.msra.mxu0 %v3672
    %4215 = vmatprep.subr.mxu0 %v3668
    %4216 = vmatpush1.msra.mxu0 %v3667
    %4217 = vmatprep.subr.mxu0 %v3663
    %4218 = vmatpush1.msra.mxu0 %v3662
    %4219 = vmatprep.subr.mxu0 %v3658
    %4220 = vmatpush1.msra.mxu0 %v3657
    %4221 = vmatprep.subr.mxu0 %v3653
    %4222 = vmatpush1.msra.mxu0 %v3652
    %4223 = vmatprep.subr.mxu0 %v3648
    %4224 = vmatpush1.msra.mxu0 %v3647
    %4225 = vmatprep.subr.mxu0 %v3643
    %4226 = vmatpush1.msra.mxu0 %v3642
    %4227 = vmatprep.subr.mxu0 %v3798
    %4228 = vmatpush2.msra.mxu0 %v3797
    %4229 = vmatprep.subr.mxu0 %v3793
    %4230 = vmatpush2.msra.mxu0 %v3792
    %4231 = vmatprep.subr.mxu0 %v3788
    %4232 = vmatpush2.msra.mxu0 %v3787
    %4233 = vmatprep.subr.mxu0 %v3783
    %4234 = vmatpush2.msra.mxu0 %v3782
    %4235 = vmatprep.subr.mxu0 %v3778
    %4236 = vmatpush2.msra.mxu0 %v3777
    %4237 = vmatprep.subr.mxu0 %v3773
    %4238 = vmatpush2.msra.mxu0 %v3772
    %4239 = vmatprep.subr.mxu0 %v3768
    %4240 = vmatpush2.msra.mxu0 %v3767
    %4241 = vmatprep.subr.mxu0 %v3763
    %4242 = vmatpush2.msra.mxu0 %v3762
    %4243 = vmatprep.subr.mxu0 %v3758
    %4244 = vmatpush2.msra.mxu0 %v3757
    %4245 = vmatprep.subr.mxu0 %v3753
    %4246 = vmatpush2.msra.mxu0 %v3752
    %4247 = vmatprep.subr.mxu0 %v3748
    %4248 = vmatpush2.msra.mxu0 %v3747
    %4249 = vmatprep.subr.mxu0 %v3743
    %4250 = vmatpush2.msra.mxu0 %v3742
    %4251 = vmatprep.subr.mxu0 %v3738
    %4252 = vmatpush2.msra.mxu0 %v3737
    %4253 = vmatprep.subr.mxu0 %v3733
    %4254 = vmatpush2.msra.mxu0 %v3732
    %4255 = vmatprep.subr.mxu0 %v3728
    %4256 = vmatpush2.msra.mxu0 %v3727
    %4257 = vmatprep.subr.mxu0 %v3723
    %4258 = vmatpush2.msra.mxu0 %v3722
    %4259 = vmatprep.mubr.f32.mxu0 %v3301
    %4260 = vmatmul.mubr.f32.gmra.mxu0 %v3300
    %v4261 = vpop.f32.mrf.mxu0
    %v4262 = vadd.f32 %v4185, %v4261
    %v4263 = vpop.f32.mrf.mxu0
    %v4264 = vadd.f32 %v4187, %v4263
    %4265 = vmatprep.mubr.f32.mxu0 %v3313
    %4266 = vmatmul.mubr.f32.gmra.mxu0 %v3312
    %v4267 = vpop.f32.mrf.mxu0
    %v4268 = vadd.f32 %v4191, %v4267
    %v4269 = vpop.f32.mrf.mxu0
    %v4270 = vadd.f32 %v4193, %v4269
    %4271 = vdwg.mxu0
    %4272 = vmatprep.subr.mxu0 0.0
    %4273 = vmatpush1.msra.mxu0 %v3399
    %4274 = vmatprep.subr.mxu0 0.0
    %4275 = vmatpush1.msra.mxu0 %v3394
    %4276 = vmatprep.subr.mxu0 0.0
    %4277 = vmatpush1.msra.mxu0 %v3389
    %4278 = vmatprep.subr.mxu0 0.0
    %4279 = vmatpush1.msra.mxu0 %v3384
    %4280 = vmatprep.subr.mxu0 0.0
    %4281 = vmatpush1.msra.mxu0 %v3379
    %4282 = vmatprep.subr.mxu0 0.0
    %4283 = vmatpush1.msra.mxu0 %v3374
    %4284 = vmatprep.subr.mxu0 0.0
    %4285 = vmatpush1.msra.mxu0 %v3369
    %4286 = vmatprep.subr.mxu0 0.0
    %4287 = vmatpush1.msra.mxu0 %v3364
    %4288 = vmatprep.subr.mxu0 0.0
    %4289 = vmatpush1.msra.mxu0 %v3359
    %4290 = vmatprep.subr.mxu0 0.0
    %4291 = vmatpush1.msra.mxu0 %v3354
    %4292 = vmatprep.subr.mxu0 0.0
    %4293 = vmatpush1.msra.mxu0 %v3349
    %4294 = vmatprep.subr.mxu0 0.0
    %4295 = vmatpush1.msra.mxu0 %v3344
    %4296 = vmatprep.subr.mxu0 0.0
    %4297 = vmatpush1.msra.mxu0 %v3339
    %4298 = vmatprep.subr.mxu0 0.0
    %4299 = vmatpush1.msra.mxu0 %v3334
    %4300 = vmatprep.subr.mxu0 0.0
    %4301 = vmatpush1.msra.mxu0 %v3329
    %4302 = vmatprep.subr.mxu0 0.0
    %4303 = vmatpush1.msra.mxu0 %v3324
    %4304 = vmatprep.subr.mxu0 0.0
    %4305 = vmatpush2.msra.mxu0 %v3479
    %4306 = vmatprep.subr.mxu0 0.0
    %4307 = vmatpush2.msra.mxu0 %v3474
    %4308 = vmatprep.subr.mxu0 0.0
    %4309 = vmatpush2.msra.mxu0 %v3469
    %4310 = vmatprep.subr.mxu0 0.0
    %4311 = vmatpush2.msra.mxu0 %v3464
    %4312 = vmatprep.subr.mxu0 0.0
    %4313 = vmatpush2.msra.mxu0 %v3459
    %4314 = vmatprep.subr.mxu0 0.0
    %4315 = vmatpush2.msra.mxu0 %v3454
    %4316 = vmatprep.subr.mxu0 0.0
    %4317 = vmatpush2.msra.mxu0 %v3449
    %4318 = vmatprep.subr.mxu0 0.0
    %4319 = vmatpush2.msra.mxu0 %v3444
    %4320 = vmatprep.subr.mxu0 0.0
    %4321 = vmatpush2.msra.mxu0 %v3439
    %4322 = vmatprep.subr.mxu0 0.0
    %4323 = vmatpush2.msra.mxu0 %v3434
    %4324 = vmatprep.subr.mxu0 0.0
    %4325 = vmatpush2.msra.mxu0 %v3429
    %4326 = vmatprep.subr.mxu0 0.0
    %4327 = vmatpush2.msra.mxu0 %v3424
    %4328 = vmatprep.subr.mxu0 0.0
    %4329 = vmatpush2.msra.mxu0 %v3419
    %4330 = vmatprep.subr.mxu0 0.0
    %4331 = vmatpush2.msra.mxu0 %v3414
    %4332 = vmatprep.subr.mxu0 0.0
    %4333 = vmatpush2.msra.mxu0 %v3409
    %4334 = vmatprep.subr.mxu0 0.0
    %4335 = vmatpush2.msra.mxu0 %v3404
    %4336 = vmatprep.mubr.f32.mxu0 %v3297
    %4337 = vmatmul.mubr.f32.gmra.mxu0 %v3296
    %v4338 = vpop.f32.mrf.mxu0
    %v4339 = vadd.f32 0.0, %v4338
    %v4340 = vpop.f32.mrf.mxu0
    %4341 = vmatprep.mubr.f32.mxu0 %v3309
    %4342 = vmatmul.mubr.f32.gmra.mxu0 %v3308
    %v4343 = vpop.f32.mrf.mxu0
    %v4344 = vadd.f32 0.0, %v4343
    %v4345 = vpop.f32.mrf.mxu0
    %4346 = vdwg.mxu0
    %4347 = vmatprep.subr.mxu0 0.0
    %4348 = vmatpush1.msra.mxu0 %v3559
    %4349 = vmatprep.subr.mxu0 0.0
    %4350 = vmatpush1.msra.mxu0 %v3554
    %4351 = vmatprep.subr.mxu0 0.0
    %4352 = vmatpush1.msra.mxu0 %v3549
    %4353 = vmatprep.subr.mxu0 0.0
    %4354 = vmatpush1.msra.mxu0 %v3544
    %4355 = vmatprep.subr.mxu0 0.0
    %4356 = vmatpush1.msra.mxu0 %v3539
    %4357 = vmatprep.subr.mxu0 0.0
    %4358 = vmatpush1.msra.mxu0 %v3534
    %4359 = vmatprep.subr.mxu0 0.0
    %4360 = vmatpush1.msra.mxu0 %v3529
    %4361 = vmatprep.subr.mxu0 0.0
    %4362 = vmatpush1.msra.mxu0 %v3524
    %4363 = vmatprep.subr.mxu0 0.0
    %4364 = vmatpush1.msra.mxu0 %v3519
    %4365 = vmatprep.subr.mxu0 0.0
    %4366 = vmatpush1.msra.mxu0 %v3514
    %4367 = vmatprep.subr.mxu0 0.0
    %4368 = vmatpush1.msra.mxu0 %v3509
    %4369 = vmatprep.subr.mxu0 0.0
    %4370 = vmatpush1.msra.mxu0 %v3504
    %4371 = vmatprep.subr.mxu0 0.0
    %4372 = vmatpush1.msra.mxu0 %v3499
    %4373 = vmatprep.subr.mxu0 0.0
    %4374 = vmatpush1.msra.mxu0 %v3494
    %4375 = vmatprep.subr.mxu0 0.0
    %4376 = vmatpush1.msra.mxu0 %v3489
    %4377 = vmatprep.subr.mxu0 0.0
    %4378 = vmatpush1.msra.mxu0 %v3484
    %4379 = vmatprep.subr.mxu0 0.0
    %4380 = vmatpush2.msra.mxu0 %v3639
    %4381 = vmatprep.subr.mxu0 0.0
    %4382 = vmatpush2.msra.mxu0 %v3634
    %4383 = vmatprep.subr.mxu0 0.0
    %4384 = vmatpush2.msra.mxu0 %v3629
    %4385 = vmatprep.subr.mxu0 0.0
    %4386 = vmatpush2.msra.mxu0 %v3624
    %4387 = vmatprep.subr.mxu0 0.0
    %4388 = vmatpush2.msra.mxu0 %v3619
    %4389 = vmatprep.subr.mxu0 0.0
    %4390 = vmatpush2.msra.mxu0 %v3614
    %4391 = vmatprep.subr.mxu0 0.0
    %4392 = vmatpush2.msra.mxu0 %v3609
    %4393 = vmatprep.subr.mxu0 0.0
    %4394 = vmatpush2.msra.mxu0 %v3604
    %4395 = vmatprep.subr.mxu0 0.0
    %4396 = vmatpush2.msra.mxu0 %v3599
    %4397 = vmatprep.subr.mxu0 0.0
    %4398 = vmatpush2.msra.mxu0 %v3594
    %4399 = vmatprep.subr.mxu0 0.0
    %4400 = vmatpush2.msra.mxu0 %v3589
    %4401 = vmatprep.subr.mxu0 0.0
    %4402 = vmatpush2.msra.mxu0 %v3584
    %4403 = vmatprep.subr.mxu0 0.0
    %4404 = vmatpush2.msra.mxu0 %v3579
    %4405 = vmatprep.subr.mxu0 0.0
    %4406 = vmatpush2.msra.mxu0 %v3574
    %4407 = vmatprep.subr.mxu0 0.0
    %4408 = vmatpush2.msra.mxu0 %v3569
    %4409 = vmatprep.subr.mxu0 0.0
    %4410 = vmatpush2.msra.mxu0 %v3564
    %4411 = vmatprep.mubr.f32.mxu0 %v3299
    %4412 = vmatmul.mubr.f32.gmra.mxu0 %v3298
    %v4413 = vpop.f32.mrf.mxu0
    %v4414 = vadd.f32 %v4339, %v4413
    %v4415 = vpop.f32.mrf.mxu0
    %4416 = vmatprep.mubr.f32.mxu0 %v3311
    %4417 = vmatmul.mubr.f32.gmra.mxu0 %v3310
    %v4418 = vpop.f32.mrf.mxu0
    %v4419 = vadd.f32 %v4344, %v4418
    %v4420 = vpop.f32.mrf.mxu0
    %4421 = vdwg.mxu0
    %4422 = vmatprep.subr.mxu0 0.0
    %4423 = vmatpush1.msra.mxu0 %v3719
    %4424 = vmatprep.subr.mxu0 0.0
    %4425 = vmatpush1.msra.mxu0 %v3714
    %4426 = vmatprep.subr.mxu0 0.0
    %4427 = vmatpush1.msra.mxu0 %v3709
    %4428 = vmatprep.subr.mxu0 0.0
    %4429 = vmatpush1.msra.mxu0 %v3704
    %4430 = vmatprep.subr.mxu0 0.0
    %4431 = vmatpush1.msra.mxu0 %v3699
    %4432 = vmatprep.subr.mxu0 0.0
    %4433 = vmatpush1.msra.mxu0 %v3694
    %4434 = vmatprep.subr.mxu0 0.0
    %4435 = vmatpush1.msra.mxu0 %v3689
    %4436 = vmatprep.subr.mxu0 0.0
    %4437 = vmatpush1.msra.mxu0 %v3684
    %4438 = vmatprep.subr.mxu0 0.0
    %4439 = vmatpush1.msra.mxu0 %v3679
    %4440 = vmatprep.subr.mxu0 0.0
    %4441 = vmatpush1.msra.mxu0 %v3674
    %4442 = vmatprep.subr.mxu0 0.0
    %4443 = vmatpush1.msra.mxu0 %v3669
    %4444 = vmatprep.subr.mxu0 0.0
    %4445 = vmatpush1.msra.mxu0 %v3664
    %4446 = vmatprep.subr.mxu0 0.0
    %4447 = vmatpush1.msra.mxu0 %v3659
    %4448 = vmatprep.subr.mxu0 0.0
    %4449 = vmatpush1.msra.mxu0 %v3654
    %4450 = vmatprep.subr.mxu0 0.0
    %4451 = vmatpush1.msra.mxu0 %v3649
    %4452 = vmatprep.subr.mxu0 0.0
    %4453 = vmatpush1.msra.mxu0 %v3644
    %4454 = vmatprep.subr.mxu0 0.0
    %4455 = vmatpush2.msra.mxu0 %v3799
    %4456 = vmatprep.subr.mxu0 0.0
    %4457 = vmatpush2.msra.mxu0 %v3794
    %4458 = vmatprep.subr.mxu0 0.0
    %4459 = vmatpush2.msra.mxu0 %v3789
    %4460 = vmatprep.subr.mxu0 0.0
    %4461 = vmatpush2.msra.mxu0 %v3784
    %4462 = vmatprep.subr.mxu0 0.0
    %4463 = vmatpush2.msra.mxu0 %v3779
    %4464 = vmatprep.subr.mxu0 0.0
    %4465 = vmatpush2.msra.mxu0 %v3774
    %4466 = vmatprep.subr.mxu0 0.0
    %4467 = vmatpush2.msra.mxu0 %v3769
    %4468 = vmatprep.subr.mxu0 0.0
    %4469 = vmatpush2.msra.mxu0 %v3764
    %4470 = vmatprep.subr.mxu0 0.0
    %4471 = vmatpush2.msra.mxu0 %v3759
    %4472 = vmatprep.subr.mxu0 0.0
    %4473 = vmatpush2.msra.mxu0 %v3754
    %4474 = vmatprep.subr.mxu0 0.0
    %4475 = vmatpush2.msra.mxu0 %v3749
    %4476 = vmatprep.subr.mxu0 0.0
    %4477 = vmatpush2.msra.mxu0 %v3744
    %4478 = vmatprep.subr.mxu0 0.0
    %4479 = vmatpush2.msra.mxu0 %v3739
    %4480 = vmatprep.subr.mxu0 0.0
    %4481 = vmatpush2.msra.mxu0 %v3734
    %4482 = vmatprep.subr.mxu0 0.0
    %4483 = vmatpush2.msra.mxu0 %v3729
    %4484 = vmatprep.subr.mxu0 0.0
    %4485 = vmatpush2.msra.mxu0 %v3724
    %4486 = vmatprep.mubr.f32.mxu0 %v3301
    %4487 = vmatmul.mubr.f32.gmra.mxu0 %v3300
    %v4488 = vpop.f32.mrf.mxu0
    %v4489 = vadd.f32 %v4414, %v4488
    %v4490 = vpop.f32.mrf.mxu0
    %4491 = vmatprep.mubr.f32.mxu0 %v3313
    %4492 = vmatmul.mubr.f32.gmra.mxu0 %v3312
    %v4493 = vpop.f32.mrf.mxu0
    %v4494 = vadd.f32 %v4419, %v4493
    %v4495 = vpop.f32.mrf.mxu0
    %4496 = vdwg.mxu0
    %v4497 = vmul.f32 %v4031, %v3800
    %v4498 = vmul.f32 %v4033, %v3801
    %v4499 = vmul.f32 %v4262, %v3802
    %v4500 = vmul.f32 %v4264, %v3803
    %v4501 = vmul.f32 %v4489, %v3804
    %v4502 = vmul.f32 %v4037, %v3805
    %v4503 = vmul.f32 %v4039, %v3806
    %v4504 = vmul.f32 %v4268, %v3807
    %v4505 = vmul.f32 %v4270, %v3808
    %v4506 = vmul.f32 %v4494, %v3809
    %v4507 = vadd.f32 %v4497, %v4502
    %v4508 = vrot.slane %v4507, 4
    %v4509 = vadd.f32 %v4507, %v4508
    %v4510 = vrot.slane %v4509, 2
    %v4511 = vadd.f32 %v4509, %v4510
    %v4512 = vrot.slane %v4511, 1
    %v4513 = vadd.f32 %v4511, %v4512
    %v4514 = vadd.f32 %v4498, %v4503
    %v4515 = vrot.slane %v4514, 4
    %v4516 = vadd.f32 %v4514, %v4515
    %v4517 = vrot.slane %v4516, 2
    %v4518 = vadd.f32 %v4516, %v4517
    %v4519 = vrot.slane %v4518, 1
    %v4520 = vadd.f32 %v4518, %v4519
    %v4521 = vadd.f32 %v4499, %v4504
    %v4522 = vrot.slane %v4521, 4
    %v4523 = vadd.f32 %v4521, %v4522
    %v4524 = vrot.slane %v4523, 2
    %v4525 = vadd.f32 %v4523, %v4524
    %v4526 = vrot.slane %v4525, 1
    %v4527 = vadd.f32 %v4525, %v4526
    %v4528 = vadd.f32 %v4500, %v4505
    %v4529 = vrot.slane %v4528, 4
    %v4530 = vadd.f32 %v4528, %v4529
    %v4531 = vrot.slane %v4530, 2
    %v4532 = vadd.f32 %v4530, %v4531
    %v4533 = vrot.slane %v4532, 1
    %v4534 = vadd.f32 %v4532, %v4533
    %v4535 = vsel %vm881, %v4501, 0.0
    %v4536 = vsel %vm881, %v4506, 0.0
    %v4537 = vadd.f32 %v4535, %v4536
    %v4538 = vrot.slane %v4537, 4
    %v4539 = vadd.f32 %v4537, %v4538
    %v4540 = vrot.slane %v4539, 2
    %v4541 = vadd.f32 %v4539, %v4540
    %v4542 = vrot.slane %v4541, 1
    %v4543 = vadd.f32 %v4541, %v4542
    %v4549 = vcombine.low %v4513, %v4520
    %v4550 = vcombine.low %v4527, %v4534
    %v4552 = vunpack.c.l.s4 1966171168
    %v4553 = vunpack.c.0.s8 %v4552
    %v4554 = vlaneseq
    %v4555 = vshrl.u32 %v4554, 7
    %v4556 = vsub.s32 %v4553, %v4555
    %v4557 = vrot.slane %v4549, %v4556
    %v4559 = vunpack.c.l.s4 1966171168
    %v4560 = vunpack.c.0.s8 %v4559
    %v4561 = vlaneseq
    %v4562 = vshrl.u32 %v4561, 7
    %v4563 = vsub.s32 %v4560, %v4562
    %v4564 = vrot.slane %v4550, %v4563
    %v4566 = vunpack.c.l.s4 1966171168
    %v4567 = vunpack.c.0.s8 %v4566
    %v4568 = vlaneseq
    %v4569 = vshrl.u32 %v4568, 7
    %v4570 = vsub.s32 %v4567, %v4569
    %v4571 = vrot.slane %v4543, %v4570
    %v4572 = vcombine.low %v4557, %v4564
    %v4574 = vunpack.c.l.s4 1966171168
    %v4575 = vunpack.c.0.s8 %v4574
    %v4576 = vlaneseq
    %v4577 = vshrl.u32 %v4576, 7
    %v4578 = vsub.s32 %v4575, %v4577
    %v4579 = vrot.slane %v4572, %v4578
    %v4581 = vunpack.c.l.s4 1966171168
    %v4582 = vunpack.c.0.s8 %v4581
    %v4583 = vlaneseq
    %v4584 = vshrl.u32 %v4583, 7
    %v4585 = vsub.s32 %v4582, %v4584
    %v4586 = vrot.slane %v4571, %v4585
    %v4587 = vcombine.low %v4579, %v4586
    %v4589 = vlaneseq
    %vm4590 = vcmp.ge.s32.totalorder %v4589, 0
    %vm4591 = vcmp.lt.s32.totalorder %v4589, 576
    %vm4592 = vmand %vm4590, %vm4591
    %4593 = vst.msk [vmem:[#allocation3] ss:$2 sm:$0x1f] %vm4592, %v4587
    %4594 = vmatprep.subr.mxu0 %v3396
    %4595 = vmatpush1.msra.mxu0 %v3395
    %4596 = vmatprep.subr.mxu0 %v3391
    %4597 = vmatpush1.msra.mxu0 %v3390
    %4598 = vmatprep.subr.mxu0 %v3386
    %4599 = vmatpush1.msra.mxu0 %v3385
    %4600 = vmatprep.subr.mxu0 %v3381
    %4601 = vmatpush1.msra.mxu0 %v3380
    %4602 = vmatprep.subr.mxu0 %v3376
    %4603 = vmatpush1.msra.mxu0 %v3375
    %4604 = vmatprep.subr.mxu0 %v3371
    %4605 = vmatpush1.msra.mxu0 %v3370
    %4606 = vmatprep.subr.mxu0 %v3366
    %4607 = vmatpush1.msra.mxu0 %v3365
    %4608 = vmatprep.subr.mxu0 %v3361
    %4609 = vmatpush1.msra.mxu0 %v3360
    %4610 = vmatprep.subr.mxu0 %v3356
    %4611 = vmatpush1.msra.mxu0 %v3355
    %4612 = vmatprep.subr.mxu0 %v3351
    %4613 = vmatpush1.msra.mxu0 %v3350
    %4614 = vmatprep.subr.mxu0 %v3346
    %4615 = vmatpush1.msra.mxu0 %v3345
    %4616 = vmatprep.subr.mxu0 %v3341
    %4617 = vmatpush1.msra.mxu0 %v3340
    %4618 = vmatprep.subr.mxu0 %v3336
    %4619 = vmatpush1.msra.mxu0 %v3335
    %4620 = vmatprep.subr.mxu0 %v3331
    %4621 = vmatpush1.msra.mxu0 %v3330
    %4622 = vmatprep.subr.mxu0 %v3326
    %4623 = vmatpush1.msra.mxu0 %v3325
    %4624 = vmatprep.subr.mxu0 %v3321
    %4625 = vmatpush1.msra.mxu0 %v3320
    %4626 = vmatprep.subr.mxu0 %v3476
    %4627 = vmatpush2.msra.mxu0 %v3475
    %4628 = vmatprep.subr.mxu0 %v3471
    %4629 = vmatpush2.msra.mxu0 %v3470
    %4630 = vmatprep.subr.mxu0 %v3466
    %4631 = vmatpush2.msra.mxu0 %v3465
    %4632 = vmatprep.subr.mxu0 %v3461
    %4633 = vmatpush2.msra.mxu0 %v3460
    %4634 = vmatprep.subr.mxu0 %v3456
    %4635 = vmatpush2.msra.mxu0 %v3455
    %4636 = vmatprep.subr.mxu0 %v3451
    %4637 = vmatpush2.msra.mxu0 %v3450
    %4638 = vmatprep.subr.mxu0 %v3446
    %4639 = vmatpush2.msra.mxu0 %v3445
    %4640 = vmatprep.subr.mxu0 %v3441
    %4641 = vmatpush2.msra.mxu0 %v3440
    %4642 = vmatprep.subr.mxu0 %v3436
    %4643 = vmatpush2.msra.mxu0 %v3435
    %4644 = vmatprep.subr.mxu0 %v3431
    %4645 = vmatpush2.msra.mxu0 %v3430
    %4646 = vmatprep.subr.mxu0 %v3426
    %4647 = vmatpush2.msra.mxu0 %v3425
    %4648 = vmatprep.subr.mxu0 %v3421
    %4649 = vmatpush2.msra.mxu0 %v3420
    %4650 = vmatprep.subr.mxu0 %v3416
    %4651 = vmatpush2.msra.mxu0 %v3415
    %4652 = vmatprep.subr.mxu0 %v3411
    %4653 = vmatpush2.msra.mxu0 %v3410
    %4654 = vmatprep.subr.mxu0 %v3406
    %4655 = vmatpush2.msra.mxu0 %v3405
    %4656 = vmatprep.subr.mxu0 %v3401
    %4657 = vmatpush2.msra.mxu0 %v3400
    %4658 = vmatprep.mubr.f32.mxu0 %v3303
    %4659 = vmatmul.mubr.f32.gmra.mxu0 %v3302
    %v4660 = vpop.f32.mrf.mxu0
    %v4661 = vadd.f32 0.0, %v4660
    %v4662 = vpop.f32.mrf.mxu0
    %v4663 = vadd.f32 0.0, %v4662
    %4664 = vmatprep.mubr.f32.mxu0 %v3315
    %4665 = vmatmul.mubr.f32.gmra.mxu0 %v3314
    %v4666 = vpop.f32.mrf.mxu0
    %v4667 = vadd.f32 0.0, %v4666
    %v4668 = vpop.f32.mrf.mxu0
    %v4669 = vadd.f32 0.0, %v4668
    %4670 = vdwg.mxu0
    %4671 = vmatprep.subr.mxu0 %v3556
    %4672 = vmatpush1.msra.mxu0 %v3555
    %4673 = vmatprep.subr.mxu0 %v3551
    %4674 = vmatpush1.msra.mxu0 %v3550
    %4675 = vmatprep.subr.mxu0 %v3546
    %4676 = vmatpush1.msra.mxu0 %v3545
    %4677 = vmatprep.subr.mxu0 %v3541
    %4678 = vmatpush1.msra.mxu0 %v3540
    %4679 = vmatprep.subr.mxu0 %v3536
    %4680 = vmatpush1.msra.mxu0 %v3535
    %4681 = vmatprep.subr.mxu0 %v3531
    %4682 = vmatpush1.msra.mxu0 %v3530
    %4683 = vmatprep.subr.mxu0 %v3526
    %4684 = vmatpush1.msra.mxu0 %v3525
    %4685 = vmatprep.subr.mxu0 %v3521
    %4686 = vmatpush1.msra.mxu0 %v3520
    %4687 = vmatprep.subr.mxu0 %v3516
    %4688 = vmatpush1.msra.mxu0 %v3515
    %4689 = vmatprep.subr.mxu0 %v3511
    %4690 = vmatpush1.msra.mxu0 %v3510
    %4691 = vmatprep.subr.mxu0 %v3506
    %4692 = vmatpush1.msra.mxu0 %v3505
    %4693 = vmatprep.subr.mxu0 %v3501
    %4694 = vmatpush1.msra.mxu0 %v3500
    %4695 = vmatprep.subr.mxu0 %v3496
    %4696 = vmatpush1.msra.mxu0 %v3495
    %4697 = vmatprep.subr.mxu0 %v3491
    %4698 = vmatpush1.msra.mxu0 %v3490
    %4699 = vmatprep.subr.mxu0 %v3486
    %4700 = vmatpush1.msra.mxu0 %v3485
    %4701 = vmatprep.subr.mxu0 %v3481
    %4702 = vmatpush1.msra.mxu0 %v3480
    %4703 = vmatprep.subr.mxu0 %v3636
    %4704 = vmatpush2.msra.mxu0 %v3635
    %4705 = vmatprep.subr.mxu0 %v3631
    %4706 = vmatpush2.msra.mxu0 %v3630
    %4707 = vmatprep.subr.mxu0 %v3626
    %4708 = vmatpush2.msra.mxu0 %v3625
    %4709 = vmatprep.subr.mxu0 %v3621
    %4710 = vmatpush2.msra.mxu0 %v3620
    %4711 = vmatprep.subr.mxu0 %v3616
    %4712 = vmatpush2.msra.mxu0 %v3615
    %4713 = vmatprep.subr.mxu0 %v3611
    %4714 = vmatpush2.msra.mxu0 %v3610
    %4715 = vmatprep.subr.mxu0 %v3606
    %4716 = vmatpush2.msra.mxu0 %v3605
    %4717 = vmatprep.subr.mxu0 %v3601
    %4718 = vmatpush2.msra.mxu0 %v3600
    %4719 = vmatprep.subr.mxu0 %v3596
    %4720 = vmatpush2.msra.mxu0 %v3595
    %4721 = vmatprep.subr.mxu0 %v3591
    %4722 = vmatpush2.msra.mxu0 %v3590
    %4723 = vmatprep.subr.mxu0 %v3586
    %4724 = vmatpush2.msra.mxu0 %v3585
    %4725 = vmatprep.subr.mxu0 %v3581
    %4726 = vmatpush2.msra.mxu0 %v3580
    %4727 = vmatprep.subr.mxu0 %v3576
    %4728 = vmatpush2.msra.mxu0 %v3575
    %4729 = vmatprep.subr.mxu0 %v3571
    %4730 = vmatpush2.msra.mxu0 %v3570
    %4731 = vmatprep.subr.mxu0 %v3566
    %4732 = vmatpush2.msra.mxu0 %v3565
    %4733 = vmatprep.subr.mxu0 %v3561
    %4734 = vmatpush2.msra.mxu0 %v3560
    %4735 = vmatprep.mubr.f32.mxu0 %v3305
    %4736 = vmatmul.mubr.f32.gmra.mxu0 %v3304
    %v4737 = vpop.f32.mrf.mxu0
    %v4738 = vadd.f32 %v4661, %v4737
    %v4739 = vpop.f32.mrf.mxu0
    %v4740 = vadd.f32 %v4663, %v4739
    %4741 = vmatprep.mubr.f32.mxu0 %v3317
    %4742 = vmatmul.mubr.f32.gmra.mxu0 %v3316
    %v4743 = vpop.f32.mrf.mxu0
    %v4744 = vadd.f32 %v4667, %v4743
    %v4745 = vpop.f32.mrf.mxu0
    %v4746 = vadd.f32 %v4669, %v4745
    %4747 = vdwg.mxu0
    %4748 = vmatprep.subr.mxu0 %v3716
    %4749 = vmatpush1.msra.mxu0 %v3715
    %4750 = vmatprep.subr.mxu0 %v3711
    %4751 = vmatpush1.msra.mxu0 %v3710
    %4752 = vmatprep.subr.mxu0 %v3706
    %4753 = vmatpush1.msra.mxu0 %v3705
    %4754 = vmatprep.subr.mxu0 %v3701
    %4755 = vmatpush1.msra.mxu0 %v3700
    %4756 = vmatprep.subr.mxu0 %v3696
    %4757 = vmatpush1.msra.mxu0 %v3695
    %4758 = vmatprep.subr.mxu0 %v3691
    %4759 = vmatpush1.msra.mxu0 %v3690
    %4760 = vmatprep.subr.mxu0 %v3686
    %4761 = vmatpush1.msra.mxu0 %v3685
    %4762 = vmatprep.subr.mxu0 %v3681
    %4763 = vmatpush1.msra.mxu0 %v3680
    %4764 = vmatprep.subr.mxu0 %v3676
    %4765 = vmatpush1.msra.mxu0 %v3675
    %4766 = vmatprep.subr.mxu0 %v3671
    %4767 = vmatpush1.msra.mxu0 %v3670
    %4768 = vmatprep.subr.mxu0 %v3666
    %4769 = vmatpush1.msra.mxu0 %v3665
    %4770 = vmatprep.subr.mxu0 %v3661
    %4771 = vmatpush1.msra.mxu0 %v3660
    %4772 = vmatprep.subr.mxu0 %v3656
    %4773 = vmatpush1.msra.mxu0 %v3655
    %4774 = vmatprep.subr.mxu0 %v3651
    %4775 = vmatpush1.msra.mxu0 %v3650
    %4776 = vmatprep.subr.mxu0 %v3646
    %4777 = vmatpush1.msra.mxu0 %v3645
    %4778 = vmatprep.subr.mxu0 %v3641
    %4779 = vmatpush1.msra.mxu0 %v3640
    %4780 = vmatprep.subr.mxu0 %v3796
    %4781 = vmatpush2.msra.mxu0 %v3795
    %4782 = vmatprep.subr.mxu0 %v3791
    %4783 = vmatpush2.msra.mxu0 %v3790
    %4784 = vmatprep.subr.mxu0 %v3786
    %4785 = vmatpush2.msra.mxu0 %v3785
    %4786 = vmatprep.subr.mxu0 %v3781
    %4787 = vmatpush2.msra.mxu0 %v3780
    %4788 = vmatprep.subr.mxu0 %v3776
    %4789 = vmatpush2.msra.mxu0 %v3775
    %4790 = vmatprep.subr.mxu0 %v3771
    %4791 = vmatpush2.msra.mxu0 %v3770
    %4792 = vmatprep.subr.mxu0 %v3766
    %4793 = vmatpush2.msra.mxu0 %v3765
    %4794 = vmatprep.subr.mxu0 %v3761
    %4795 = vmatpush2.msra.mxu0 %v3760
    %4796 = vmatprep.subr.mxu0 %v3756
    %4797 = vmatpush2.msra.mxu0 %v3755
    %4798 = vmatprep.subr.mxu0 %v3751
    %4799 = vmatpush2.msra.mxu0 %v3750
    %4800 = vmatprep.subr.mxu0 %v3746
    %4801 = vmatpush2.msra.mxu0 %v3745
    %4802 = vmatprep.subr.mxu0 %v3741
    %4803 = vmatpush2.msra.mxu0 %v3740
    %4804 = vmatprep.subr.mxu0 %v3736
    %4805 = vmatpush2.msra.mxu0 %v3735
    %4806 = vmatprep.subr.mxu0 %v3731
    %4807 = vmatpush2.msra.mxu0 %v3730
    %4808 = vmatprep.subr.mxu0 %v3726
    %4809 = vmatpush2.msra.mxu0 %v3725
    %4810 = vmatprep.subr.mxu0 %v3721
    %4811 = vmatpush2.msra.mxu0 %v3720
    %4812 = vmatprep.mubr.f32.mxu0 %v3307
    %4813 = vmatmul.mubr.f32.gmra.mxu0 %v3306
    %v4814 = vpop.f32.mrf.mxu0
    %v4815 = vadd.f32 %v4738, %v4814
    %v4816 = vpop.f32.mrf.mxu0
    %v4817 = vadd.f32 %v4740, %v4816
    %4818 = vmatprep.mubr.f32.mxu0 %v3319
    %4819 = vmatmul.mubr.f32.gmra.mxu0 %v3318
    %v4820 = vpop.f32.mrf.mxu0
    %v4821 = vadd.f32 %v4744, %v4820
    %v4822 = vpop.f32.mrf.mxu0
    %v4823 = vadd.f32 %v4746, %v4822
    %4824 = vdwg.mxu0
    %4825 = vmatprep.subr.mxu0 %v3398
    %4826 = vmatpush1.msra.mxu0 %v3397
    %4827 = vmatprep.subr.mxu0 %v3393
    %4828 = vmatpush1.msra.mxu0 %v3392
    %4829 = vmatprep.subr.mxu0 %v3388
    %4830 = vmatpush1.msra.mxu0 %v3387
    %4831 = vmatprep.subr.mxu0 %v3383
    %4832 = vmatpush1.msra.mxu0 %v3382
    %4833 = vmatprep.subr.mxu0 %v3378
    %4834 = vmatpush1.msra.mxu0 %v3377
    %4835 = vmatprep.subr.mxu0 %v3373
    %4836 = vmatpush1.msra.mxu0 %v3372
    %4837 = vmatprep.subr.mxu0 %v3368
    %4838 = vmatpush1.msra.mxu0 %v3367
    %4839 = vmatprep.subr.mxu0 %v3363
    %4840 = vmatpush1.msra.mxu0 %v3362
    %4841 = vmatprep.subr.mxu0 %v3358
    %4842 = vmatpush1.msra.mxu0 %v3357
    %4843 = vmatprep.subr.mxu0 %v3353
    %4844 = vmatpush1.msra.mxu0 %v3352
    %4845 = vmatprep.subr.mxu0 %v3348
    %4846 = vmatpush1.msra.mxu0 %v3347
    %4847 = vmatprep.subr.mxu0 %v3343
    %4848 = vmatpush1.msra.mxu0 %v3342
    %4849 = vmatprep.subr.mxu0 %v3338
    %4850 = vmatpush1.msra.mxu0 %v3337
    %4851 = vmatprep.subr.mxu0 %v3333
    %4852 = vmatpush1.msra.mxu0 %v3332
    %4853 = vmatprep.subr.mxu0 %v3328
    %4854 = vmatpush1.msra.mxu0 %v3327
    %4855 = vmatprep.subr.mxu0 %v3323
    %4856 = vmatpush1.msra.mxu0 %v3322
    %4857 = vmatprep.subr.mxu0 %v3478
    %4858 = vmatpush2.msra.mxu0 %v3477
    %4859 = vmatprep.subr.mxu0 %v3473
    %4860 = vmatpush2.msra.mxu0 %v3472
    %4861 = vmatprep.subr.mxu0 %v3468
    %4862 = vmatpush2.msra.mxu0 %v3467
    %4863 = vmatprep.subr.mxu0 %v3463
    %4864 = vmatpush2.msra.mxu0 %v3462
    %4865 = vmatprep.subr.mxu0 %v3458
    %4866 = vmatpush2.msra.mxu0 %v3457
    %4867 = vmatprep.subr.mxu0 %v3453
    %4868 = vmatpush2.msra.mxu0 %v3452
    %4869 = vmatprep.subr.mxu0 %v3448
    %4870 = vmatpush2.msra.mxu0 %v3447
    %4871 = vmatprep.subr.mxu0 %v3443
    %4872 = vmatpush2.msra.mxu0 %v3442
    %4873 = vmatprep.subr.mxu0 %v3438
    %4874 = vmatpush2.msra.mxu0 %v3437
    %4875 = vmatprep.subr.mxu0 %v3433
    %4876 = vmatpush2.msra.mxu0 %v3432
    %4877 = vmatprep.subr.mxu0 %v3428
    %4878 = vmatpush2.msra.mxu0 %v3427
    %4879 = vmatprep.subr.mxu0 %v3423
    %4880 = vmatpush2.msra.mxu0 %v3422
    %4881 = vmatprep.subr.mxu0 %v3418
    %4882 = vmatpush2.msra.mxu0 %v3417
    %4883 = vmatprep.subr.mxu0 %v3413
    %4884 = vmatpush2.msra.mxu0 %v3412
    %4885 = vmatprep.subr.mxu0 %v3408
    %4886 = vmatpush2.msra.mxu0 %v3407
    %4887 = vmatprep.subr.mxu0 %v3403
    %4888 = vmatpush2.msra.mxu0 %v3402
    %4889 = vmatprep.mubr.f32.mxu0 %v3303
    %4890 = vmatmul.mubr.f32.gmra.mxu0 %v3302
    %v4891 = vpop.f32.mrf.mxu0
    %v4892 = vadd.f32 0.0, %v4891
    %v4893 = vpop.f32.mrf.mxu0
    %v4894 = vadd.f32 0.0, %v4893
    %4895 = vmatprep.mubr.f32.mxu0 %v3315
    %4896 = vmatmul.mubr.f32.gmra.mxu0 %v3314
    %v4897 = vpop.f32.mrf.mxu0
    %v4898 = vadd.f32 0.0, %v4897
    %v4899 = vpop.f32.mrf.mxu0
    %v4900 = vadd.f32 0.0, %v4899
    %4901 = vdwg.mxu0
    %4902 = vmatprep.subr.mxu0 %v3558
    %4903 = vmatpush1.msra.mxu0 %v3557
    %4904 = vmatprep.subr.mxu0 %v3553
    %4905 = vmatpush1.msra.mxu0 %v3552
    %4906 = vmatprep.subr.mxu0 %v3548
    %4907 = vmatpush1.msra.mxu0 %v3547
    %4908 = vmatprep.subr.mxu0 %v3543
    %4909 = vmatpush1.msra.mxu0 %v3542
    %4910 = vmatprep.subr.mxu0 %v3538
    %4911 = vmatpush1.msra.mxu0 %v3537
    %4912 = vmatprep.subr.mxu0 %v3533
    %4913 = vmatpush1.msra.mxu0 %v3532
    %4914 = vmatprep.subr.mxu0 %v3528
    %4915 = vmatpush1.msra.mxu0 %v3527
    %4916 = vmatprep.subr.mxu0 %v3523
    %4917 = vmatpush1.msra.mxu0 %v3522
    %4918 = vmatprep.subr.mxu0 %v3518
    %4919 = vmatpush1.msra.mxu0 %v3517
    %4920 = vmatprep.subr.mxu0 %v3513
    %4921 = vmatpush1.msra.mxu0 %v3512
    %4922 = vmatprep.subr.mxu0 %v3508
    %4923 = vmatpush1.msra.mxu0 %v3507
    %4924 = vmatprep.subr.mxu0 %v3503
    %4925 = vmatpush1.msra.mxu0 %v3502
    %4926 = vmatprep.subr.mxu0 %v3498
    %4927 = vmatpush1.msra.mxu0 %v3497
    %4928 = vmatprep.subr.mxu0 %v3493
    %4929 = vmatpush1.msra.mxu0 %v3492
    %4930 = vmatprep.subr.mxu0 %v3488
    %4931 = vmatpush1.msra.mxu0 %v3487
    %4932 = vmatprep.subr.mxu0 %v3483
    %4933 = vmatpush1.msra.mxu0 %v3482
    %4934 = vmatprep.subr.mxu0 %v3638
    %4935 = vmatpush2.msra.mxu0 %v3637
    %4936 = vmatprep.subr.mxu0 %v3633
    %4937 = vmatpush2.msra.mxu0 %v3632
    %4938 = vmatprep.subr.mxu0 %v3628
    %4939 = vmatpush2.msra.mxu0 %v3627
    %4940 = vmatprep.subr.mxu0 %v3623
    %4941 = vmatpush2.msra.mxu0 %v3622
    %4942 = vmatprep.subr.mxu0 %v3618
    %4943 = vmatpush2.msra.mxu0 %v3617
    %4944 = vmatprep.subr.mxu0 %v3613
    %4945 = vmatpush2.msra.mxu0 %v3612
    %4946 = vmatprep.subr.mxu0 %v3608
    %4947 = vmatpush2.msra.mxu0 %v3607
    %4948 = vmatprep.subr.mxu0 %v3603
    %4949 = vmatpush2.msra.mxu0 %v3602
    %4950 = vmatprep.subr.mxu0 %v3598
    %4951 = vmatpush2.msra.mxu0 %v3597
    %4952 = vmatprep.subr.mxu0 %v3593
    %4953 = vmatpush2.msra.mxu0 %v3592
    %4954 = vmatprep.subr.mxu0 %v3588
    %4955 = vmatpush2.msra.mxu0 %v3587
    %4956 = vmatprep.subr.mxu0 %v3583
    %4957 = vmatpush2.msra.mxu0 %v3582
    %4958 = vmatprep.subr.mxu0 %v3578
    %4959 = vmatpush2.msra.mxu0 %v3577
    %4960 = vmatprep.subr.mxu0 %v3573
    %4961 = vmatpush2.msra.mxu0 %v3572
    %4962 = vmatprep.subr.mxu0 %v3568
    %4963 = vmatpush2.msra.mxu0 %v3567
    %4964 = vmatprep.subr.mxu0 %v3563
    %4965 = vmatpush2.msra.mxu0 %v3562
    %4966 = vmatprep.mubr.f32.mxu0 %v3305
    %4967 = vmatmul.mubr.f32.gmra.mxu0 %v3304
    %v4968 = vpop.f32.mrf.mxu0
    %v4969 = vadd.f32 %v4892, %v4968
    %v4970 = vpop.f32.mrf.mxu0
    %v4971 = vadd.f32 %v4894, %v4970
    %4972 = vmatprep.mubr.f32.mxu0 %v3317
    %4973 = vmatmul.mubr.f32.gmra.mxu0 %v3316
    %v4974 = vpop.f32.mrf.mxu0
    %v4975 = vadd.f32 %v4898, %v4974
    %v4976 = vpop.f32.mrf.mxu0
    %v4977 = vadd.f32 %v4900, %v4976
    %4978 = vdwg.mxu0
    %4979 = vmatprep.subr.mxu0 %v3718
    %4980 = vmatpush1.msra.mxu0 %v3717
    %4981 = vmatprep.subr.mxu0 %v3713
    %4982 = vmatpush1.msra.mxu0 %v3712
    %4983 = vmatprep.subr.mxu0 %v3708
    %4984 = vmatpush1.msra.mxu0 %v3707
    %4985 = vmatprep.subr.mxu0 %v3703
    %4986 = vmatpush1.msra.mxu0 %v3702
    %4987 = vmatprep.subr.mxu0 %v3698
    %4988 = vmatpush1.msra.mxu0 %v3697
    %4989 = vmatprep.subr.mxu0 %v3693
    %4990 = vmatpush1.msra.mxu0 %v3692
    %4991 = vmatprep.subr.mxu0 %v3688
    %4992 = vmatpush1.msra.mxu0 %v3687
    %4993 = vmatprep.subr.mxu0 %v3683
    %4994 = vmatpush1.msra.mxu0 %v3682
    %4995 = vmatprep.subr.mxu0 %v3678
    %4996 = vmatpush1.msra.mxu0 %v3677
    %4997 = vmatprep.subr.mxu0 %v3673
    %4998 = vmatpush1.msra.mxu0 %v3672
    %4999 = vmatprep.subr.mxu0 %v3668
    %5000 = vmatpush1.msra.mxu0 %v3667
    %5001 = vmatprep.subr.mxu0 %v3663
    %5002 = vmatpush1.msra.mxu0 %v3662
    %5003 = vmatprep.subr.mxu0 %v3658
    %5004 = vmatpush1.msra.mxu0 %v3657
    %5005 = vmatprep.subr.mxu0 %v3653
    %5006 = vmatpush1.msra.mxu0 %v3652
    %5007 = vmatprep.subr.mxu0 %v3648
    %5008 = vmatpush1.msra.mxu0 %v3647
    %5009 = vmatprep.subr.mxu0 %v3643
    %5010 = vmatpush1.msra.mxu0 %v3642
    %5011 = vmatprep.subr.mxu0 %v3798
    %5012 = vmatpush2.msra.mxu0 %v3797
    %5013 = vmatprep.subr.mxu0 %v3793
    %5014 = vmatpush2.msra.mxu0 %v3792
    %5015 = vmatprep.subr.mxu0 %v3788
    %5016 = vmatpush2.msra.mxu0 %v3787
    %5017 = vmatprep.subr.mxu0 %v3783
    %5018 = vmatpush2.msra.mxu0 %v3782
    %5019 = vmatprep.subr.mxu0 %v3778
    %5020 = vmatpush2.msra.mxu0 %v3777
    %5021 = vmatprep.subr.mxu0 %v3773
    %5022 = vmatpush2.msra.mxu0 %v3772
    %5023 = vmatprep.subr.mxu0 %v3768
    %5024 = vmatpush2.msra.mxu0 %v3767
    %5025 = vmatprep.subr.mxu0 %v3763
    %5026 = vmatpush2.msra.mxu0 %v3762
    %5027 = vmatprep.subr.mxu0 %v3758
    %5028 = vmatpush2.msra.mxu0 %v3757
    %5029 = vmatprep.subr.mxu0 %v3753
    %5030 = vmatpush2.msra.mxu0 %v3752
    %5031 = vmatprep.subr.mxu0 %v3748
    %5032 = vmatpush2.msra.mxu0 %v3747
    %5033 = vmatprep.subr.mxu0 %v3743
    %5034 = vmatpush2.msra.mxu0 %v3742
    %5035 = vmatprep.subr.mxu0 %v3738
    %5036 = vmatpush2.msra.mxu0 %v3737
    %5037 = vmatprep.subr.mxu0 %v3733
    %5038 = vmatpush2.msra.mxu0 %v3732
    %5039 = vmatprep.subr.mxu0 %v3728
    %5040 = vmatpush2.msra.mxu0 %v3727
    %5041 = vmatprep.subr.mxu0 %v3723
    %5042 = vmatpush2.msra.mxu0 %v3722
    %5043 = vmatprep.mubr.f32.mxu0 %v3307
    %5044 = vmatmul.mubr.f32.gmra.mxu0 %v3306
    %v5045 = vpop.f32.mrf.mxu0
    %v5046 = vadd.f32 %v4969, %v5045
    %v5047 = vpop.f32.mrf.mxu0
    %v5048 = vadd.f32 %v4971, %v5047
    %5049 = vmatprep.mubr.f32.mxu0 %v3319
    %5050 = vmatmul.mubr.f32.gmra.mxu0 %v3318
    %v5051 = vpop.f32.mrf.mxu0
    %v5052 = vadd.f32 %v4975, %v5051
    %v5053 = vpop.f32.mrf.mxu0
    %v5054 = vadd.f32 %v4977, %v5053
    %5055 = vdwg.mxu0
    %5056 = vmatprep.subr.mxu0 0.0
    %5057 = vmatpush1.msra.mxu0 %v3399
    %5058 = vmatprep.subr.mxu0 0.0
    %5059 = vmatpush1.msra.mxu0 %v3394
    %5060 = vmatprep.subr.mxu0 0.0
    %5061 = vmatpush1.msra.mxu0 %v3389
    %5062 = vmatprep.subr.mxu0 0.0
    %5063 = vmatpush1.msra.mxu0 %v3384
    %5064 = vmatprep.subr.mxu0 0.0
    %5065 = vmatpush1.msra.mxu0 %v3379
    %5066 = vmatprep.subr.mxu0 0.0
    %5067 = vmatpush1.msra.mxu0 %v3374
    %5068 = vmatprep.subr.mxu0 0.0
    %5069 = vmatpush1.msra.mxu0 %v3369
    %5070 = vmatprep.subr.mxu0 0.0
    %5071 = vmatpush1.msra.mxu0 %v3364
    %5072 = vmatprep.subr.mxu0 0.0
    %5073 = vmatpush1.msra.mxu0 %v3359
    %5074 = vmatprep.subr.mxu0 0.0
    %5075 = vmatpush1.msra.mxu0 %v3354
    %5076 = vmatprep.subr.mxu0 0.0
    %5077 = vmatpush1.msra.mxu0 %v3349
    %5078 = vmatprep.subr.mxu0 0.0
    %5079 = vmatpush1.msra.mxu0 %v3344
    %5080 = vmatprep.subr.mxu0 0.0
    %5081 = vmatpush1.msra.mxu0 %v3339
    %5082 = vmatprep.subr.mxu0 0.0
    %5083 = vmatpush1.msra.mxu0 %v3334
    %5084 = vmatprep.subr.mxu0 0.0
    %5085 = vmatpush1.msra.mxu0 %v3329
    %5086 = vmatprep.subr.mxu0 0.0
    %5087 = vmatpush1.msra.mxu0 %v3324
    %5088 = vmatprep.subr.mxu0 0.0
    %5089 = vmatpush2.msra.mxu0 %v3479
    %5090 = vmatprep.subr.mxu0 0.0
    %5091 = vmatpush2.msra.mxu0 %v3474
    %5092 = vmatprep.subr.mxu0 0.0
    %5093 = vmatpush2.msra.mxu0 %v3469
    %5094 = vmatprep.subr.mxu0 0.0
    %5095 = vmatpush2.msra.mxu0 %v3464
    %5096 = vmatprep.subr.mxu0 0.0
    %5097 = vmatpush2.msra.mxu0 %v3459
    %5098 = vmatprep.subr.mxu0 0.0
    %5099 = vmatpush2.msra.mxu0 %v3454
    %5100 = vmatprep.subr.mxu0 0.0
    %5101 = vmatpush2.msra.mxu0 %v3449
    %5102 = vmatprep.subr.mxu0 0.0
    %5103 = vmatpush2.msra.mxu0 %v3444
    %5104 = vmatprep.subr.mxu0 0.0
    %5105 = vmatpush2.msra.mxu0 %v3439
    %5106 = vmatprep.subr.mxu0 0.0
    %5107 = vmatpush2.msra.mxu0 %v3434
    %5108 = vmatprep.subr.mxu0 0.0
    %5109 = vmatpush2.msra.mxu0 %v3429
    %5110 = vmatprep.subr.mxu0 0.0
    %5111 = vmatpush2.msra.mxu0 %v3424
    %5112 = vmatprep.subr.mxu0 0.0
    %5113 = vmatpush2.msra.mxu0 %v3419
    %5114 = vmatprep.subr.mxu0 0.0
    %5115 = vmatpush2.msra.mxu0 %v3414
    %5116 = vmatprep.subr.mxu0 0.0
    %5117 = vmatpush2.msra.mxu0 %v3409
    %5118 = vmatprep.subr.mxu0 0.0
    %5119 = vmatpush2.msra.mxu0 %v3404
    %5120 = vmatprep.mubr.f32.mxu0 %v3303
    %5121 = vmatmul.mubr.f32.gmra.mxu0 %v3302
    %v5122 = vpop.f32.mrf.mxu0
    %v5123 = vadd.f32 0.0, %v5122
    %v5124 = vpop.f32.mrf.mxu0
    %5125 = vmatprep.mubr.f32.mxu0 %v3315
    %5126 = vmatmul.mubr.f32.gmra.mxu0 %v3314
    %v5127 = vpop.f32.mrf.mxu0
    %v5128 = vadd.f32 0.0, %v5127
    %v5129 = vpop.f32.mrf.mxu0
    %5130 = vdwg.mxu0
    %5131 = vmatprep.subr.mxu0 0.0
    %5132 = vmatpush1.msra.mxu0 %v3559
    %5133 = vmatprep.subr.mxu0 0.0
    %5134 = vmatpush1.msra.mxu0 %v3554
    %5135 = vmatprep.subr.mxu0 0.0
    %5136 = vmatpush1.msra.mxu0 %v3549
    %5137 = vmatprep.subr.mxu0 0.0
    %5138 = vmatpush1.msra.mxu0 %v3544
    %5139 = vmatprep.subr.mxu0 0.0
    %5140 = vmatpush1.msra.mxu0 %v3539
    %5141 = vmatprep.subr.mxu0 0.0
    %5142 = vmatpush1.msra.mxu0 %v3534
    %5143 = vmatprep.subr.mxu0 0.0
    %5144 = vmatpush1.msra.mxu0 %v3529
    %5145 = vmatprep.subr.mxu0 0.0
    %5146 = vmatpush1.msra.mxu0 %v3524
    %5147 = vmatprep.subr.mxu0 0.0
    %5148 = vmatpush1.msra.mxu0 %v3519
    %5149 = vmatprep.subr.mxu0 0.0
    %5150 = vmatpush1.msra.mxu0 %v3514
    %5151 = vmatprep.subr.mxu0 0.0
    %5152 = vmatpush1.msra.mxu0 %v3509
    %5153 = vmatprep.subr.mxu0 0.0
    %5154 = vmatpush1.msra.mxu0 %v3504
    %5155 = vmatprep.subr.mxu0 0.0
    %5156 = vmatpush1.msra.mxu0 %v3499
    %5157 = vmatprep.subr.mxu0 0.0
    %5158 = vmatpush1.msra.mxu0 %v3494
    %5159 = vmatprep.subr.mxu0 0.0
    %5160 = vmatpush1.msra.mxu0 %v3489
    %5161 = vmatprep.subr.mxu0 0.0
    %5162 = vmatpush1.msra.mxu0 %v3484
    %5163 = vmatprep.subr.mxu0 0.0
    %5164 = vmatpush2.msra.mxu0 %v3639
    %5165 = vmatprep.subr.mxu0 0.0
    %5166 = vmatpush2.msra.mxu0 %v3634
    %5167 = vmatprep.subr.mxu0 0.0
    %5168 = vmatpush2.msra.mxu0 %v3629
    %5169 = vmatprep.subr.mxu0 0.0
    %5170 = vmatpush2.msra.mxu0 %v3624
    %5171 = vmatprep.subr.mxu0 0.0
    %5172 = vmatpush2.msra.mxu0 %v3619
    %5173 = vmatprep.subr.mxu0 0.0
    %5174 = vmatpush2.msra.mxu0 %v3614
    %5175 = vmatprep.subr.mxu0 0.0
    %5176 = vmatpush2.msra.mxu0 %v3609
    %5177 = vmatprep.subr.mxu0 0.0
    %5178 = vmatpush2.msra.mxu0 %v3604
    %5179 = vmatprep.subr.mxu0 0.0
    %5180 = vmatpush2.msra.mxu0 %v3599
    %5181 = vmatprep.subr.mxu0 0.0
    %5182 = vmatpush2.msra.mxu0 %v3594
    %5183 = vmatprep.subr.mxu0 0.0
    %5184 = vmatpush2.msra.mxu0 %v3589
    %5185 = vmatprep.subr.mxu0 0.0
    %5186 = vmatpush2.msra.mxu0 %v3584
    %5187 = vmatprep.subr.mxu0 0.0
    %5188 = vmatpush2.msra.mxu0 %v3579
    %5189 = vmatprep.subr.mxu0 0.0
    %5190 = vmatpush2.msra.mxu0 %v3574
    %5191 = vmatprep.subr.mxu0 0.0
    %5192 = vmatpush2.msra.mxu0 %v3569
    %5193 = vmatprep.subr.mxu0 0.0
    %5194 = vmatpush2.msra.mxu0 %v3564
    %5195 = vmatprep.mubr.f32.mxu0 %v3305
    %5196 = vmatmul.mubr.f32.gmra.mxu0 %v3304
    %v5197 = vpop.f32.mrf.mxu0
    %v5198 = vadd.f32 %v5123, %v5197
    %v5199 = vpop.f32.mrf.mxu0
    %5200 = vmatprep.mubr.f32.mxu0 %v3317
    %5201 = vmatmul.mubr.f32.gmra.mxu0 %v3316
    %v5202 = vpop.f32.mrf.mxu0
    %v5203 = vadd.f32 %v5128, %v5202
    %v5204 = vpop.f32.mrf.mxu0
    %5205 = vdwg.mxu0
    %5206 = vmatprep.subr.mxu0 0.0
    %5207 = vmatpush1.msra.mxu0 %v3719
    %5208 = vmatprep.subr.mxu0 0.0
    %5209 = vmatpush1.msra.mxu0 %v3714
    %5210 = vmatprep.subr.mxu0 0.0
    %5211 = vmatpush1.msra.mxu0 %v3709
    %5212 = vmatprep.subr.mxu0 0.0
    %5213 = vmatpush1.msra.mxu0 %v3704
    %5214 = vmatprep.subr.mxu0 0.0
    %5215 = vmatpush1.msra.mxu0 %v3699
    %5216 = vmatprep.subr.mxu0 0.0
    %5217 = vmatpush1.msra.mxu0 %v3694
    %5218 = vmatprep.subr.mxu0 0.0
    %5219 = vmatpush1.msra.mxu0 %v3689
    %5220 = vmatprep.subr.mxu0 0.0
    %5221 = vmatpush1.msra.mxu0 %v3684
    %5222 = vmatprep.subr.mxu0 0.0
    %5223 = vmatpush1.msra.mxu0 %v3679
    %5224 = vmatprep.subr.mxu0 0.0
    %5225 = vmatpush1.msra.mxu0 %v3674
    %5226 = vmatprep.subr.mxu0 0.0
    %5227 = vmatpush1.msra.mxu0 %v3669
    %5228 = vmatprep.subr.mxu0 0.0
    %5229 = vmatpush1.msra.mxu0 %v3664
    %5230 = vmatprep.subr.mxu0 0.0
    %5231 = vmatpush1.msra.mxu0 %v3659
    %5232 = vmatprep.subr.mxu0 0.0
    %5233 = vmatpush1.msra.mxu0 %v3654
    %5234 = vmatprep.subr.mxu0 0.0
    %5235 = vmatpush1.msra.mxu0 %v3649
    %5236 = vmatprep.subr.mxu0 0.0
    %5237 = vmatpush1.msra.mxu0 %v3644
    %5238 = vmatprep.subr.mxu0 0.0
    %5239 = vmatpush2.msra.mxu0 %v3799
    %5240 = vmatprep.subr.mxu0 0.0
    %5241 = vmatpush2.msra.mxu0 %v3794
    %5242 = vmatprep.subr.mxu0 0.0
    %5243 = vmatpush2.msra.mxu0 %v3789
    %5244 = vmatprep.subr.mxu0 0.0
    %5245 = vmatpush2.msra.mxu0 %v3784
    %5246 = vmatprep.subr.mxu0 0.0
    %5247 = vmatpush2.msra.mxu0 %v3779
    %5248 = vmatprep.subr.mxu0 0.0
    %5249 = vmatpush2.msra.mxu0 %v3774
    %5250 = vmatprep.subr.mxu0 0.0
    %5251 = vmatpush2.msra.mxu0 %v3769
    %5252 = vmatprep.subr.mxu0 0.0
    %5253 = vmatpush2.msra.mxu0 %v3764
    %5254 = vmatprep.subr.mxu0 0.0
    %5255 = vmatpush2.msra.mxu0 %v3759
    %5256 = vmatprep.subr.mxu0 0.0
    %5257 = vmatpush2.msra.mxu0 %v3754
    %5258 = vmatprep.subr.mxu0 0.0
    %5259 = vmatpush2.msra.mxu0 %v3749
    %5260 = vmatprep.subr.mxu0 0.0
    %5261 = vmatpush2.msra.mxu0 %v3744
    %5262 = vmatprep.subr.mxu0 0.0
    %5263 = vmatpush2.msra.mxu0 %v3739
    %5264 = vmatprep.subr.mxu0 0.0
    %5265 = vmatpush2.msra.mxu0 %v3734
    %5266 = vmatprep.subr.mxu0 0.0
    %5267 = vmatpush2.msra.mxu0 %v3729
    %5268 = vmatprep.subr.mxu0 0.0
    %5269 = vmatpush2.msra.mxu0 %v3724
    %5270 = vmatprep.mubr.f32.mxu0 %v3307
    %5271 = vmatmul.mubr.f32.gmra.mxu0 %v3306
    %v5272 = vpop.f32.mrf.mxu0
    %v5273 = vadd.f32 %v5198, %v5272
    %v5274 = vpop.f32.mrf.mxu0
    %5275 = vmatprep.mubr.f32.mxu0 %v3319
    %5276 = vmatmul.mubr.f32.gmra.mxu0 %v3318
    %v5277 = vpop.f32.mrf.mxu0
    %v5278 = vadd.f32 %v5203, %v5277
    %v5279 = vpop.f32.mrf.mxu0
    %5280 = vdwg.mxu0
    %v5281 = vmul.f32 %v4815, %v3800
    %v5282 = vmul.f32 %v4817, %v3801
    %v5283 = vmul.f32 %v5046, %v3802
    %v5284 = vmul.f32 %v5048, %v3803
    %v5285 = vmul.f32 %v5273, %v3804
    %v5286 = vmul.f32 %v4821, %v3805
    %v5287 = vmul.f32 %v4823, %v3806
    %v5288 = vmul.f32 %v5052, %v3807
    %v5289 = vmul.f32 %v5054, %v3808
    %v5290 = vmul.f32 %v5278, %v3809
    %v5291 = vadd.f32 %v5281, %v5286
    %v5292 = vrot.slane %v5291, 4
    %v5293 = vadd.f32 %v5291, %v5292
    %v5294 = vrot.slane %v5293, 2
    %v5295 = vadd.f32 %v5293, %v5294
    %v5296 = vrot.slane %v5295, 1
    %v5297 = vadd.f32 %v5295, %v5296
    %v5298 = vadd.f32 %v5282, %v5287
    %v5299 = vrot.slane %v5298, 4
    %v5300 = vadd.f32 %v5298, %v5299
    %v5301 = vrot.slane %v5300, 2
    %v5302 = vadd.f32 %v5300, %v5301
    %v5303 = vrot.slane %v5302, 1
    %v5304 = vadd.f32 %v5302, %v5303
    %v5305 = vadd.f32 %v5283, %v5288
    %v5306 = vrot.slane %v5305, 4
    %v5307 = vadd.f32 %v5305, %v5306
    %v5308 = vrot.slane %v5307, 2
    %v5309 = vadd.f32 %v5307, %v5308
    %v5310 = vrot.slane %v5309, 1
    %v5311 = vadd.f32 %v5309, %v5310
    %v5312 = vadd.f32 %v5284, %v5289
    %v5313 = vrot.slane %v5312, 4
    %v5314 = vadd.f32 %v5312, %v5313
    %v5315 = vrot.slane %v5314, 2
    %v5316 = vadd.f32 %v5314, %v5315
    %v5317 = vrot.slane %v5316, 1
    %v5318 = vadd.f32 %v5316, %v5317
    %v5319 = vsel %vm881, %v5285, 0.0
    %v5320 = vsel %vm881, %v5290, 0.0
    %v5321 = vadd.f32 %v5319, %v5320
    %v5322 = vrot.slane %v5321, 4
    %v5323 = vadd.f32 %v5321, %v5322
    %v5324 = vrot.slane %v5323, 2
    %v5325 = vadd.f32 %v5323, %v5324
    %v5326 = vrot.slane %v5325, 1
    %v5327 = vadd.f32 %v5325, %v5326
    %v5333 = vcombine.low %v5297, %v5304
    %v5334 = vcombine.low %v5311, %v5318
    %v5336 = vunpack.c.l.s4 1966171168
    %v5337 = vunpack.c.0.s8 %v5336
    %v5338 = vlaneseq
    %v5339 = vshrl.u32 %v5338, 7
    %v5340 = vsub.s32 %v5337, %v5339
    %v5341 = vrot.slane %v5333, %v5340
    %v5343 = vunpack.c.l.s4 1966171168
    %v5344 = vunpack.c.0.s8 %v5343
    %v5345 = vlaneseq
    %v5346 = vshrl.u32 %v5345, 7
    %v5347 = vsub.s32 %v5344, %v5346
    %v5348 = vrot.slane %v5334, %v5347
    %v5350 = vunpack.c.l.s4 1966171168
    %v5351 = vunpack.c.0.s8 %v5350
    %v5352 = vlaneseq
    %v5353 = vshrl.u32 %v5352, 7
    %v5354 = vsub.s32 %v5351, %v5353
    %v5355 = vrot.slane %v5327, %v5354
    %v5356 = vcombine.low %v5341, %v5348
    %v5358 = vunpack.c.l.s4 1966171168
    %v5359 = vunpack.c.0.s8 %v5358
    %v5360 = vlaneseq
    %v5361 = vshrl.u32 %v5360, 7
    %v5362 = vsub.s32 %v5359, %v5361
    %v5363 = vrot.slane %v5356, %v5362
    %v5365 = vunpack.c.l.s4 1966171168
    %v5366 = vunpack.c.0.s8 %v5365
    %v5367 = vlaneseq
    %v5368 = vshrl.u32 %v5367, 7
    %v5369 = vsub.s32 %v5366, %v5368
    %v5370 = vrot.slane %v5355, %v5369
    %v5371 = vcombine.low %v5363, %v5370
    %s5373 = scalar_lea.vmem [#allocation3], 1
    %5374 = vst.msk [vmem:[%s5373] ss:$2 sm:$0x1f] %vm4592, %v5371
    %v5375 = vld [vmem:[#allocation3] sm:$0xff]
    %v5376 = vld [vmem:[#allocation3 + $0x8] sm:$0x3]
    %v5377 = vld [vmem:[#allocation10] sm:$0xff]
    %v5378 = vld [vmem:[#allocation10 + $0x8] sm:$0xff]
    %v5379 = vld [vmem:[#allocation10 + $0x10] sm:$0xff]
    %v5380 = vld [vmem:[#allocation10 + $0x18] sm:$0xff]
    %v5381 = vld [vmem:[#allocation10 + $0x20] sm:$0xff]
    %v5382 = vld [vmem:[#allocation10 + $0x28] sm:$0xff]
    %v5383 = vld [vmem:[#allocation10 + $0x30] sm:$0xff]
    %v5384 = vld [vmem:[#allocation10 + $0x38] sm:$0xff]
    %v5385 = vld [vmem:[#allocation10 + $0x40] sm:$0xff]
    %v5386 = vld [vmem:[#allocation10 + $0x48] sm:$0xff]
    %v5387 = vld [vmem:[#allocation10 + $0x50] sm:$0xff]
    %v5388 = vld [vmem:[#allocation10 + $0x58] sm:$0xff]
    %v5389 = vld [vmem:[#allocation10 + $0x60] sm:$0xff]
    %v5390 = vld [vmem:[#allocation10 + $0x68] sm:$0xff]
    %v5391 = vld [vmem:[#allocation10 + $0x70] sm:$0xff]
    %v5392 = vld [vmem:[#allocation10 + $0x78] sm:$0xff]
    %v5393 = vld [vmem:[#allocation10 + $0x80] sm:$0xff]
    %v5394 = vld [vmem:[#allocation10 + $0x88] sm:$0xff]
    %v5395 = vld [vmem:[#allocation10 + $0x90] sm:$0xff]
    %v5396 = vld [vmem:[#allocation10 + $0x98] sm:$0xff]
    %v5397 = vld [vmem:[#allocation10 + $0xa0] sm:$0xff]
    %v5398 = vld [vmem:[#allocation10 + $0xa8] sm:$0xff]
    %v5399 = vld [vmem:[#allocation10 + $0xb0] sm:$0xff]
    %v5400 = vld [vmem:[#allocation10 + $0xb8] sm:$0xff]
    %v5401 = vld [vmem:[#allocation10 + $0xc0] sm:$0xff]
    %v5402 = vld [vmem:[#allocation10 + $0xc8] sm:$0xff]
    %v5403 = vld [vmem:[#allocation10 + $0xd0] sm:$0xff]
    %v5404 = vld [vmem:[#allocation10 + $0xd8] sm:$0xff]
    %v5405 = vld [vmem:[#allocation10 + $0xe0] sm:$0xff]
    %v5406 = vld [vmem:[#allocation10 + $0xe8] sm:$0xff]
    %v5407 = vld [vmem:[#allocation10 + $0xf0] sm:$0xff]
    %v5408 = vld [vmem:[#allocation10 + $0xf8] sm:$0xff]
    %v5409 = vld [vmem:[#allocation10 + $0x100] sm:$0xff]
    %v5410 = vld [vmem:[#allocation10 + $0x108] sm:$0xff]
    %v5411 = vld [vmem:[#allocation10 + $0x110] sm:$0xff]
    %v5412 = vld [vmem:[#allocation10 + $0x118] sm:$0xff]
    %v5413 = vld [vmem:[#allocation10 + $0x120] sm:$0xff]
    %v5414 = vld [vmem:[#allocation10 + $0x128] sm:$0xff]
    %v5415 = vld [vmem:[#allocation10 + $0x130] sm:$0xff]
    %v5416 = vld [vmem:[#allocation10 + $0x138] sm:$0xff]
    %v5417 = vld [vmem:[#allocation10 + $0x140] sm:$0xff]
    %v5418 = vld [vmem:[#allocation10 + $0x148] sm:$0xff]
    %v5419 = vld [vmem:[#allocation10 + $0x150] sm:$0xff]
    %v5420 = vld [vmem:[#allocation10 + $0x158] sm:$0xff]
    %v5421 = vld [vmem:[#allocation10 + $0x160] sm:$0xff]
    %v5422 = vld [vmem:[#allocation10 + $0x168] sm:$0xff]
    %v5423 = vld [vmem:[#allocation10 + $0x170] sm:$0xff]
    %v5424 = vld [vmem:[#allocation10 + $0x178] sm:$0xff]
    %v5425 = vld [vmem:[#allocation10 + $0x180] sm:$0xff]
    %v5426 = vld [vmem:[#allocation10 + $0x188] sm:$0xff]
    %v5427 = vld [vmem:[#allocation10 + $0x190] sm:$0xff]
    %v5428 = vld [vmem:[#allocation10 + $0x198] sm:$0xff]
    %v5429 = vld [vmem:[#allocation10 + $0x1a0] sm:$0xff]
    %v5430 = vld [vmem:[#allocation10 + $0x1a8] sm:$0xff]
    %v5431 = vld [vmem:[#allocation10 + $0x1b0] sm:$0xff]
    %v5432 = vld [vmem:[#allocation10 + $0x1b8] sm:$0xff]
    %v5433 = vld [vmem:[#allocation10 + $0x1c0] sm:$0xff]
    %v5434 = vld [vmem:[#allocation10 + $0x1c8] sm:$0xff]
    %v5435 = vld [vmem:[#allocation10 + $0x1d0] sm:$0xff]
    %v5436 = vld [vmem:[#allocation10 + $0x1d8] sm:$0xff]
    %v5437 = vld [vmem:[#allocation10 + $0x1e0] sm:$0xff]
    %v5438 = vld [vmem:[#allocation10 + $0x1e8] sm:$0xff]
    %v5439 = vld [vmem:[#allocation10 + $0x1f0] sm:$0xff]
    %v5440 = vld [vmem:[#allocation10 + $0x1f8] sm:$0xff]
    %v5441 = vld [vmem:[#allocation10 + $0x200] sm:$0xff]
    %v5442 = vld [vmem:[#allocation10 + $0x208] sm:$0xff]
    %v5443 = vld [vmem:[#allocation10 + $0x210] sm:$0xff]
    %v5444 = vld [vmem:[#allocation10 + $0x218] sm:$0xff]
    %v5445 = vld [vmem:[#allocation10 + $0x220] sm:$0xff]
    %v5446 = vld [vmem:[#allocation10 + $0x228] sm:$0xff]
    %v5447 = vld [vmem:[#allocation10 + $0x230] sm:$0xff]
    %v5448 = vld [vmem:[#allocation10 + $0x238] sm:$0xff]
    %v5449 = vld [vmem:[#allocation10 + $0x240] sm:$0x1]
    %v5450 = vlaneseq
    %v5451 = vshrl.u32 %v5450, 7
    %v5452 = vsub.s32 0, %v5451
    %v5453 = vrot.slane %v5449, %v5452
    %v5456 = vcombine.high %v5375, %v5375
    %v5458 = vunpack.c.l.s4 1983009808
    %v5459 = vunpack.c.0.s8 %v5458
    %v5460 = vlaneseq
    %v5461 = vshrl.u32 %v5460, 7
    %v5462 = vsub.s32 %v5459, %v5461
    %v5463 = vrot.slane %v5375, %v5462
    %v5465 = vunpack.c.l.s4 1983009808
    %v5466 = vunpack.c.0.s8 %v5465
    %v5467 = vlaneseq
    %v5468 = vshrl.u32 %v5467, 7
    %v5469 = vsub.s32 %v5466, %v5468
    %v5470 = vrot.slane %v5456, %v5469
    %v5471 = vcombine.high %v5463, %v5463
    %v5472 = vcombine.high %v5470, %v5470
    %v5474 = vunpack.c.l.s4 1983009808
    %v5475 = vunpack.c.0.s8 %v5474
    %v5476 = vlaneseq
    %v5477 = vshrl.u32 %v5476, 7
    %v5478 = vsub.s32 %v5475, %v5477
    %v5479 = vrot.slane %v5376, %v5478
    %v5484 = vsel %vm881, %v5479, 0
    %5486 = vmatprep.subr.mxu0 0.0
    %5487 = vmatpush1.msra.mxu0 %v5392
    %5488 = vmatprep.subr.mxu0 0.0
    %5489 = vmatpush1.msra.mxu0 %v5391
    %5490 = vmatprep.subr.mxu0 0.0
    %5491 = vmatpush1.msra.mxu0 %v5390
    %5492 = vmatprep.subr.mxu0 0.0
    %5493 = vmatpush1.msra.mxu0 %v5389
    %5494 = vmatprep.subr.mxu0 0.0
    %5495 = vmatpush1.msra.mxu0 %v5388
    %5496 = vmatprep.subr.mxu0 0.0
    %5497 = vmatpush1.msra.mxu0 %v5387
    %5498 = vmatprep.subr.mxu0 0.0
    %5499 = vmatpush1.msra.mxu0 %v5386
    %5500 = vmatprep.subr.mxu0 0.0
    %5501 = vmatpush1.msra.mxu0 %v5385
    %5502 = vmatprep.subr.mxu0 0.0
    %5503 = vmatpush1.msra.mxu0 %v5384
    %5504 = vmatprep.subr.mxu0 0.0
    %5505 = vmatpush1.msra.mxu0 %v5383
    %5506 = vmatprep.subr.mxu0 0.0
    %5507 = vmatpush1.msra.mxu0 %v5382
    %5508 = vmatprep.subr.mxu0 0.0
    %5509 = vmatpush1.msra.mxu0 %v5381
    %5510 = vmatprep.subr.mxu0 0.0
    %5511 = vmatpush1.msra.mxu0 %v5380
    %5512 = vmatprep.subr.mxu0 0.0
    %5513 = vmatpush1.msra.mxu0 %v5379
    %5514 = vmatprep.subr.mxu0 0.0
    %5515 = vmatpush1.msra.mxu0 %v5378
    %5516 = vmatprep.subr.mxu0 0.0
    %5517 = vmatpush1.msra.mxu0 %v5377
    %5518 = vmatprep.subr.mxu0 0.0
    %5519 = vmatpush2.msra.mxu0 %v5408
    %5520 = vmatprep.subr.mxu0 0.0
    %5521 = vmatpush2.msra.mxu0 %v5407
    %5522 = vmatprep.subr.mxu0 0.0
    %5523 = vmatpush2.msra.mxu0 %v5406
    %5524 = vmatprep.subr.mxu0 0.0
    %5525 = vmatpush2.msra.mxu0 %v5405
    %5526 = vmatprep.subr.mxu0 0.0
    %5527 = vmatpush2.msra.mxu0 %v5404
    %5528 = vmatprep.subr.mxu0 0.0
    %5529 = vmatpush2.msra.mxu0 %v5403
    %5530 = vmatprep.subr.mxu0 0.0
    %5531 = vmatpush2.msra.mxu0 %v5402
    %5532 = vmatprep.subr.mxu0 0.0
    %5533 = vmatpush2.msra.mxu0 %v5401
    %5534 = vmatprep.subr.mxu0 0.0
    %5535 = vmatpush2.msra.mxu0 %v5400
    %5536 = vmatprep.subr.mxu0 0.0
    %5537 = vmatpush2.msra.mxu0 %v5399
    %5538 = vmatprep.subr.mxu0 0.0
    %5539 = vmatpush2.msra.mxu0 %v5398
    %5540 = vmatprep.subr.mxu0 0.0
    %5541 = vmatpush2.msra.mxu0 %v5397
    %5542 = vmatprep.subr.mxu0 0.0
    %5543 = vmatpush2.msra.mxu0 %v5396
    %5544 = vmatprep.subr.mxu0 0.0
    %5545 = vmatpush2.msra.mxu0 %v5395
    %5546 = vmatprep.subr.mxu0 0.0
    %5547 = vmatpush2.msra.mxu0 %v5394
    %5548 = vmatprep.subr.mxu0 0.0
    %5549 = vmatpush2.msra.mxu0 %v5393
    %5550 = vmatprep.mubr.f32.mxu0 %v5471
    %5551 = vmatmul.mubr.f32.gmra.mxu0 %v5463
    %v5552 = vpop.f32.mrf.mxu0
    %v5553 = vadd.f32 %v5453, %v5552
    %v5554 = vpop.f32.mrf.mxu0
    %5555 = vdwg.mxu0
    %5556 = vmatprep.subr.mxu0 0.0
    %5557 = vmatpush1.msra.mxu0 %v5424
    %5558 = vmatprep.subr.mxu0 0.0
    %5559 = vmatpush1.msra.mxu0 %v5423
    %5560 = vmatprep.subr.mxu0 0.0
    %5561 = vmatpush1.msra.mxu0 %v5422
    %5562 = vmatprep.subr.mxu0 0.0
    %5563 = vmatpush1.msra.mxu0 %v5421
    %5564 = vmatprep.subr.mxu0 0.0
    %5565 = vmatpush1.msra.mxu0 %v5420
    %5566 = vmatprep.subr.mxu0 0.0
    %5567 = vmatpush1.msra.mxu0 %v5419
    %5568 = vmatprep.subr.mxu0 0.0
    %5569 = vmatpush1.msra.mxu0 %v5418
    %5570 = vmatprep.subr.mxu0 0.0
    %5571 = vmatpush1.msra.mxu0 %v5417
    %5572 = vmatprep.subr.mxu0 0.0
    %5573 = vmatpush1.msra.mxu0 %v5416
    %5574 = vmatprep.subr.mxu0 0.0
    %5575 = vmatpush1.msra.mxu0 %v5415
    %5576 = vmatprep.subr.mxu0 0.0
    %5577 = vmatpush1.msra.mxu0 %v5414
    %5578 = vmatprep.subr.mxu0 0.0
    %5579 = vmatpush1.msra.mxu0 %v5413
    %5580 = vmatprep.subr.mxu0 0.0
    %5581 = vmatpush1.msra.mxu0 %v5412
    %5582 = vmatprep.subr.mxu0 0.0
    %5583 = vmatpush1.msra.mxu0 %v5411
    %5584 = vmatprep.subr.mxu0 0.0
    %5585 = vmatpush1.msra.mxu0 %v5410
    %5586 = vmatprep.subr.mxu0 0.0
    %5587 = vmatpush1.msra.mxu0 %v5409
    %5588 = vmatprep.subr.mxu0 0.0
    %5589 = vmatpush2.msra.mxu0 %v5440
    %5590 = vmatprep.subr.mxu0 0.0
    %5591 = vmatpush2.msra.mxu0 %v5439
    %5592 = vmatprep.subr.mxu0 0.0
    %5593 = vmatpush2.msra.mxu0 %v5438
    %5594 = vmatprep.subr.mxu0 0.0
    %5595 = vmatpush2.msra.mxu0 %v5437
    %5596 = vmatprep.subr.mxu0 0.0
    %5597 = vmatpush2.msra.mxu0 %v5436
    %5598 = vmatprep.subr.mxu0 0.0
    %5599 = vmatpush2.msra.mxu0 %v5435
    %5600 = vmatprep.subr.mxu0 0.0
    %5601 = vmatpush2.msra.mxu0 %v5434
    %5602 = vmatprep.subr.mxu0 0.0
    %5603 = vmatpush2.msra.mxu0 %v5433
    %5604 = vmatprep.subr.mxu0 0.0
    %5605 = vmatpush2.msra.mxu0 %v5432
    %5606 = vmatprep.subr.mxu0 0.0
    %5607 = vmatpush2.msra.mxu0 %v5431
    %5608 = vmatprep.subr.mxu0 0.0
    %5609 = vmatpush2.msra.mxu0 %v5430
    %5610 = vmatprep.subr.mxu0 0.0
    %5611 = vmatpush2.msra.mxu0 %v5429
    %5612 = vmatprep.subr.mxu0 0.0
    %5613 = vmatpush2.msra.mxu0 %v5428
    %5614 = vmatprep.subr.mxu0 0.0
    %5615 = vmatpush2.msra.mxu0 %v5427
    %5616 = vmatprep.subr.mxu0 0.0
    %5617 = vmatpush2.msra.mxu0 %v5426
    %5618 = vmatprep.subr.mxu0 0.0
    %5619 = vmatpush2.msra.mxu0 %v5425
    %5620 = vmatprep.mubr.f32.mxu0 %v5472
    %5621 = vmatmul.mubr.f32.gmra.mxu0 %v5470
    %v5622 = vpop.f32.mrf.mxu0
    %v5623 = vadd.f32 %v5553, %v5622
    %v5624 = vpop.f32.mrf.mxu0
    %5625 = vdwg.mxu0
    %5626 = vmatprep.subr.mxu0 0.0
    %5627 = vmatpush1.msra.mxu0 0.0
    %5628 = vmatprep.subr.mxu0 0.0
    %5629 = vmatpush1.msra.mxu0 0.0
    %5630 = vmatprep.subr.mxu0 0.0
    %5631 = vmatpush1.msra.mxu0 0.0
    %5632 = vmatprep.subr.mxu0 0.0
    %5633 = vmatpush1.msra.mxu0 0.0
    %5634 = vmatprep.subr.mxu0 0.0
    %5635 = vmatpush1.msra.mxu0 0.0
    %5636 = vmatprep.subr.mxu0 0.0
    %5637 = vmatpush1.msra.mxu0 0.0
    %5638 = vmatprep.subr.mxu0 0.0
    %5639 = vmatpush1.msra.mxu0 0.0
    %5640 = vmatprep.subr.mxu0 0.0
    %5641 = vmatpush1.msra.mxu0 0.0
    %5642 = vmatprep.subr.mxu0 0.0
    %5643 = vmatpush1.msra.mxu0 %v5448
    %5644 = vmatprep.subr.mxu0 0.0
    %5645 = vmatpush1.msra.mxu0 %v5447
    %5646 = vmatprep.subr.mxu0 0.0
    %5647 = vmatpush1.msra.mxu0 %v5446
    %5648 = vmatprep.subr.mxu0 0.0
    %5649 = vmatpush1.msra.mxu0 %v5445
    %5650 = vmatprep.subr.mxu0 0.0
    %5651 = vmatpush1.msra.mxu0 %v5444
    %5652 = vmatprep.subr.mxu0 0.0
    %5653 = vmatpush1.msra.mxu0 %v5443
    %5654 = vmatprep.subr.mxu0 0.0
    %5655 = vmatpush1.msra.mxu0 %v5442
    %5656 = vmatprep.subr.mxu0 0.0
    %5657 = vmatpush1.msra.mxu0 %v5441
    %5658 = vmatprep.subr.mxu0 0.0
    %5659 = vmatpush2.msra.mxu0 0.0
    %5660 = vmatprep.subr.mxu0 0.0
    %5661 = vmatpush2.msra.mxu0 0.0
    %5662 = vmatprep.subr.mxu0 0.0
    %5663 = vmatpush2.msra.mxu0 0.0
    %5664 = vmatprep.subr.mxu0 0.0
    %5665 = vmatpush2.msra.mxu0 0.0
    %5666 = vmatprep.subr.mxu0 0.0
    %5667 = vmatpush2.msra.mxu0 0.0
    %5668 = vmatprep.subr.mxu0 0.0
    %5669 = vmatpush2.msra.mxu0 0.0
    %5670 = vmatprep.subr.mxu0 0.0
    %5671 = vmatpush2.msra.mxu0 0.0
    %5672 = vmatprep.subr.mxu0 0.0
    %5673 = vmatpush2.msra.mxu0 0.0
    %5674 = vmatprep.subr.mxu0 0.0
    %5675 = vmatpush2.msra.mxu0 0.0
    %5676 = vmatprep.subr.mxu0 0.0
    %5677 = vmatpush2.msra.mxu0 0.0
    %5678 = vmatprep.subr.mxu0 0.0
    %5679 = vmatpush2.msra.mxu0 0.0
    %5680 = vmatprep.subr.mxu0 0.0
    %5681 = vmatpush2.msra.mxu0 0.0
    %5682 = vmatprep.subr.mxu0 0.0
    %5683 = vmatpush2.msra.mxu0 0.0
    %5684 = vmatprep.subr.mxu0 0.0
    %5685 = vmatpush2.msra.mxu0 0.0
    %5686 = vmatprep.subr.mxu0 0.0
    %5687 = vmatpush2.msra.mxu0 0.0
    %5688 = vmatprep.subr.mxu0 0.0
    %5689 = vmatpush2.msra.mxu0 0.0
    %5690 = vmatprep.mubr.f32.mxu0 0.0
    %5691 = vmatmul.mubr.f32.gmra.mxu0 %v5484
    %v5692 = vpop.f32.mrf.mxu0
    %v5693 = vadd.f32 %v5623, %v5692
    %v5694 = vpop.f32.mrf.mxu0
    %5695 = vdwg.mxu0
    %v5696 = vmax.f32 %v5693, 0.0
    %v5697 = vld [vmem:[%s5] sm:$0xff]
    %v5698 = vld [vmem:[%s5 + $0x8] sm:$0xff]
    %v5699 = vld [vmem:[%s5 + $0x10] sm:$0xff]
    %v5700 = vld [vmem:[%s5 + $0x18] sm:$0xff]
    %v5701 = vld [vmem:[%s5 + $0x20] sm:$0xff]
    %v5702 = vld [vmem:[%s5 + $0x28] sm:$0xff]
    %v5703 = vld [vmem:[%s5 + $0x30] sm:$0xff]
    %v5704 = vld [vmem:[%s5 + $0x38] sm:$0xff]
    %v5705 = vld [vmem:[%s5 + $0x40] sm:$0xff]
    %v5706 = vld [vmem:[%s5 + $0x48] sm:$0xff]
    %v5707 = vld [vmem:[%s5 + $0x50] sm:$0xff]
    %v5708 = vld [vmem:[%s5 + $0x58] sm:$0xff]
    %v5709 = vld [vmem:[%s5 + $0x60] sm:$0xff]
    %v5710 = vld [vmem:[%s5 + $0x68] sm:$0xff]
    %v5711 = vld [vmem:[%s5 + $0x70] sm:$0xff]
    %v5712 = vld [vmem:[%s5 + $0x78] sm:$0x1]
    %v5713 = vlaneseq
    %v5714 = vshrl.u32 %v5713, 7
    %v5715 = vsub.s32 0, %v5714
    %v5716 = vrot.slane %v5712, %v5715
    %vm5717 = vcmask 982016
    %v5719 = vsel %vm5717, %v5696, 0
    %5721 = vmatprep.subr.mxu0 0.0
    %5722 = vmatpush1.msra.mxu0 0.0
    %5723 = vmatprep.subr.mxu0 0.0
    %5724 = vmatpush1.msra.mxu0 %v5711
    %5725 = vmatprep.subr.mxu0 0.0
    %5726 = vmatpush1.msra.mxu0 %v5710
    %5727 = vmatprep.subr.mxu0 0.0
    %5728 = vmatpush1.msra.mxu0 %v5709
    %5729 = vmatprep.subr.mxu0 0.0
    %5730 = vmatpush1.msra.mxu0 %v5708
    %5731 = vmatprep.subr.mxu0 0.0
    %5732 = vmatpush1.msra.mxu0 %v5707
    %5733 = vmatprep.subr.mxu0 0.0
    %5734 = vmatpush1.msra.mxu0 %v5706
    %5735 = vmatprep.subr.mxu0 0.0
    %5736 = vmatpush1.msra.mxu0 %v5705
    %5737 = vmatprep.subr.mxu0 0.0
    %5738 = vmatpush1.msra.mxu0 %v5704
    %5739 = vmatprep.subr.mxu0 0.0
    %5740 = vmatpush1.msra.mxu0 %v5703
    %5741 = vmatprep.subr.mxu0 0.0
    %5742 = vmatpush1.msra.mxu0 %v5702
    %5743 = vmatprep.subr.mxu0 0.0
    %5744 = vmatpush1.msra.mxu0 %v5701
    %5745 = vmatprep.subr.mxu0 0.0
    %5746 = vmatpush1.msra.mxu0 %v5700
    %5747 = vmatprep.subr.mxu0 0.0
    %5748 = vmatpush1.msra.mxu0 %v5699
    %5749 = vmatprep.subr.mxu0 0.0
    %5750 = vmatpush1.msra.mxu0 %v5698
    %5751 = vmatprep.subr.mxu0 0.0
    %5752 = vmatpush1.msra.mxu0 %v5697
    %5753 = vmatprep.subr.mxu0 0.0
    %5754 = vmatpush2.msra.mxu0 0.0
    %5755 = vmatprep.subr.mxu0 0.0
    %5756 = vmatpush2.msra.mxu0 0.0
    %5757 = vmatprep.subr.mxu0 0.0
    %5758 = vmatpush2.msra.mxu0 0.0
    %5759 = vmatprep.subr.mxu0 0.0
    %5760 = vmatpush2.msra.mxu0 0.0
    %5761 = vmatprep.subr.mxu0 0.0
    %5762 = vmatpush2.msra.mxu0 0.0
    %5763 = vmatprep.subr.mxu0 0.0
    %5764 = vmatpush2.msra.mxu0 0.0
    %5765 = vmatprep.subr.mxu0 0.0
    %5766 = vmatpush2.msra.mxu0 0.0
    %5767 = vmatprep.subr.mxu0 0.0
    %5768 = vmatpush2.msra.mxu0 0.0
    %5769 = vmatprep.subr.mxu0 0.0
    %5770 = vmatpush2.msra.mxu0 0.0
    %5771 = vmatprep.subr.mxu0 0.0
    %5772 = vmatpush2.msra.mxu0 0.0
    %5773 = vmatprep.subr.mxu0 0.0
    %5774 = vmatpush2.msra.mxu0 0.0
    %5775 = vmatprep.subr.mxu0 0.0
    %5776 = vmatpush2.msra.mxu0 0.0
    %5777 = vmatprep.subr.mxu0 0.0
    %5778 = vmatpush2.msra.mxu0 0.0
    %5779 = vmatprep.subr.mxu0 0.0
    %5780 = vmatpush2.msra.mxu0 0.0
    %5781 = vmatprep.subr.mxu0 0.0
    %5782 = vmatpush2.msra.mxu0 0.0
    %5783 = vmatprep.subr.mxu0 0.0
    %5784 = vmatpush2.msra.mxu0 0.0
    %5785 = vmatprep.mubr.f32.mxu0 0.0
    %5786 = vmatmul.mubr.f32.gmra.mxu0 %v5719
    %v5787 = vpop.f32.mrf.mxu0
    %v5788 = vadd.f32 %v5716, %v5787
    %v5789 = vpop.f32.mrf.mxu0
    %5790 = vdwg.mxu0
    %v5791 = vmax.f32 %v5788, 0.0
    %v5792 = vld [vmem:[%s6] sm:$0xff]
    %v5793 = vld [vmem:[%s6 + $0x8] sm:$0xff]
    %v5794 = vld [vmem:[%s6 + $0x10] sm:$0xff]
    %v5795 = vld [vmem:[%s6 + $0x18] sm:$0xff]
    %v5796 = vld [vmem:[%s6 + $0x20] sm:$0xff]
    %v5797 = vld [vmem:[%s6 + $0x28] sm:$0xff]
    %v5798 = vld [vmem:[%s6 + $0x30] sm:$0xff]
    %v5799 = vld [vmem:[%s6 + $0x38] sm:$0xff]
    %v5800 = vld [vmem:[%s6 + $0x40] sm:$0xff]
    %v5801 = vld [vmem:[%s6 + $0x48] sm:$0xff]
    %v5802 = vld [vmem:[%s6 + $0x50] sm:$0xf]
    %v5803 = vld [vmem:[%s6 + $0x54] sm:$0x1]
    %v5804 = vlaneseq
    %v5805 = vshrl.u32 %v5804, 7
    %v5806 = vsub.s32 0, %v5805
    %v5807 = vrot.slane %v5803, %v5806
    %vm5808 = vcmask 687104
    %v5810 = vsel %vm5808, %v5791, 0
    %vm5812 = vcmask 1043456
    %v5814 = vsel %vm5812, %v5802, 0
    %5816 = vmatprep.subr.mxu0 0.0
    %5817 = vmatpush1.msra.mxu0 0.0
    %5818 = vmatprep.subr.mxu0 0.0
    %5819 = vmatpush1.msra.mxu0 0.0
    %5820 = vmatprep.subr.mxu0 0.0
    %5821 = vmatpush1.msra.mxu0 0.0
    %5822 = vmatprep.subr.mxu0 0.0
    %5823 = vmatpush1.msra.mxu0 0.0
    %5824 = vmatprep.subr.mxu0 0.0
    %5825 = vmatpush1.msra.mxu0 0.0
    %5826 = vmatprep.subr.mxu0 0.0
    %5827 = vmatpush1.msra.mxu0 %v5814
    %5828 = vmatprep.subr.mxu0 0.0
    %5829 = vmatpush1.msra.mxu0 %v5801
    %5830 = vmatprep.subr.mxu0 0.0
    %5831 = vmatpush1.msra.mxu0 %v5800
    %5832 = vmatprep.subr.mxu0 0.0
    %5833 = vmatpush1.msra.mxu0 %v5799
    %5834 = vmatprep.subr.mxu0 0.0
    %5835 = vmatpush1.msra.mxu0 %v5798
    %5836 = vmatprep.subr.mxu0 0.0
    %5837 = vmatpush1.msra.mxu0 %v5797
    %5838 = vmatprep.subr.mxu0 0.0
    %5839 = vmatpush1.msra.mxu0 %v5796
    %5840 = vmatprep.subr.mxu0 0.0
    %5841 = vmatpush1.msra.mxu0 %v5795
    %5842 = vmatprep.subr.mxu0 0.0
    %5843 = vmatpush1.msra.mxu0 %v5794
    %5844 = vmatprep.subr.mxu0 0.0
    %5845 = vmatpush1.msra.mxu0 %v5793
    %5846 = vmatprep.subr.mxu0 0.0
    %5847 = vmatpush1.msra.mxu0 %v5792
    %5848 = vmatprep.subr.mxu0 0.0
    %5849 = vmatpush2.msra.mxu0 0.0
    %5850 = vmatprep.subr.mxu0 0.0
    %5851 = vmatpush2.msra.mxu0 0.0
    %5852 = vmatprep.subr.mxu0 0.0
    %5853 = vmatpush2.msra.mxu0 0.0
    %5854 = vmatprep.subr.mxu0 0.0
    %5855 = vmatpush2.msra.mxu0 0.0
    %5856 = vmatprep.subr.mxu0 0.0
    %5857 = vmatpush2.msra.mxu0 0.0
    %5858 = vmatprep.subr.mxu0 0.0
    %5859 = vmatpush2.msra.mxu0 0.0
    %5860 = vmatprep.subr.mxu0 0.0
    %5861 = vmatpush2.msra.mxu0 0.0
    %5862 = vmatprep.subr.mxu0 0.0
    %5863 = vmatpush2.msra.mxu0 0.0
    %5864 = vmatprep.subr.mxu0 0.0
    %5865 = vmatpush2.msra.mxu0 0.0
    %5866 = vmatprep.subr.mxu0 0.0
    %5867 = vmatpush2.msra.mxu0 0.0
    %5868 = vmatprep.subr.mxu0 0.0
    %5869 = vmatpush2.msra.mxu0 0.0
    %5870 = vmatprep.subr.mxu0 0.0
    %5871 = vmatpush2.msra.mxu0 0.0
    %5872 = vmatprep.subr.mxu0 0.0
    %5873 = vmatpush2.msra.mxu0 0.0
    %5874 = vmatprep.subr.mxu0 0.0
    %5875 = vmatpush2.msra.mxu0 0.0
    %5876 = vmatprep.subr.mxu0 0.0
    %5877 = vmatpush2.msra.mxu0 0.0
    %5878 = vmatprep.subr.mxu0 0.0
    %5879 = vmatpush2.msra.mxu0 0.0
    %5880 = vmatprep.mubr.f32.mxu0 0.0
    %5881 = vmatmul.mubr.f32.gmra.mxu0 %v5810
    %v5882 = vpop.f32.mrf.mxu0
    %v5883 = vadd.f32 %v5807, %v5882
    %v5884 = vpop.f32.mrf.mxu0
    %5885 = vdwg.mxu0
    %vm5886 = vcmask 74752
    %5887 = vst.msk [vmem:[#allocation12] sm:$0x3] %vm5886, %v5883
    // Predicated region
    $region46: #{net_forward.1} parent=1 // pred_check
      _
    $region47: #{net_forward.1} parent=1 // pred_check_branch
      %5889 = sbr.rel (0) target = $region49
    $region48: #{net_forward.1} parent=1 // pred_region
      %s5891 = ssub.s32 32, 32
      %5892 = vsyncadd [#allocation6], %s5891
      %s5894 = sshll.u32 [#allocation12], 4
      %s5895 = int_to_ptr.vmem [resolvable:$true] %s5894
      %5897 = dma.vmem_to_hbm [thread:$0]  %s5895, 32, %s7, [#allocation6]
    $region49: #{net_forward.1} parent=1 // pred_fallthru
      _
    // Predicated region
    $region50: #{net_forward.1} parent=1 // pred_check
      _
    $region51: #{net_forward.1} parent=1 // pred_check_branch
      %5899 = sbr.rel (0) target = $region53
    $region52: #{net_forward.1} parent=1 // pred_region
      %5900 = dma.done [#allocation6], 32
    $region53: #{net_forward.1} parent=1 // pred_fallthru
      _
    %5901 = vsyncpa [#allocation5], 1
    %5902 = vsyncpa [#allocation8], 1
    %5903 = vsyncpa [#allocation11], 1
    %5904 = vsyncpa [#allocation6], 1

</llo_original>
